<compile_context>
chip_gen: v7x
topology: tpu7x:2x2x1
jax: 0.10.0
libtpu: 0.0.40
codegen_flags: <defaults>
</compile_context>

<pallas_src>
import functools

import jax
import jax.numpy as jnp
from jax.experimental import pallas as pl
from jax.experimental.pallas import tpu as pltpu


# ----------------------------- Pallas kernels -------------------------------

def _rel_linear_kernel(x_ref, w_ref, b_ref, h_ref):
    """One relation's linear + relu: h_r = relu(x_r @ W_r + b_r).  grid=(3,), runs once."""
    h = jnp.dot(x_ref[...], w_ref[...], preferred_element_type=jnp.float32)
    h_ref[...] = jnp.maximum(h + b_ref[...], 0.0).astype(jnp.bfloat16)
    # TODO(synk): dropout on the aggregated features is identity in eval mode; not implemented.


def _het_agg_kernel(
    h_ref,       # [3, NXp, Dp]     bf16  relu(x_r @ W_r + b_r), grid-invariant
    A_ref,       # [3, TILE_N, NXp] bf16  per-relation adjacency rows (1/deg + w folded in)
    xn_ref,      # [TILE_N, Dp]     bf16  target-node features
    utop_ref,    # [1, Dp]          f32   u[:D]  (acts on aggr)   lane-dense row
    ubot_ref,    # [1, Dp]          f32   u[D:]  (acts on x_node) lane-dense row
    wft_ref,     # [Dp, Dp]         bf16  Wf[:D]  (acts on x_node)
    wfb_ref,     # [Dp, Dp]         bf16  Wf[D:]  (acts on combined)
    bf_ref,      # [1, Dp]          f32
    out_ref,     # [TILE_N, Dp]     f32
):
    """Fused Het_Agg forward for one TILE_N slab of target nodes."""
    x_node = xn_ref[...].astype(jnp.float32)                    # [TILE_N, Dp]
    u_top = utop_ref[...]                                       # [1, Dp]
    u_bot = ubot_ref[...]                                       # [1, Dp]

    # attention-score contribution from x_node (VPU mul + lane reduce, no 1-lane MXU matmul)
    x_u = jnp.sum(x_node * u_bot, axis=-1, keepdims=True)       # [TILE_N, 1]

    aggrs, zs = [], []
    for r in range(3):                                          # static unroll
        # mean-aggregation over edges as a dense adjacency matmul (mean already folded in A)
        aggr = jnp.dot(A_ref[r], h_ref[r], preferred_element_type=jnp.float32)  # [TILE_N, Dp]
        # leaky_relu(cat(aggr, x_node) @ u) via lane reduce
        z = jnp.sum(aggr * u_top, axis=-1, keepdims=True) + x_u
        z = jnp.where(z >= 0.0, z, 0.01 * z)                    # leaky_relu, slope 0.01
        zs.append(z)
        aggrs.append(aggr)

    # numerically stable softmax over the 3 relation scores (max-subtract; shift cancels)
    z_max = jnp.maximum(jnp.maximum(zs[0], zs[1]), zs[2])
    s0 = jnp.exp(zs[0] - z_max)
    s1 = jnp.exp(zs[1] - z_max)
    s2 = jnp.exp(zs[2] - z_max)
    inv_sum = pl.reciprocal(s0 + s1 + s2, approx=True)          # EUP
    combined = (s0 * aggrs[0] + s1 * aggrs[1] + s2 * aggrs[2]) * inv_sum   # [TILE_N, Dp]

    # final linear on cat(x_node, combined) with pre-split Wf halves
    # TODO(synk): on v6e/v7x the two K=128 matmuls could be fused into one K=256 matmul.
    y = (jnp.dot(xn_ref[...], wft_ref[...], preferred_element_type=jnp.float32)
         + jnp.dot(combined.astype(jnp.bfloat16), wfb_ref[...],
                   preferred_element_type=jnp.float32)
         + bf_ref[...])
    y = jnp.maximum(y, 0.0)                                     # relu

    # F.normalize(p=2, dim=-1): y / clamp_min(||y||_2, 1e-12) -> rsqrt on the EUP
    norm_sq = jnp.sum(y * y, axis=-1, keepdims=True)
    out_ref[...] = y * jax.lax.rsqrt(jnp.maximum(norm_sq, 1e-24))
    # TODO(synk): store bf16 here instead of f32 if downstream tolerates it (halves writeback).


# ------------------------------ JAX wrapper ---------------------------------

def _round_up(x, m):
    return (x + m - 1) // m * m


def _pad_to(x, rows, cols):
    r, c = x.shape
    return jnp.pad(x, ((0, rows - r), (0, cols - c)))


def _densify(edge_index, edge_weight, num_node, num_x):
    """Dense weighted adjacency with mean-by-in-degree folded in (scatter-add, no one-hot)."""
    src = edge_index[0]
    tgt = edge_index[1]
    if edge_weight is None:
        edge_weight = jnp.ones((edge_index.shape[1],), jnp.float32)
    A = jnp.zeros((num_node, num_x), jnp.float32).at[src, tgt].add(edge_weight)
    cnt = jnp.maximum(jnp.zeros((num_node,), jnp.float32).at[src].add(1.0), 1.0)
    return A / cnt[:, None]
    # TODO(synk): for very large graphs, replace the dense A with edge-segment aggregation
    # driven by PrefetchScalarGridSpec scalar prefetch instead of streaming O(N*num_x) HBM.


@functools.partial(jax.jit,
                   static_argnames=("num_node", "tile_n", "single_buffer_invariants"))
def het_agg_forward(params, x_list, edges_list, x_node, num_node, edge_weight_list,
                    tile_n=128, single_buffer_invariants=True):
    D = x_node.shape[1]
    Dp = _round_up(max(D, 128), 128)                             # lane-dense feature dim
    NXp = _round_up(max(max(x.shape[0] for x in x_list), 128), 128)
    Np = _round_up(max(num_node, tile_n), tile_n)

    # --- per-relation preprocessing (pad, fold 1/deg + weights into A, stack params) ------
    A_blocks, X_blocks, W_blocks, b_blocks = [], [], [], []
    names = (("Wm", "bm"), ("Wa", "ba"), ("Wd", "bd"))
    for r, (x, e, w) in enumerate(zip(x_list, edges_list, edge_weight_list)):
        A_blocks.append(_pad_to(_densify(e, w, num_node, x.shape[0]), Np, NXp))
        X_blocks.append(_pad_to(x.astype(jnp.float32), NXp, Dp))
        wk, bk = names[r]
        W_blocks.append(_pad_to(params[wk], Dp, Dp))
        b_blocks.append(_pad_to(params[bk], 1, Dp))

    A_stack = jnp.stack(A_blocks, 0).astype(jnp.bfloat16)        # [3, Np, NXp]
    X_stack = jnp.stack(X_blocks, 0).astype(jnp.bfloat16)        # [3, NXp, Dp]
    W_stack = jnp.stack(W_blocks, 0).astype(jnp.bfloat16)        # [3, Dp, Dp]
    b_stack = jnp.stack(b_blocks, 0)                             # [3, 1, Dp] f32

    # --- prologue: relation linears, computed exactly ONCE (hoisted out of the row grid) ---
    h_stack = pl.pallas_call(
        _rel_linear_kernel,
        out_shape=jax.ShapeDtypeStruct((3, NXp, Dp), jnp.bfloat16),
        grid=(3,),
        in_specs=[
            pl.BlockSpec((None, NXp, Dp), lambda r: (r, 0, 0)),
            pl.BlockSpec((None, Dp, Dp), lambda r: (r, 0, 0)),
            pl.BlockSpec((None, 1, Dp), lambda r: (r, 0, 0)),
        ],
        out_specs=pl.BlockSpec((None, NXp, Dp), lambda r: (r, 0, 0)),
        compiler_params=pltpu.CompilerParams(dimension_semantics=("arbitrary",)),
    )(X_stack, W_stack, b_stack)

    # --- remaining operand prep --------------------------------------------------------
    xn = _pad_to(x_node.astype(jnp.float32), Np, Dp).astype(jnp.bfloat16)
    u_top = _pad_to(params["u"][:D].T, 1, Dp)                    # [1, Dp] lane-dense row
    u_bot = _pad_to(params["u"][D:].T, 1, Dp)
    Wf_top = _pad_to(params["Wf"][:D], Dp, Dp).astype(jnp.bfloat16)
    Wf_bot = _pad_to(params["Wf"][D:], Dp, Dp).astype(jnp.bfloat16)
    bf = _pad_to(params["bf"], 1, Dp)

    def inv_spec(shape):
        idx = lambda i: (0,) * len(shape)
        if single_buffer_invariants:
            # invariant block: a second pipeline buffer is pure VMEM waste
            return pl.BlockSpec(shape, idx, pipeline_mode=pl.Buffered(1))
        return pl.BlockSpec(shape, idx)

    # TODO(synk): for very large NXp on v7x (64 MiB VMEM), add an "arbitrary" grid axis over
    # the neighbor dimension with an f32 aggr accumulator in scratch instead of holding the
    # full neighbor axis resident.
    out = pl.pallas_call(
        _het_agg_kernel,
        out_shape=jax.ShapeDtypeStruct((Np, Dp), jnp.float32),
        grid=(Np // tile_n,),
        in_specs=[
            inv_spec((3, NXp, Dp)),                              # h_stack (invariant)
            pl.BlockSpec((3, tile_n, NXp), lambda i: (0, i, 0)),  # A rows per tile
            pl.BlockSpec((tile_n, Dp), lambda i: (i, 0)),        # x_node rows per tile
            inv_spec((1, Dp)),                                   # u_top
            inv_spec((1, Dp)),                                   # u_bot
            inv_spec((Dp, Dp)),                                  # Wf_top
            inv_spec((Dp, Dp)),                                  # Wf_bot
            inv_spec((1, Dp)),                                   # bf
        ],
        out_specs=pl.BlockSpec((tile_n, Dp), lambda i: (i, 0)),
        compiler_params=pltpu.CompilerParams(
            dimension_semantics=("parallel",),                   # shard row tiles across TCs
            vmem_limit_bytes=32 << 20,                           # raise with tile_n*NXp (v5e has headroom)
        ),
    )(h_stack, A_stack, xn, u_top, u_bot, Wf_top, Wf_bot, bf)

    return out[:num_node, :D]


# --------------------------- pure-JAX reference ------------------------------

def _reference(params, x_list, edges_list, x_node, num_node, edge_weight_list):
    D = x_node.shape[1]

    def neigh(x, e, w, W, b):
        src, tgt = e[0], e[1]
        h = jnp.maximum(x @ W + b, 0.0)
        wx = h[tgt] * w[:, None]
        aggr = jnp.zeros((num_node, D), jnp.float32).at[src].add(wx)
        cnt = jnp.maximum(jnp.zeros((num_node,), jnp.float32).at[src].add(1.0), 1.0)
        return aggr / cnt[:, None]

    m = neigh(x_list[0], edges_list[0], edge_weight_list[0], params["Wm"], params["bm"])
    a = neigh(x_list[1], edges_list[1], edge_weight_list[1], params["Wa"], params["ba"])
    d = neigh(x_list[2], edges_list[2], edge_weight_list[2], params["Wd"], params["bd"])

    def score(aggr):
        z = jnp.concatenate([aggr, x_node], -1) @ params["u"]
        return jnp.exp(jnp.where(z >= 0, z, 0.01 * z))

    sm, sa, sd = score(m), score(a), score(d)
    ssum = sm + sa + sd
    comb = (sm / ssum) * m + (sa / ssum) * a + (sd / ssum) * d
    y = jnp.maximum(jnp.concatenate([x_node, comb], -1) @ params["Wf"] + params["bf"], 0.0)
    norm = jnp.sqrt(jnp.sum(y * y, -1, keepdims=True))
    return y / jnp.maximum(norm, 1e-12)


# --------------------------------- main --------------------------------------

if __name__ == "__main__":
    key = jax.random.PRNGKey(0)
    D = 32               # embed_dim
    N = 32               # num_node (target nodes)
    NXS = (24, 20, 28)   # neighbor-node counts per relation (m, a, d)
    ES = (64, 48, 56)    # edge counts per relation

    ks = jax.random.split(key, 24)
    ki = iter(ks)

    # deterministic parameter init (shapes follow the nn.Module __init__)
    def lin(k, d_in, d_out):
        kw, kb = jax.random.split(k)
        W = jax.random.normal(kw, (d_in, d_out), jnp.float32) * 0.1   # pre-transposed
        b = jax.random.normal(kb, (1, d_out), jnp.float32) * 0.1
        return W, b

    Wm, bm = lin(next(ki), D, D)
    Wa, ba = lin(next(ki), D, D)
    Wd, bd = lin(next(ki), D, D)
    Wf, bf = lin(next(ki), 2 * D, D)
    u = jax.random.normal(next(ki), (2 * D, 1), jnp.float32)          # N(0, 1)

    params = dict(Wm=Wm, bm=bm, Wa=Wa, ba=ba, Wd=Wd, bd=bd, Wf=Wf, bf=bf, u=u)

    # deterministic example inputs
    x_list, edges_list, ew_list = [], [], []
    for nx, ne in zip(NXS, ES):
        x_list.append(jax.random.normal(next(ki), (nx, D), jnp.float32))
        src = jax.random.randint(next(ki), (ne,), 0, N)    # indexes aggr rows
        tgt = jax.random.randint(next(ki), (ne,), 0, nx)   # indexes x rows
        edges_list.append(jnp.stack([src, tgt], axis=0).astype(jnp.int32))
        ew_list.append(jax.random.uniform(next(ki), (ne,), jnp.float32, 0.5, 1.5))
    x_node = jax.random.normal(next(ki), (N, D), jnp.float32)

    args = (params, tuple(x_list), tuple(edges_list), x_node, N, tuple(ew_list))
    try:
        out = jax.block_until_ready(het_agg_forward(*args, single_buffer_invariants=True))
    except Exception:
        # Portability fallback: jax versions without BlockSpec.pipeline_mode / pl.Buffered
        # run the identical kernel with default (double) buffering for invariant operands.
        out = jax.block_until_ready(het_agg_forward(*args, single_buffer_invariants=False))

    ref = _reference(params, x_list, edges_list, x_node, N, ew_list)
    assert out.shape == (N, D)
    # tolerances widened vs. the pure-f32 path: MXU operands are bf16 (f32 accumulation)
    assert jnp.allclose(out, ref, rtol=5e-2, atol=5e-2), "mismatch vs reference"

    print("KERNEL_OK")
</pallas_src>

<mosaic_0001>
module attributes {stable_mosaic.version = 11 : i64} {
  func.func private @main(%arg0: i32) attributes {dimension_semantics = [#tpu.dimension_semantics<core_parallel>], iteration_bounds = array<i64: 2>, tpu.core_type = #tpu.core_type<sc_scalar_subcore>, window_params = []} {
    return
  }
}

module attributes {stable_mosaic.version = 11 : i64} {
  func.func private @main(%arg0: i32) attributes {dimension_semantics = [#tpu.dimension_semantics<core_parallel>], iteration_bounds = array<i64: 2>, tpu.core_type = #tpu.core_type<sc_scalar_subcore>, window_params = []} {
    return
  }
}

module attributes {stable_mosaic.version = 11 : i64} {
  func.func @_rel_linear_kernel(%arg0: i32, %arg1: memref<1x128x128xbf16, #tpu.memory_space<vmem>>, %arg2: memref<1x128x128xbf16, #tpu.memory_space<vmem>>, %arg3: memref<1x1x128xf32, #tpu.memory_space<vmem>>, %arg4: memref<1x128x128xbf16, #tpu.memory_space<vmem>>) attributes {dimension_semantics = [#tpu.dimension_semantics<arbitrary>], iteration_bounds = array<i64: 3>, scalar_prefetch = 0 : i64, scratch_operands = 0 : i64, tpu.core_type = #tpu.core_type<tc>, window_params = [{transform_indices = @transform_0, window_bounds = array<i64: 1, 128, 128>}, {transform_indices = @transform_1, window_bounds = array<i64: 1, 128, 128>}, {transform_indices = @transform_2, window_bounds = array<i64: 1, 1, 128>}, {transform_indices = @transform_3, window_bounds = array<i64: 1, 128, 128>}]} {
    %c0 = arith.constant 0 : index
    %c0_0 = arith.constant 0 : index
    %c0_1 = arith.constant 0 : index
    %0 = vector.load %arg1[%c0, %c0_0, %c0_1] : memref<1x128x128xbf16, #tpu.memory_space<vmem>>, vector<1x128x128xbf16>
    %1 = vector.shape_cast %0 : vector<1x128x128xbf16> to vector<128x128xbf16>
    %c0_2 = arith.constant 0 : index
    %c0_3 = arith.constant 0 : index
    %c0_4 = arith.constant 0 : index
    %2 = vector.load %arg2[%c0_2, %c0_3, %c0_4] : memref<1x128x128xbf16, #tpu.memory_space<vmem>>, vector<1x128x128xbf16>
    %3 = vector.shape_cast %2 : vector<1x128x128xbf16> to vector<128x128xbf16>
    %cst = arith.constant dense<0.000000e+00> : vector<128x128xf32>
    %4 = tpu.matmul %1, %3, %cst {dimension_numbers = #tpu.dot_dimension_numbers<[1], [0], [0], [1], [0, 0, 1, 1], [], []>} : vector<128x128xbf16>, vector<128x128xbf16>, vector<128x128xf32> -> vector<128x128xf32>
    %c0_5 = arith.constant 0 : index
    %c0_6 = arith.constant 0 : index
    %c0_7 = arith.constant 0 : index
    %5 = vector.load %arg3[%c0_5, %c0_6, %c0_7] : memref<1x1x128xf32, #tpu.memory_space<vmem>>, vector<1x1x128xf32>
    %6 = vector.shape_cast %5 : vector<1x1x128xf32> to vector<1x128xf32>
    %7 = vector.broadcast %6 : vector<1x128xf32> to vector<128x128xf32>
    %8 = arith.addf %4, %7 : vector<128x128xf32>
    %cst_8 = arith.constant 0.000000e+00 : f32
    %9 = vector.broadcast %cst_8 : f32 to vector<128x128xf32>
    %10 = arith.maximumf %8, %9 : vector<128x128xf32>
    %11 = arith.truncf %10 : vector<128x128xf32> to vector<128x128xbf16>
    %c0_9 = arith.constant 0 : index
    %c0_10 = arith.constant 0 : index
    %c0_11 = arith.constant 0 : index
    %12 = vector.load %arg4[%c0_9, %c0_10, %c0_11] : memref<1x128x128xbf16, #tpu.memory_space<vmem>>, vector<1x128x128xbf16>
    %13 = vector.shape_cast %12 : vector<1x128x128xbf16> to vector<128x128xbf16>
    %14 = vector.shape_cast %11 : vector<128x128xbf16> to vector<1x128x128xbf16>
    tpu.vector_store %arg4[%c0_9, %c0_10, %c0_11], %14 {strides = array<i32>} : memref<1x128x128xbf16, #tpu.memory_space<vmem>>, vector<1x128x128xbf16>,
    return
  }
  func.func @transform_0(%arg0: i32) -> (i32, i32, i32) {
    %c0_i32 = arith.constant 0 : i32
    %c0_i32_0 = arith.constant 0 : i32
    %c0_i32_1 = arith.constant 0 : i32
    return %arg0, %c0_i32, %c0_i32_0 : i32, i32, i32
  }
  func.func @transform_1(%arg0: i32) -> (i32, i32, i32) {
    %c0_i32 = arith.constant 0 : i32
    %c0_i32_0 = arith.constant 0 : i32
    %c0_i32_1 = arith.constant 0 : i32
    return %arg0, %c0_i32, %c0_i32_0 : i32, i32, i32
  }
  func.func @transform_2(%arg0: i32) -> (i32, i32, i32) {
    %c0_i32 = arith.constant 0 : i32
    %c0_i32_0 = arith.constant 0 : i32
    %c0_i32_1 = arith.constant 0 : i32
    return %arg0, %c0_i32, %c0_i32_0 : i32, i32, i32
  }
  func.func @transform_3(%arg0: i32) -> (i32, i32, i32) {
    %c0_i32 = arith.constant 0 : i32
    %c0_i32_0 = arith.constant 0 : i32
    %c0_i32_1 = arith.constant 0 : i32
    return %arg0, %c0_i32, %c0_i32_0 : i32, i32, i32
  }
}

module attributes {stable_mosaic.version = 11 : i64} {
  func.func @_het_agg_kernel(%arg0: i32, %arg1: memref<3x128x128xbf16, #tpu.memory_space<vmem>>, %arg2: memref<3x128x128xbf16, #tpu.memory_space<vmem>>, %arg3: memref<128x128xbf16, #tpu.memory_space<vmem>>, %arg4: memref<1x128xf32, #tpu.memory_space<vmem>>, %arg5: memref<1x128xf32, #tpu.memory_space<vmem>>, %arg6: memref<128x128xbf16, #tpu.memory_space<vmem>>, %arg7: memref<128x128xbf16, #tpu.memory_space<vmem>>, %arg8: memref<1x128xf32, #tpu.memory_space<vmem>>, %arg9: memref<128x128xf32, #tpu.memory_space<vmem>>) attributes {dimension_semantics = [#tpu.dimension_semantics<parallel>], iteration_bounds = array<i64: 1>, scalar_prefetch = 0 : i64, scratch_operands = 0 : i64, tpu.core_type = #tpu.core_type<tc>, window_params = [{pipeline_mode = #tpu.pipeline_mode<synchronous>, transform_indices = @transform_0, window_bounds = array<i64: 3, 128, 128>}, {transform_indices = @transform_1, window_bounds = array<i64: 3, 128, 128>}, {transform_indices = @transform_2, window_bounds = array<i64: 128, 128>}, {pipeline_mode = #tpu.pipeline_mode<synchronous>, transform_indices = @transform_3, window_bounds = array<i64: 1, 128>}, {pipeline_mode = #tpu.pipeline_mode<synchronous>, transform_indices = @transform_4, window_bounds = array<i64: 1, 128>}, {pipeline_mode = #tpu.pipeline_mode<synchronous>, transform_indices = @transform_5, window_bounds = array<i64: 128, 128>}, {pipeline_mode = #tpu.pipeline_mode<synchronous>, transform_indices = @transform_6, window_bounds = array<i64: 128, 128>}, {pipeline_mode = #tpu.pipeline_mode<synchronous>, transform_indices = @transform_7, window_bounds = array<i64: 1, 128>}, {transform_indices = @transform_8, window_bounds = array<i64: 128, 128>}]} {
    %c0 = arith.constant 0 : index
    %c0_0 = arith.constant 0 : index
    %0 = vector.load %arg3[%c0, %c0_0] : memref<128x128xbf16, #tpu.memory_space<vmem>>, vector<128x128xbf16>
    %1 = arith.extf %0 : vector<128x128xbf16> to vector<128x128xf32>
    %c0_1 = arith.constant 0 : index
    %c0_2 = arith.constant 0 : index
    %2 = vector.load %arg4[%c0_1, %c0_2] : memref<1x128xf32, #tpu.memory_space<vmem>>, vector<1x128xf32>
    %c0_3 = arith.constant 0 : index
    %c0_4 = arith.constant 0 : index
    %3 = vector.load %arg5[%c0_3, %c0_4] : memref<1x128xf32, #tpu.memory_space<vmem>>, vector<1x128xf32>
    %4 = vector.broadcast %3 : vector<1x128xf32> to vector<128x128xf32>
    %5 = arith.mulf %1, %4 : vector<128x128xf32>
    %cst = arith.constant dense<0.000000e+00> : vector<128xf32>
    %6 = vector.multi_reduction <add>, %5, %cst [1] : vector<128x128xf32> to vector<128xf32>
    %7 = vector.shape_cast %6 : vector<128xf32> to vector<128x1xf32>
    %c0_5 = arith.constant 0 : index
    %c0_6 = arith.constant 0 : index
    %c0_7 = arith.constant 0 : index
    %8 = vector.load %arg2[%c0_5, %c0_6, %c0_7] : memref<3x128x128xbf16, #tpu.memory_space<vmem>>, vector<1x128x128xbf16>
    %9 = vector.shape_cast %8 : vector<1x128x128xbf16> to vector<128x128xbf16>
    %c0_8 = arith.constant 0 : index
    %c0_9 = arith.constant 0 : index
    %c0_10 = arith.constant 0 : index
    %10 = vector.load %arg1[%c0_8, %c0_9, %c0_10] : memref<3x128x128xbf16, #tpu.memory_space<vmem>>, vector<1x128x128xbf16>
    %11 = vector.shape_cast %10 : vector<1x128x128xbf16> to vector<128x128xbf16>
    %cst_11 = arith.constant dense<0.000000e+00> : vector<128x128xf32>
    %12 = tpu.matmul %9, %11, %cst_11 {dimension_numbers = #tpu.dot_dimension_numbers<[1], [0], [0], [1], [0, 0, 1, 1], [], []>} : vector<128x128xbf16>, vector<128x128xbf16>, vector<128x128xf32> -> vector<128x128xf32>
    %13 = vector.broadcast %2 : vector<1x128xf32> to vector<128x128xf32>
    %14 = arith.mulf %12, %13 : vector<128x128xf32>
    %cst_12 = arith.constant dense<0.000000e+00> : vector<128xf32>
    %15 = vector.multi_reduction <add>, %14, %cst_12 [1] : vector<128x128xf32> to vector<128xf32>
    %16 = vector.shape_cast %15 : vector<128xf32> to vector<128x1xf32>
    %17 = arith.addf %16, %7 : vector<128x1xf32>
    %cst_13 = arith.constant 0.000000e+00 : f32
    %18 = vector.broadcast %cst_13 : f32 to vector<128x1xf32>
    %19 = arith.cmpf oge, %17, %18 : vector<128x1xf32>
    %cst_14 = arith.constant 0.00999999977 : f32
    %20 = vector.broadcast %cst_14 : f32 to vector<128x1xf32>
    %21 = arith.mulf %20, %17 : vector<128x1xf32>
    %22 = arith.select %19, %17, %21 : vector<128x1xi1>, vector<128x1xf32>
    %c1 = arith.constant 1 : index
    %c0_15 = arith.constant 0 : index
    %c0_16 = arith.constant 0 : index
    %23 = vector.load %arg2[%c1, %c0_15, %c0_16] : memref<3x128x128xbf16, #tpu.memory_space<vmem>>, vector<1x128x128xbf16>
    %24 = vector.shape_cast %23 : vector<1x128x128xbf16> to vector<128x128xbf16>
    %c1_17 = arith.constant 1 : index
    %c0_18 = arith.constant 0 : index
    %c0_19 = arith.constant 0 : index
    %25 = vector.load %arg1[%c1_17, %c0_18, %c0_19] : memref<3x128x128xbf16, #tpu.memory_space<vmem>>, vector<1x128x128xbf16>
    %26 = vector.shape_cast %25 : vector<1x128x128xbf16> to vector<128x128xbf16>
    %cst_20 = arith.constant dense<0.000000e+00> : vector<128x128xf32>
    %27 = tpu.matmul %24, %26, %cst_20 {dimension_numbers = #tpu.dot_dimension_numbers<[1], [0], [0], [1], [0, 0, 1, 1], [], []>} : vector<128x128xbf16>, vector<128x128xbf16>, vector<128x128xf32> -> vector<128x128xf32>
    %28 = vector.broadcast %2 : vector<1x128xf32> to vector<128x128xf32>
    %29 = arith.mulf %27, %28 : vector<128x128xf32>
    %cst_21 = arith.constant dense<0.000000e+00> : vector<128xf32>
    %30 = vector.multi_reduction <add>, %29, %cst_21 [1] : vector<128x128xf32> to vector<128xf32>
    %31 = vector.shape_cast %30 : vector<128xf32> to vector<128x1xf32>
    %32 = arith.addf %31, %7 : vector<128x1xf32>
    %cst_22 = arith.constant 0.000000e+00 : f32
    %33 = vector.broadcast %cst_22 : f32 to vector<128x1xf32>
    %34 = arith.cmpf oge, %32, %33 : vector<128x1xf32>
    %cst_23 = arith.constant 0.00999999977 : f32
    %35 = vector.broadcast %cst_23 : f32 to vector<128x1xf32>
    %36 = arith.mulf %35, %32 : vector<128x1xf32>
    %37 = arith.select %34, %32, %36 : vector<128x1xi1>, vector<128x1xf32>
    %c2 = arith.constant 2 : index
    %c0_24 = arith.constant 0 : index
    %c0_25 = arith.constant 0 : index
    %38 = vector.load %arg2[%c2, %c0_24, %c0_25] : memref<3x128x128xbf16, #tpu.memory_space<vmem>>, vector<1x128x128xbf16>
    %39 = vector.shape_cast %38 : vector<1x128x128xbf16> to vector<128x128xbf16>
    %c2_26 = arith.constant 2 : index
    %c0_27 = arith.constant 0 : index
    %c0_28 = arith.constant 0 : index
    %40 = vector.load %arg1[%c2_26, %c0_27, %c0_28] : memref<3x128x128xbf16, #tpu.memory_space<vmem>>, vector<1x128x128xbf16>
    %41 = vector.shape_cast %40 : vector<1x128x128xbf16> to vector<128x128xbf16>
    %cst_29 = arith.constant dense<0.000000e+00> : vector<128x128xf32>
    %42 = tpu.matmul %39, %41, %cst_29 {dimension_numbers = #tpu.dot_dimension_numbers<[1], [0], [0], [1], [0, 0, 1, 1], [], []>} : vector<128x128xbf16>, vector<128x128xbf16>, vector<128x128xf32> -> vector<128x128xf32>
    %43 = vector.broadcast %2 : vector<1x128xf32> to vector<128x128xf32>
    %44 = arith.mulf %42, %43 : vector<128x128xf32>
    %cst_30 = arith.constant dense<0.000000e+00> : vector<128xf32>
    %45 = vector.multi_reduction <add>, %44, %cst_30 [1] : vector<128x128xf32> to vector<128xf32>
    %46 = vector.shape_cast %45 : vector<128xf32> to vector<128x1xf32>
    %47 = arith.addf %46, %7 : vector<128x1xf32>
    %cst_31 = arith.constant 0.000000e+00 : f32
    %48 = vector.broadcast %cst_31 : f32 to vector<128x1xf32>
    %49 = arith.cmpf oge, %47, %48 : vector<128x1xf32>
    %cst_32 = arith.constant 0.00999999977 : f32
    %50 = vector.broadcast %cst_32 : f32 to vector<128x1xf32>
    %51 = arith.mulf %50, %47 : vector<128x1xf32>
    %52 = arith.select %49, %47, %51 : vector<128x1xi1>, vector<128x1xf32>
    %53 = arith.maximumf %22, %37 : vector<128x1xf32>
    %54 = arith.maximumf %53, %52 : vector<128x1xf32>
    %55 = arith.subf %22, %54 : vector<128x1xf32>
    %56 = math.exp %55 : vector<128x1xf32>
    %57 = arith.subf %37, %54 : vector<128x1xf32>
    %58 = math.exp %57 : vector<128x1xf32>
    %59 = arith.subf %52, %54 : vector<128x1xf32>
    %60 = math.exp %59 : vector<128x1xf32>
    %61 = arith.addf %56, %58 : vector<128x1xf32>
    %62 = arith.addf %61, %60 : vector<128x1xf32>
    %63 = tpu.reciprocal %62 {approx = true} : vector<128x1xf32> -> vector<128x1xf32>
    %64 = vector.broadcast %56 : vector<128x1xf32> to vector<128x128xf32>
    %65 = arith.mulf %64, %12 : vector<128x128xf32>
    %66 = vector.broadcast %58 : vector<128x1xf32> to vector<128x128xf32>
    %67 = arith.mulf %66, %27 : vector<128x128xf32>
    %68 = arith.addf %65, %67 : vector<128x128xf32>
    %69 = vector.broadcast %60 : vector<128x1xf32> to vector<128x128xf32>
    %70 = arith.mulf %69, %42 : vector<128x128xf32>
    %71 = arith.addf %68, %70 : vector<128x128xf32>
    %72 = vector.broadcast %63 : vector<128x1xf32> to vector<128x128xf32>
    %73 = arith.mulf %71, %72 : vector<128x128xf32>
    %c0_33 = arith.constant 0 : index
    %c0_34 = arith.constant 0 : index
    %74 = vector.load %arg3[%c0_33, %c0_34] : memref<128x128xbf16, #tpu.memory_space<vmem>>, vector<128x128xbf16>
    %c0_35 = arith.constant 0 : index
    %c0_36 = arith.constant 0 : index
    %75 = vector.load %arg6[%c0_35, %c0_36] : memref<128x128xbf16, #tpu.memory_space<vmem>>, vector<128x128xbf16>
    %cst_37 = arith.constant dense<0.000000e+00> : vector<128x128xf32>
    %76 = tpu.matmul %74, %75, %cst_37 {dimension_numbers = #tpu.dot_dimension_numbers<[1], [0], [0], [1], [0, 0, 1, 1], [], []>} : vector<128x128xbf16>, vector<128x128xbf16>, vector<128x128xf32> -> vector<128x128xf32>
    %77 = arith.truncf %73 : vector<128x128xf32> to vector<128x128xbf16>
    %c0_38 = arith.constant 0 : index
    %c0_39 = arith.constant 0 : index
    %78 = vector.load %arg7[%c0_38, %c0_39] : memref<128x128xbf16, #tpu.memory_space<vmem>>, vector<128x128xbf16>
    %cst_40 = arith.constant dense<0.000000e+00> : vector<128x128xf32>
    %79 = tpu.matmul %77, %78, %cst_40 {dimension_numbers = #tpu.dot_dimension_numbers<[1], [0], [0], [1], [0, 0, 1, 1], [], []>} : vector<128x128xbf16>, vector<128x128xbf16>, vector<128x128xf32> -> vector<128x128xf32>
    %80 = arith.addf %76, %79 : vector<128x128xf32>
    %c0_41 = arith.constant 0 : index
    %c0_42 = arith.constant 0 : index
    %81 = vector.load %arg8[%c0_41, %c0_42] : memref<1x128xf32, #tpu.memory_space<vmem>>, vector<1x128xf32>
    %82 = vector.broadcast %81 : vector<1x128xf32> to vector<128x128xf32>
    %83 = arith.addf %80, %82 : vector<128x128xf32>
    %cst_43 = arith.constant 0.000000e+00 : f32
    %84 = vector.broadcast %cst_43 : f32 to vector<128x128xf32>
    %85 = arith.maximumf %83, %84 : vector<128x128xf32>
    %86 = arith.mulf %85, %85 : vector<128x128xf32>
    %cst_44 = arith.constant dense<0.000000e+00> : vector<128xf32>
    %87 = vector.multi_reduction <add>, %86, %cst_44 [1] : vector<128x128xf32> to vector<128xf32>
    %88 = vector.shape_cast %87 : vector<128xf32> to vector<128x1xf32>
    %cst_45 = arith.constant 1.000000e-24 : f32
    %89 = vector.broadcast %cst_45 : f32 to vector<128x1xf32>
    %90 = arith.maximumf %88, %89 : vector<128x1xf32>
    %91 = math.rsqrt %90 : vector<128x1xf32>
    %92 = vector.broadcast %91 : vector<128x1xf32> to vector<128x128xf32>
    %93 = arith.mulf %85, %92 : vector<128x128xf32>
    %c0_46 = arith.constant 0 : index
    %c0_47 = arith.constant 0 : index
    %94 = vector.load %arg9[%c0_46, %c0_47] : memref<128x128xf32, #tpu.memory_space<vmem>>, vector<128x128xf32>
    tpu.vector_store %arg9[%c0_46, %c0_47], %93 {strides = array<i32>} : memref<128x128xf32, #tpu.memory_space<vmem>>, vector<128x128xf32>,
    return
  }
  func.func @transform_0(%arg0: i32) -> (i32, i32, i32) {
    %c0_i32 = arith.constant 0 : i32
    %c0_i32_0 = arith.constant 0 : i32
    %c0_i32_1 = arith.constant 0 : i32
    %c0_i32_2 = arith.constant 0 : i32
    return %c0_i32, %c0_i32_0, %c0_i32_1 : i32, i32, i32
  }
  func.func @transform_1(%arg0: i32) -> (i32, i32, i32) {
    %c0_i32 = arith.constant 0 : i32
    %c0_i32_0 = arith.constant 0 : i32
    %c0_i32_1 = arith.constant 0 : i32
    return %c0_i32, %arg0, %c0_i32_0 : i32, i32, i32
  }
  func.func @transform_2(%arg0: i32) -> (i32, i32) {
    %c0_i32 = arith.constant 0 : i32
    %c0_i32_0 = arith.constant 0 : i32
    return %arg0, %c0_i32 : i32, i32
  }
  func.func @transform_3(%arg0: i32) -> (i32, i32) {
    %c0_i32 = arith.constant 0 : i32
    %c0_i32_0 = arith.constant 0 : i32
    %c0_i32_1 = arith.constant 0 : i32
    return %c0_i32, %c0_i32_0 : i32, i32
  }
  func.func @transform_4(%arg0: i32) -> (i32, i32) {
    %c0_i32 = arith.constant 0 : i32
    %c0_i32_0 = arith.constant 0 : i32
    %c0_i32_1 = arith.constant 0 : i32
    return %c0_i32, %c0_i32_0 : i32, i32
  }
  func.func @transform_5(%arg0: i32) -> (i32, i32) {
    %c0_i32 = arith.constant 0 : i32
    %c0_i32_0 = arith.constant 0 : i32
    %c0_i32_1 = arith.constant 0 : i32
    return %c0_i32, %c0_i32_0 : i32, i32
  }
  func.func @transform_6(%arg0: i32) -> (i32, i32) {
    %c0_i32 = arith.constant 0 : i32
    %c0_i32_0 = arith.constant 0 : i32
    %c0_i32_1 = arith.constant 0 : i32
    return %c0_i32, %c0_i32_0 : i32, i32
  }
  func.func @transform_7(%arg0: i32) -> (i32, i32) {
    %c0_i32 = arith.constant 0 : i32
    %c0_i32_0 = arith.constant 0 : i32
    %c0_i32_1 = arith.constant 0 : i32
    return %c0_i32, %c0_i32_0 : i32, i32
  }
  func.func @transform_8(%arg0: i32) -> (i32, i32) {
    %c0_i32 = arith.constant 0 : i32
    %c0_i32_0 = arith.constant 0 : i32
    return %arg0, %c0_i32 : i32, i32
  }
}

module attributes {stable_mosaic.version = 11 : i64} {
  func.func private @main(%arg0: i32) attributes {dimension_semantics = [#tpu.dimension_semantics<core_parallel>], iteration_bounds = array<i64: 2>, tpu.core_type = #tpu.core_type<sc_scalar_subcore>, window_params = []} {
    return
  }
}

module attributes {stable_mosaic.version = 11 : i64} {
  func.func private @main(%arg0: i32) attributes {dimension_semantics = [#tpu.dimension_semantics<core_parallel>], iteration_bounds = array<i64: 2>, tpu.core_type = #tpu.core_type<sc_scalar_subcore>, window_params = []} {
    return
  }
}

module attributes {stable_mosaic.version = 11 : i64} {
  func.func @_rel_linear_kernel(%arg0: i32, %arg1: memref<1x128x128xbf16, #tpu.memory_space<vmem>>, %arg2: memref<1x128x128xbf16, #tpu.memory_space<vmem>>, %arg3: memref<1x1x128xf32, #tpu.memory_space<vmem>>, %arg4: memref<1x128x128xbf16, #tpu.memory_space<vmem>>) attributes {dimension_semantics = [#tpu.dimension_semantics<arbitrary>], iteration_bounds = array<i64: 3>, scalar_prefetch = 0 : i64, scratch_operands = 0 : i64, tpu.core_type = #tpu.core_type<tc>, window_params = [{transform_indices = @transform_0, window_bounds = array<i64: 1, 128, 128>}, {transform_indices = @transform_1, window_bounds = array<i64: 1, 128, 128>}, {transform_indices = @transform_2, window_bounds = array<i64: 1, 1, 128>}, {transform_indices = @transform_3, window_bounds = array<i64: 1, 128, 128>}]} {
    %c0 = arith.constant 0 : index
    %c0_0 = arith.constant 0 : index
    %c0_1 = arith.constant 0 : index
    %0 = vector.load %arg1[%c0, %c0_0, %c0_1] : memref<1x128x128xbf16, #tpu.memory_space<vmem>>, vector<1x128x128xbf16>
    %1 = vector.shape_cast %0 : vector<1x128x128xbf16> to vector<128x128xbf16>
    %c0_2 = arith.constant 0 : index
    %c0_3 = arith.constant 0 : index
    %c0_4 = arith.constant 0 : index
    %2 = vector.load %arg2[%c0_2, %c0_3, %c0_4] : memref<1x128x128xbf16, #tpu.memory_space<vmem>>, vector<1x128x128xbf16>
    %3 = vector.shape_cast %2 : vector<1x128x128xbf16> to vector<128x128xbf16>
    %cst = arith.constant dense<0.000000e+00> : vector<128x128xf32>
    %4 = tpu.matmul %1, %3, %cst {dimension_numbers = #tpu.dot_dimension_numbers<[1], [0], [0], [1], [0, 0, 1, 1], [], []>} : vector<128x128xbf16>, vector<128x128xbf16>, vector<128x128xf32> -> vector<128x128xf32>
    %c0_5 = arith.constant 0 : index
    %c0_6 = arith.constant 0 : index
    %c0_7 = arith.constant 0 : index
    %5 = vector.load %arg3[%c0_5, %c0_6, %c0_7] : memref<1x1x128xf32, #tpu.memory_space<vmem>>, vector<1x1x128xf32>
    %6 = vector.shape_cast %5 : vector<1x1x128xf32> to vector<1x128xf32>
    %7 = vector.broadcast %6 : vector<1x128xf32> to vector<128x128xf32>
    %8 = arith.addf %4, %7 : vector<128x128xf32>
    %cst_8 = arith.constant 0.000000e+00 : f32
    %9 = vector.broadcast %cst_8 : f32 to vector<128x128xf32>
    %10 = arith.maximumf %8, %9 : vector<128x128xf32>
    %11 = arith.truncf %10 : vector<128x128xf32> to vector<128x128xbf16>
    %c0_9 = arith.constant 0 : index
    %c0_10 = arith.constant 0 : index
    %c0_11 = arith.constant 0 : index
    %12 = vector.load %arg4[%c0_9, %c0_10, %c0_11] : memref<1x128x128xbf16, #tpu.memory_space<vmem>>, vector<1x128x128xbf16>
    %13 = vector.shape_cast %12 : vector<1x128x128xbf16> to vector<128x128xbf16>
    %14 = vector.shape_cast %11 : vector<128x128xbf16> to vector<1x128x128xbf16>
    tpu.vector_store %arg4[%c0_9, %c0_10, %c0_11], %14 {strides = array<i32>} : memref<1x128x128xbf16, #tpu.memory_space<vmem>>, vector<1x128x128xbf16>,
    return
  }
  func.func @transform_0(%arg0: i32) -> (i32, i32, i32) {
    %c0_i32 = arith.constant 0 : i32
    %c0_i32_0 = arith.constant 0 : i32
    %c0_i32_1 = arith.constant 0 : i32
    return %arg0, %c0_i32, %c0_i32_0 : i32, i32, i32
  }
  func.func @transform_1(%arg0: i32) -> (i32, i32, i32) {
    %c0_i32 = arith.constant 0 : i32
    %c0_i32_0 = arith.constant 0 : i32
    %c0_i32_1 = arith.constant 0 : i32
    return %arg0, %c0_i32, %c0_i32_0 : i32, i32, i32
  }
  func.func @transform_2(%arg0: i32) -> (i32, i32, i32) {
    %c0_i32 = arith.constant 0 : i32
    %c0_i32_0 = arith.constant 0 : i32
    %c0_i32_1 = arith.constant 0 : i32
    return %arg0, %c0_i32, %c0_i32_0 : i32, i32, i32
  }
  func.func @transform_3(%arg0: i32) -> (i32, i32, i32) {
    %c0_i32 = arith.constant 0 : i32
    %c0_i32_0 = arith.constant 0 : i32
    %c0_i32_1 = arith.constant 0 : i32
    return %arg0, %c0_i32, %c0_i32_0 : i32, i32, i32
  }
}

module attributes {stable_mosaic.version = 11 : i64} {
  func.func @_het_agg_kernel(%arg0: i32, %arg1: memref<3x128x128xbf16, #tpu.memory_space<vmem>>, %arg2: memref<3x128x128xbf16, #tpu.memory_space<vmem>>, %arg3: memref<128x128xbf16, #tpu.memory_space<vmem>>, %arg4: memref<1x128xf32, #tpu.memory_space<vmem>>, %arg5: memref<1x128xf32, #tpu.memory_space<vmem>>, %arg6: memref<128x128xbf16, #tpu.memory_space<vmem>>, %arg7: memref<128x128xbf16, #tpu.memory_space<vmem>>, %arg8: memref<1x128xf32, #tpu.memory_space<vmem>>, %arg9: memref<128x128xf32, #tpu.memory_space<vmem>>) attributes {dimension_semantics = [#tpu.dimension_semantics<parallel>], iteration_bounds = array<i64: 1>, scalar_prefetch = 0 : i64, scratch_operands = 0 : i64, tpu.core_type = #tpu.core_type<tc>, window_params = [{pipeline_mode = #tpu.pipeline_mode<synchronous>, transform_indices = @transform_0, window_bounds = array<i64: 3, 128, 128>}, {transform_indices = @transform_1, window_bounds = array<i64: 3, 128, 128>}, {transform_indices = @transform_2, window_bounds = array<i64: 128, 128>}, {pipeline_mode = #tpu.pipeline_mode<synchronous>, transform_indices = @transform_3, window_bounds = array<i64: 1, 128>}, {pipeline_mode = #tpu.pipeline_mode<synchronous>, transform_indices = @transform_4, window_bounds = array<i64: 1, 128>}, {pipeline_mode = #tpu.pipeline_mode<synchronous>, transform_indices = @transform_5, window_bounds = array<i64: 128, 128>}, {pipeline_mode = #tpu.pipeline_mode<synchronous>, transform_indices = @transform_6, window_bounds = array<i64: 128, 128>}, {pipeline_mode = #tpu.pipeline_mode<synchronous>, transform_indices = @transform_7, window_bounds = array<i64: 1, 128>}, {transform_indices = @transform_8, window_bounds = array<i64: 128, 128>}]} {
    %c0 = arith.constant 0 : index
    %c0_0 = arith.constant 0 : index
    %0 = vector.load %arg3[%c0, %c0_0] : memref<128x128xbf16, #tpu.memory_space<vmem>>, vector<128x128xbf16>
    %1 = arith.extf %0 : vector<128x128xbf16> to vector<128x128xf32>
    %c0_1 = arith.constant 0 : index
    %c0_2 = arith.constant 0 : index
    %2 = vector.load %arg4[%c0_1, %c0_2] : memref<1x128xf32, #tpu.memory_space<vmem>>, vector<1x128xf32>
    %c0_3 = arith.constant 0 : index
    %c0_4 = arith.constant 0 : index
    %3 = vector.load %arg5[%c0_3, %c0_4] : memref<1x128xf32, #tpu.memory_space<vmem>>, vector<1x128xf32>
    %4 = vector.broadcast %3 : vector<1x128xf32> to vector<128x128xf32>
    %5 = arith.mulf %1, %4 : vector<128x128xf32>
    %cst = arith.constant dense<0.000000e+00> : vector<128xf32>
    %6 = vector.multi_reduction <add>, %5, %cst [1] : vector<128x128xf32> to vector<128xf32>
    %7 = vector.shape_cast %6 : vector<128xf32> to vector<128x1xf32>
    %c0_5 = arith.constant 0 : index
    %c0_6 = arith.constant 0 : index
    %c0_7 = arith.constant 0 : index
    %8 = vector.load %arg2[%c0_5, %c0_6, %c0_7] : memref<3x128x128xbf16, #tpu.memory_space<vmem>>, vector<1x128x128xbf16>
    %9 = vector.shape_cast %8 : vector<1x128x128xbf16> to vector<128x128xbf16>
    %c0_8 = arith.constant 0 : index
    %c0_9 = arith.constant 0 : index
    %c0_10 = arith.constant 0 : index
    %10 = vector.load %arg1[%c0_8, %c0_9, %c0_10] : memref<3x128x128xbf16, #tpu.memory_space<vmem>>, vector<1x128x128xbf16>
    %11 = vector.shape_cast %10 : vector<1x128x128xbf16> to vector<128x128xbf16>
    %cst_11 = arith.constant dense<0.000000e+00> : vector<128x128xf32>
    %12 = tpu.matmul %9, %11, %cst_11 {dimension_numbers = #tpu.dot_dimension_numbers<[1], [0], [0], [1], [0, 0, 1, 1], [], []>} : vector<128x128xbf16>, vector<128x128xbf16>, vector<128x128xf32> -> vector<128x128xf32>
    %13 = vector.broadcast %2 : vector<1x128xf32> to vector<128x128xf32>
    %14 = arith.mulf %12, %13 : vector<128x128xf32>
    %cst_12 = arith.constant dense<0.000000e+00> : vector<128xf32>
    %15 = vector.multi_reduction <add>, %14, %cst_12 [1] : vector<128x128xf32> to vector<128xf32>
    %16 = vector.shape_cast %15 : vector<128xf32> to vector<128x1xf32>
    %17 = arith.addf %16, %7 : vector<128x1xf32>
    %cst_13 = arith.constant 0.000000e+00 : f32
    %18 = vector.broadcast %cst_13 : f32 to vector<128x1xf32>
    %19 = arith.cmpf oge, %17, %18 : vector<128x1xf32>
    %cst_14 = arith.constant 0.00999999977 : f32
    %20 = vector.broadcast %cst_14 : f32 to vector<128x1xf32>
    %21 = arith.mulf %20, %17 : vector<128x1xf32>
    %22 = arith.select %19, %17, %21 : vector<128x1xi1>, vector<128x1xf32>
    %c1 = arith.constant 1 : index
    %c0_15 = arith.constant 0 : index
    %c0_16 = arith.constant 0 : index
    %23 = vector.load %arg2[%c1, %c0_15, %c0_16] : memref<3x128x128xbf16, #tpu.memory_space<vmem>>, vector<1x128x128xbf16>
    %24 = vector.shape_cast %23 : vector<1x128x128xbf16> to vector<128x128xbf16>
    %c1_17 = arith.constant 1 : index
    %c0_18 = arith.constant 0 : index
    %c0_19 = arith.constant 0 : index
    %25 = vector.load %arg1[%c1_17, %c0_18, %c0_19] : memref<3x128x128xbf16, #tpu.memory_space<vmem>>, vector<1x128x128xbf16>
    %26 = vector.shape_cast %25 : vector<1x128x128xbf16> to vector<128x128xbf16>
    %cst_20 = arith.constant dense<0.000000e+00> : vector<128x128xf32>
    %27 = tpu.matmul %24, %26, %cst_20 {dimension_numbers = #tpu.dot_dimension_numbers<[1], [0], [0], [1], [0, 0, 1, 1], [], []>} : vector<128x128xbf16>, vector<128x128xbf16>, vector<128x128xf32> -> vector<128x128xf32>
    %28 = vector.broadcast %2 : vector<1x128xf32> to vector<128x128xf32>
    %29 = arith.mulf %27, %28 : vector<128x128xf32>
    %cst_21 = arith.constant dense<0.000000e+00> : vector<128xf32>
    %30 = vector.multi_reduction <add>, %29, %cst_21 [1] : vector<128x128xf32> to vector<128xf32>
    %31 = vector.shape_cast %30 : vector<128xf32> to vector<128x1xf32>
    %32 = arith.addf %31, %7 : vector<128x1xf32>
    %cst_22 = arith.constant 0.000000e+00 : f32
    %33 = vector.broadcast %cst_22 : f32 to vector<128x1xf32>
    %34 = arith.cmpf oge, %32, %33 : vector<128x1xf32>
    %cst_23 = arith.constant 0.00999999977 : f32
    %35 = vector.broadcast %cst_23 : f32 to vector<128x1xf32>
    %36 = arith.mulf %35, %32 : vector<128x1xf32>
    %37 = arith.select %34, %32, %36 : vector<128x1xi1>, vector<128x1xf32>
    %c2 = arith.constant 2 : index
    %c0_24 = arith.constant 0 : index
    %c0_25 = arith.constant 0 : index
    %38 = vector.load %arg2[%c2, %c0_24, %c0_25] : memref<3x128x128xbf16, #tpu.memory_space<vmem>>, vector<1x128x128xbf16>
    %39 = vector.shape_cast %38 : vector<1x128x128xbf16> to vector<128x128xbf16>
    %c2_26 = arith.constant 2 : index
    %c0_27 = arith.constant 0 : index
    %c0_28 = arith.constant 0 : index
    %40 = vector.load %arg1[%c2_26, %c0_27, %c0_28] : memref<3x128x128xbf16, #tpu.memory_space<vmem>>, vector<1x128x128xbf16>
    %41 = vector.shape_cast %40 : vector<1x128x128xbf16> to vector<128x128xbf16>
    %cst_29 = arith.constant dense<0.000000e+00> : vector<128x128xf32>
    %42 = tpu.matmul %39, %41, %cst_29 {dimension_numbers = #tpu.dot_dimension_numbers<[1], [0], [0], [1], [0, 0, 1, 1], [], []>} : vector<128x128xbf16>, vector<128x128xbf16>, vector<128x128xf32> -> vector<128x128xf32>
    %43 = vector.broadcast %2 : vector<1x128xf32> to vector<128x128xf32>
    %44 = arith.mulf %42, %43 : vector<128x128xf32>
    %cst_30 = arith.constant dense<0.000000e+00> : vector<128xf32>
    %45 = vector.multi_reduction <add>, %44, %cst_30 [1] : vector<128x128xf32> to vector<128xf32>
    %46 = vector.shape_cast %45 : vector<128xf32> to vector<128x1xf32>
    %47 = arith.addf %46, %7 : vector<128x1xf32>
    %cst_31 = arith.constant 0.000000e+00 : f32
    %48 = vector.broadcast %cst_31 : f32 to vector<128x1xf32>
    %49 = arith.cmpf oge, %47, %48 : vector<128x1xf32>
    %cst_32 = arith.constant 0.00999999977 : f32
    %50 = vector.broadcast %cst_32 : f32 to vector<128x1xf32>
    %51 = arith.mulf %50, %47 : vector<128x1xf32>
    %52 = arith.select %49, %47, %51 : vector<128x1xi1>, vector<128x1xf32>
    %53 = arith.maximumf %22, %37 : vector<128x1xf32>
    %54 = arith.maximumf %53, %52 : vector<128x1xf32>
    %55 = arith.subf %22, %54 : vector<128x1xf32>
    %56 = math.exp %55 : vector<128x1xf32>
    %57 = arith.subf %37, %54 : vector<128x1xf32>
    %58 = math.exp %57 : vector<128x1xf32>
    %59 = arith.subf %52, %54 : vector<128x1xf32>
    %60 = math.exp %59 : vector<128x1xf32>
    %61 = arith.addf %56, %58 : vector<128x1xf32>
    %62 = arith.addf %61, %60 : vector<128x1xf32>
    %63 = tpu.reciprocal %62 {approx = true} : vector<128x1xf32> -> vector<128x1xf32>
    %64 = vector.broadcast %56 : vector<128x1xf32> to vector<128x128xf32>
    %65 = arith.mulf %64, %12 : vector<128x128xf32>
    %66 = vector.broadcast %58 : vector<128x1xf32> to vector<128x128xf32>
    %67 = arith.mulf %66, %27 : vector<128x128xf32>
    %68 = arith.addf %65, %67 : vector<128x128xf32>
    %69 = vector.broadcast %60 : vector<128x1xf32> to vector<128x128xf32>
    %70 = arith.mulf %69, %42 : vector<128x128xf32>
    %71 = arith.addf %68, %70 : vector<128x128xf32>
    %72 = vector.broadcast %63 : vector<128x1xf32> to vector<128x128xf32>
    %73 = arith.mulf %71, %72 : vector<128x128xf32>
    %c0_33 = arith.constant 0 : index
    %c0_34 = arith.constant 0 : index
    %74 = vector.load %arg3[%c0_33, %c0_34] : memref<128x128xbf16, #tpu.memory_space<vmem>>, vector<128x128xbf16>
    %c0_35 = arith.constant 0 : index
    %c0_36 = arith.constant 0 : index
    %75 = vector.load %arg6[%c0_35, %c0_36] : memref<128x128xbf16, #tpu.memory_space<vmem>>, vector<128x128xbf16>
    %cst_37 = arith.constant dense<0.000000e+00> : vector<128x128xf32>
    %76 = tpu.matmul %74, %75, %cst_37 {dimension_numbers = #tpu.dot_dimension_numbers<[1], [0], [0], [1], [0, 0, 1, 1], [], []>} : vector<128x128xbf16>, vector<128x128xbf16>, vector<128x128xf32> -> vector<128x128xf32>
    %77 = arith.truncf %73 : vector<128x128xf32> to vector<128x128xbf16>
    %c0_38 = arith.constant 0 : index
    %c0_39 = arith.constant 0 : index
    %78 = vector.load %arg7[%c0_38, %c0_39] : memref<128x128xbf16, #tpu.memory_space<vmem>>, vector<128x128xbf16>
    %cst_40 = arith.constant dense<0.000000e+00> : vector<128x128xf32>
    %79 = tpu.matmul %77, %78, %cst_40 {dimension_numbers = #tpu.dot_dimension_numbers<[1], [0], [0], [1], [0, 0, 1, 1], [], []>} : vector<128x128xbf16>, vector<128x128xbf16>, vector<128x128xf32> -> vector<128x128xf32>
    %80 = arith.addf %76, %79 : vector<128x128xf32>
    %c0_41 = arith.constant 0 : index
    %c0_42 = arith.constant 0 : index
    %81 = vector.load %arg8[%c0_41, %c0_42] : memref<1x128xf32, #tpu.memory_space<vmem>>, vector<1x128xf32>
    %82 = vector.broadcast %81 : vector<1x128xf32> to vector<128x128xf32>
    %83 = arith.addf %80, %82 : vector<128x128xf32>
    %cst_43 = arith.constant 0.000000e+00 : f32
    %84 = vector.broadcast %cst_43 : f32 to vector<128x128xf32>
    %85 = arith.maximumf %83, %84 : vector<128x128xf32>
    %86 = arith.mulf %85, %85 : vector<128x128xf32>
    %cst_44 = arith.constant dense<0.000000e+00> : vector<128xf32>
    %87 = vector.multi_reduction <add>, %86, %cst_44 [1] : vector<128x128xf32> to vector<128xf32>
    %88 = vector.shape_cast %87 : vector<128xf32> to vector<128x1xf32>
    %cst_45 = arith.constant 1.000000e-24 : f32
    %89 = vector.broadcast %cst_45 : f32 to vector<128x1xf32>
    %90 = arith.maximumf %88, %89 : vector<128x1xf32>
    %91 = math.rsqrt %90 : vector<128x1xf32>
    %92 = vector.broadcast %91 : vector<128x1xf32> to vector<128x128xf32>
    %93 = arith.mulf %85, %92 : vector<128x128xf32>
    %c0_46 = arith.constant 0 : index
    %c0_47 = arith.constant 0 : index
    %94 = vector.load %arg9[%c0_46, %c0_47] : memref<128x128xf32, #tpu.memory_space<vmem>>, vector<128x128xf32>
    tpu.vector_store %arg9[%c0_46, %c0_47], %93 {strides = array<i32>} : memref<128x128xf32, #tpu.memory_space<vmem>>, vector<128x128xf32>,
    return
  }
  func.func @transform_0(%arg0: i32) -> (i32, i32, i32) {
    %c0_i32 = arith.constant 0 : i32
    %c0_i32_0 = arith.constant 0 : i32
    %c0_i32_1 = arith.constant 0 : i32
    %c0_i32_2 = arith.constant 0 : i32
    return %c0_i32, %c0_i32_0, %c0_i32_1 : i32, i32, i32
  }
  func.func @transform_1(%arg0: i32) -> (i32, i32, i32) {
    %c0_i32 = arith.constant 0 : i32
    %c0_i32_0 = arith.constant 0 : i32
    %c0_i32_1 = arith.constant 0 : i32
    return %c0_i32, %arg0, %c0_i32_0 : i32, i32, i32
  }
  func.func @transform_2(%arg0: i32) -> (i32, i32) {
    %c0_i32 = arith.constant 0 : i32
    %c0_i32_0 = arith.constant 0 : i32
    return %arg0, %c0_i32 : i32, i32
  }
  func.func @transform_3(%arg0: i32) -> (i32, i32) {
    %c0_i32 = arith.constant 0 : i32
    %c0_i32_0 = arith.constant 0 : i32
    %c0_i32_1 = arith.constant 0 : i32
    return %c0_i32, %c0_i32_0 : i32, i32
  }
  func.func @transform_4(%arg0: i32) -> (i32, i32) {
    %c0_i32 = arith.constant 0 : i32
    %c0_i32_0 = arith.constant 0 : i32
    %c0_i32_1 = arith.constant 0 : i32
    return %c0_i32, %c0_i32_0 : i32, i32
  }
  func.func @transform_5(%arg0: i32) -> (i32, i32) {
    %c0_i32 = arith.constant 0 : i32
    %c0_i32_0 = arith.constant 0 : i32
    %c0_i32_1 = arith.constant 0 : i32
    return %c0_i32, %c0_i32_0 : i32, i32
  }
  func.func @transform_6(%arg0: i32) -> (i32, i32) {
    %c0_i32 = arith.constant 0 : i32
    %c0_i32_0 = arith.constant 0 : i32
    %c0_i32_1 = arith.constant 0 : i32
    return %c0_i32, %c0_i32_0 : i32, i32
  }
  func.func @transform_7(%arg0: i32) -> (i32, i32) {
    %c0_i32 = arith.constant 0 : i32
    %c0_i32_0 = arith.constant 0 : i32
    %c0_i32_1 = arith.constant 0 : i32
    return %c0_i32, %c0_i32_0 : i32, i32
  }
  func.func @transform_8(%arg0: i32) -> (i32, i32) {
    %c0_i32 = arith.constant 0 : i32
    %c0_i32_0 = arith.constant 0 : i32
    return %arg0, %c0_i32 : i32, i32
  }
}

</mosaic_0001>

<llo_original>
// kernel: het_agg_forward.2
$region0: #{het_agg_forward.2}
  #allocation0 [shape = 'u32[]', space=smem, size = 0x4, offset = 0x4, fixed_abs, tag = 'smem constant byte address 0x4 - core index']
  #allocation1 [shape = 'u32[144,128]{1,0:T(1,128)}', space=vmem, size = 0x12000, scoped, tag = 'internal scratch']
  %s0 = inlined_call_operand.vmem [shape: bf16[3,128,128], index: 0, kind: input, shape index: {}]
  %s1 = inlined_call_operand.vmem [shape: bf16[3,128,128], index: 1, kind: input, shape index: {}]
  %s2 = inlined_call_operand.vmem [shape: f32[3,1,128], index: 2, kind: input, shape index: {}]
  %s3 = inlined_call_operand.vmem [shape: bf16[3,128,128], index: 3, kind: output, shape index: {}]
  %s4 = sld [smem:[#allocation0]]
  $region45: #{het_agg_forward.2} parent=0
    _
  %s6 = ssub.s32 1, %s4
  %s7 = scalar_select 0, %s6, %s4
  loop: start=0, step=1, limit=5
  $region2: #{het_agg_forward.2} parent=0 // loop_pre_header
    _
  $region3: #{het_agg_forward.2} parent=0 // loop_header
    %s9 = sphi 0, %s13
    %p10 = scmp.ge.s32.totalorder %s9, 5
    %s19 = sphi 0, %s21
    %s22 = sphi 0, %s19
    %s23 = sphi 0, %s22
    %s39 = sphi 0, %s23
    %s45 = sphi 0, %s47
    %s48 = sphi 0, %s45
    %s49 = sphi 0, %s48
    %s65 = sphi 0, %s49
    %s71 = sphi 0, %s73
    %s74 = sphi 0, %s71
    %s75 = sphi 0, %s74
    %s91 = sphi 0, %s75
    %s97 = sphi 0, %s99
    %s100 = sphi 0, %s97
    %s101 = sphi 0, %s100
    %s117 = sphi 0, %s101
  $region4: #{het_agg_forward.2} parent=0 // loop_header_branch
    %12 = sbr.rel (%p10) target = $region8
  $region5: #{het_agg_forward.2} parent=0 // loop_body
    %s14 = ssub.s32 %s9, 1
    %s15 = ssub.s32 %s9, 2
    %s16 = sadd.s32 %s9, 1
    %s17 = ssub.s32 %s9, %s16
    %p18 = scmp.eq.s32.totalorder %s17, 0
    %s20 = sadd.s32 %s19, 1
    %s21 = scalar_select %p18, %s19, %s20
    %p24 = pneg %p18
    %p25 = scmp.eq.s32.totalorder %s9, 2
    %p26 = por %p24, %p25
    %p27 = scmp.ne.s32.totalorder %s19, %s22
    %p28 = scmp.eq.s32.totalorder %s9, 0
    %p29 = por %p27, %p28
    %p30 = scmp.ne.s32.totalorder %s19, %s22
    %p31 = scmp.eq.s32.totalorder %s14, 2
    %p32 = por %p30, %p31
    %p33 = scmp.ne.s32.totalorder %s22, %s23
    %p34 = scmp.eq.s32.totalorder %s14, 0
    %p35 = por %p33, %p34
    %p36 = scmp.ne.s32.totalorder %s22, %s23
    %p37 = scmp.eq.s32.totalorder %s15, 2
    %p38 = por %p36, %p37
    %p40 = scmp.ne.s32.totalorder %s23, %s39
    %p41 = scmp.eq.s32.totalorder %s15, 0
    %p42 = por %p40, %p41
    %s43 = ssub.s32 %s9, %s16
    %p44 = scmp.eq.s32.totalorder %s43, 0
    %s46 = sadd.s32 %s45, 1
    %s47 = scalar_select %p44, %s45, %s46
    %p50 = pneg %p44
    %p51 = scmp.eq.s32.totalorder %s9, 2
    %p52 = por %p50, %p51
    %p53 = scmp.ne.s32.totalorder %s45, %s48
    %p54 = scmp.eq.s32.totalorder %s9, 0
    %p55 = por %p53, %p54
    %p56 = scmp.ne.s32.totalorder %s45, %s48
    %p57 = scmp.eq.s32.totalorder %s14, 2
    %p58 = por %p56, %p57
    %p59 = scmp.ne.s32.totalorder %s48, %s49
    %p60 = scmp.eq.s32.totalorder %s14, 0
    %p61 = por %p59, %p60
    %p62 = scmp.ne.s32.totalorder %s48, %s49
    %p63 = scmp.eq.s32.totalorder %s15, 2
    %p64 = por %p62, %p63
    %p66 = scmp.ne.s32.totalorder %s49, %s65
    %p67 = scmp.eq.s32.totalorder %s15, 0
    %p68 = por %p66, %p67
    %s69 = ssub.s32 %s9, %s16
    %p70 = scmp.eq.s32.totalorder %s69, 0
    %s72 = sadd.s32 %s71, 1
    %s73 = scalar_select %p70, %s71, %s72
    %p76 = pneg %p70
    %p77 = scmp.eq.s32.totalorder %s9, 2
    %p78 = por %p76, %p77
    %p79 = scmp.ne.s32.totalorder %s71, %s74
    %p80 = scmp.eq.s32.totalorder %s9, 0
    %p81 = por %p79, %p80
    %p82 = scmp.ne.s32.totalorder %s71, %s74
    %p83 = scmp.eq.s32.totalorder %s14, 2
    %p84 = por %p82, %p83
    %p85 = scmp.ne.s32.totalorder %s74, %s75
    %p86 = scmp.eq.s32.totalorder %s14, 0
    %p87 = por %p85, %p86
    %p88 = scmp.ne.s32.totalorder %s74, %s75
    %p89 = scmp.eq.s32.totalorder %s15, 2
    %p90 = por %p88, %p89
    %p92 = scmp.ne.s32.totalorder %s75, %s91
    %p93 = scmp.eq.s32.totalorder %s15, 0
    %p94 = por %p92, %p93
    %s95 = ssub.s32 %s9, %s16
    %p96 = scmp.eq.s32.totalorder %s95, 0
    %s98 = sadd.s32 %s97, 1
    %s99 = scalar_select %p96, %s97, %s98
    %p102 = pneg %p96
    %p103 = scmp.eq.s32.totalorder %s9, 2
    %p104 = por %p102, %p103
    %p105 = scmp.ne.s32.totalorder %s97, %s100
    %p106 = scmp.eq.s32.totalorder %s9, 0
    %p107 = por %p105, %p106
    %p108 = scmp.ne.s32.totalorder %s97, %s100
    %p109 = scmp.eq.s32.totalorder %s14, 2
    %p110 = por %p108, %p109
    %p111 = scmp.ne.s32.totalorder %s100, %s101
    %p112 = scmp.eq.s32.totalorder %s14, 0
    %p113 = por %p111, %p112
    %p114 = scmp.ne.s32.totalorder %s100, %s101
    %p115 = scmp.eq.s32.totalorder %s15, 2
    %p116 = por %p114, %p115
    %p118 = scmp.ne.s32.totalorder %s101, %s117
    %p119 = scmp.eq.s32.totalorder %s15, 0
    %p120 = por %p118, %p119
    %p121 = scmp.le.s32.totalorder 1, %s9
    %p122 = scmp.lt.s32.totalorder %s9, 4
    %p123 = pnand %p121, %p122
    %p124 = pneg %p123
    // Predicated region
    $region9: #{het_agg_forward.2} parent=5 // pred_check
      _
    $region10: #{het_agg_forward.2} parent=5 // pred_check_branch
      %126 = sbr.rel (%p123) target = $region12
    $region11: #{het_agg_forward.2} parent=5 // pred_region
      %s127 = ssub.s32 %s9, 1
    $region12: #{het_agg_forward.2} parent=5 // pred_fallthru
      _
    %p128 = scmp.lt.s32.totalorder %s9, 3
    // Predicated region
    $region13: #{het_agg_forward.2} parent=5 // pred_check
      %p129 = pneg %p128
    $region14: #{het_agg_forward.2} parent=5 // pred_check_branch
      %131 = sbr.rel (%p129) target = $region16
    $region15: #{het_agg_forward.2} parent=5 // pred_region
      // Predicated region
      $region17: #{het_agg_forward.2} parent=15 // pred_check
        %p132 = pneg %p29
      $region18: #{het_agg_forward.2} parent=15 // pred_check_branch
        %134 = sbr.rel (%p132) target = $region20
      $region19: #{het_agg_forward.2} parent=15 // pred_region
        %p135 = scmp.lt.s32.totalorder %s9, 2
        %s136 = scalar_select %p135, %s9, 2
        %s137 = smul.addr %s136, 16
        %s138 = smul.addr %s137, 4
        %s139 = scalar_lea.vmem %s0, %s138
      $region20: #{het_agg_forward.2} parent=15 // pred_fallthru
        _
      // Predicated region
      $region21: #{het_agg_forward.2} parent=15 // pred_check
        %p140 = pneg %p55
      $region22: #{het_agg_forward.2} parent=15 // pred_check_branch
        %142 = sbr.rel (%p140) target = $region24
      $region23: #{het_agg_forward.2} parent=15 // pred_region
        %p143 = scmp.lt.s32.totalorder %s9, 2
        %s144 = scalar_select %p143, %s9, 2
        %s145 = smul.addr %s144, 16
        %s146 = smul.addr %s145, 4
        %s147 = scalar_lea.vmem %s1, %s146
      $region24: #{het_agg_forward.2} parent=15 // pred_fallthru
        _
      // Predicated region
      $region25: #{het_agg_forward.2} parent=15 // pred_check
        %p148 = pneg %p81
      $region26: #{het_agg_forward.2} parent=15 // pred_check_branch
        %150 = sbr.rel (%p148) target = $region28
      $region27: #{het_agg_forward.2} parent=15 // pred_region
        %p151 = scmp.lt.s32.totalorder %s9, 2
        %s152 = scalar_select %p151, %s9, 2
        %s153 = scalar_lea.vmem %s2, %s152
      $region28: #{het_agg_forward.2} parent=15 // pred_fallthru
        _
    $region16: #{het_agg_forward.2} parent=5 // pred_fallthru
      _
    %p154 = scmp.le.s32.totalorder 1, %s9
    %p155 = scmp.lt.s32.totalorder %s9, 4
    %p156 = pnand %p154, %p155
    %p157 = pneg %p156
    // Predicated region
    $region29: #{het_agg_forward.2} parent=5 // pred_check
      _
    $region30: #{het_agg_forward.2} parent=5 // pred_check_branch
      %159 = sbr.rel (%p156) target = $region32
    $region31: #{het_agg_forward.2} parent=5 // pred_region
      %s160 = ssub.s32 %s9, 1
      %p161 = scmp.lt.s32.totalorder %s14, 2
      %s162 = scalar_select %p161, %s14, 2
      %s163 = smul.addr %s162, 16
      %s164 = smul.addr %s163, 4
      %s165 = scalar_lea.vmem %s0, %s164
      %p166 = pneg %p35
      %p167 = pneg %p32
      %p168 = scmp.lt.s32.totalorder %s14, 2
      %s169 = scalar_select %p168, %s14, 2
      %s170 = smul.addr %s169, 16
      %s171 = smul.addr %s170, 4
      %s172 = scalar_lea.vmem %s1, %s171
      %p173 = pneg %p61
      %p174 = pneg %p58
      %p175 = scmp.lt.s32.totalorder %s14, 2
      %s176 = scalar_select %p175, %s14, 2
      %s177 = scalar_lea.vmem %s2, %s176
      %p178 = pneg %p87
      %p179 = pneg %p84
      %p180 = pneg %p113
      %p181 = pneg %p110
      %p182 = scmp.lt.s32.totalorder %s14, 2
      %s183 = scalar_select %p182, %s14, 2
      %s184 = smul.addr %s183, 16
      %s185 = smul.addr %s184, 4
      %s186 = scalar_lea.vmem %s3, %s185
      %p187 = scmp.lt.s32.totalorder %s14, 2
      %s188 = scalar_select %p187, %s14, 2
      %s189 = smul.addr %s188, 16
      %s190 = smul.addr %s189, 4
      %s191 = scalar_lea.vmem %s0, %s190
      %p192 = scmp.lt.s32.totalorder %s14, 2
      %s193 = scalar_select %p192, %s14, 2
      %s194 = smul.addr %s193, 16
      %s195 = smul.addr %s194, 4
      %s196 = scalar_lea.vmem %s1, %s195
      %p197 = scmp.lt.s32.totalorder %s14, 2
      %s198 = scalar_select %p197, %s14, 2
      %s199 = scalar_lea.vmem %s2, %s198
      %p200 = scmp.lt.s32.totalorder %s14, 2
      %s201 = scalar_select %p200, %s14, 2
      %s202 = smul.addr %s201, 16
      %s203 = smul.addr %s202, 4
      %s204 = scalar_lea.vmem %s3, %s203
      %v206 = vld [vmem:[%s191] sm:$0xf]
      %v207 = vld [vmem:[%s191 + $0x4] sm:$0xf]
      %v208 = vld [vmem:[%s191 + $0x8] sm:$0xf]
      %v209 = vld [vmem:[%s191 + $0xc] sm:$0xf]
      %v210 = vld [vmem:[%s191 + $0x10] sm:$0xf]
      %v211 = vld [vmem:[%s191 + $0x14] sm:$0xf]
      %v212 = vld [vmem:[%s191 + $0x18] sm:$0xf]
      %v213 = vld [vmem:[%s191 + $0x1c] sm:$0xf]
      %v214 = vld [vmem:[%s191 + $0x20] sm:$0xf]
      %v215 = vld [vmem:[%s191 + $0x24] sm:$0xf]
      %v216 = vld [vmem:[%s191 + $0x28] sm:$0xf]
      %v217 = vld [vmem:[%s191 + $0x2c] sm:$0xf]
      %v218 = vld [vmem:[%s191 + $0x30] sm:$0xf]
      %v219 = vld [vmem:[%s191 + $0x34] sm:$0xf]
      %v220 = vld [vmem:[%s191 + $0x38] sm:$0xf]
      %v221 = vld [vmem:[%s191 + $0x3c] sm:$0xf]
      %v222 = vld [vmem:[%s196] sm:$0xf]
      %v223 = vld [vmem:[%s196 + $0x4] sm:$0xf]
      %v224 = vld [vmem:[%s196 + $0x8] sm:$0xf]
      %v225 = vld [vmem:[%s196 + $0xc] sm:$0xf]
      %v226 = vld [vmem:[%s196 + $0x10] sm:$0xf]
      %v227 = vld [vmem:[%s196 + $0x14] sm:$0xf]
      %v228 = vld [vmem:[%s196 + $0x18] sm:$0xf]
      %v229 = vld [vmem:[%s196 + $0x1c] sm:$0xf]
      %v230 = vld [vmem:[%s196 + $0x20] sm:$0xf]
      %v231 = vld [vmem:[%s196 + $0x24] sm:$0xf]
      %v232 = vld [vmem:[%s196 + $0x28] sm:$0xf]
      %v233 = vld [vmem:[%s196 + $0x2c] sm:$0xf]
      %v234 = vld [vmem:[%s196 + $0x30] sm:$0xf]
      %v235 = vld [vmem:[%s196 + $0x34] sm:$0xf]
      %v236 = vld [vmem:[%s196 + $0x38] sm:$0xf]
      %v237 = vld [vmem:[%s196 + $0x3c] sm:$0xf]
      %v238 = vld [vmem:[%s199] sm:$0x1]
      %v240 = vlaneseq
      %v241 = vshrl.u32 %v240, 7
      %v242 = vsub.s32 0, %v241
      %v243 = vrot.slane %v238, %v242
      %v261 = vunpack.c.l.b16 %v206
      %v262 = vunpack.c.l.b16 %v207
      %v263 = vunpack.c.l.b16 %v208
      %v264 = vunpack.c.l.b16 %v209
      %v265 = vunpack.c.l.b16 %v210
      %v266 = vunpack.c.l.b16 %v211
      %v267 = vunpack.c.l.b16 %v212
      %v268 = vunpack.c.l.b16 %v213
      %v269 = vunpack.c.l.b16 %v214
      %v270 = vunpack.c.l.b16 %v215
      %v271 = vunpack.c.l.b16 %v216
      %v272 = vunpack.c.l.b16 %v217
      %v273 = vunpack.c.l.b16 %v218
      %v274 = vunpack.c.l.b16 %v219
      %v275 = vunpack.c.l.b16 %v220
      %v276 = vunpack.c.l.b16 %v221
      %v277 = vpack.c.b16 %v262, %v261
      %v278 = vpack.c.b16 %v264, %v263
      %v279 = vpack.c.b16 %v266, %v265
      %v280 = vpack.c.b16 %v268, %v267
      %v281 = vpack.c.b16 %v270, %v269
      %v282 = vpack.c.b16 %v272, %v271
      %v283 = vpack.c.b16 %v274, %v273
      %v284 = vpack.c.b16 %v276, %v275
      %v309 = vunpack.c.l.b16 %v222
      %v310 = vunpack.c.l.b16 %v223
      %v311 = vunpack.c.l.b16 %v224
      %v312 = vunpack.c.l.b16 %v225
      %v313 = vunpack.c.l.b16 %v226
      %v314 = vunpack.c.l.b16 %v227
      %v315 = vunpack.c.l.b16 %v228
      %v316 = vunpack.c.l.b16 %v229
      %v317 = vunpack.c.l.b16 %v230
      %v318 = vunpack.c.l.b16 %v231
      %v319 = vunpack.c.l.b16 %v232
      %v320 = vunpack.c.l.b16 %v233
      %v321 = vunpack.c.l.b16 %v234
      %v322 = vunpack.c.l.b16 %v235
      %v323 = vunpack.c.l.b16 %v236
      %v324 = vunpack.c.l.b16 %v237
      %v325 = vpack.c.b16 %v310, %v309
      %v326 = vpack.c.b16 %v312, %v311
      %v327 = vpack.c.b16 %v314, %v313
      %v328 = vpack.c.b16 %v316, %v315
      %v329 = vpack.c.b16 %v318, %v317
      %v330 = vpack.c.b16 %v320, %v319
      %v331 = vpack.c.b16 %v322, %v321
      %v332 = vpack.c.b16 %v324, %v323
      %341 = vmatprep.subr.bf16.mxu0 0
      %342 = vmatpush1.bf16.msra.mxu0 %v325
      %343 = vmatprep.subr.bf16.mxu0 0
      %344 = vmatpush1.bf16.msra.mxu0 %v326
      %345 = vmatprep.subr.bf16.mxu0 0
      %346 = vmatpush1.bf16.msra.mxu0 %v327
      %347 = vmatprep.subr.bf16.mxu0 0
      %348 = vmatpush1.bf16.msra.mxu0 %v328
      %349 = vmatprep.subr.bf16.mxu0 0
      %350 = vmatpush1.bf16.msra.mxu0 %v329
      %351 = vmatprep.subr.bf16.mxu0 0
      %352 = vmatpush1.bf16.msra.mxu0 %v330
      %353 = vmatprep.subr.bf16.mxu0 0
      %354 = vmatpush1.bf16.msra.mxu0 %v331
      %355 = vmatprep.subr.bf16.mxu0 0
      %356 = vmatpush1.bf16.msra.mxu0 %v332
      %357 = vmatprep.subr.bf16.mxu0 0
      %358 = vmatpush1.bf16.msra.mxu0 0
      %359 = vmatprep.subr.bf16.mxu0 0
      %360 = vmatpush1.bf16.msra.mxu0 0
      %361 = vmatprep.subr.bf16.mxu0 0
      %362 = vmatpush1.bf16.msra.mxu0 0
      %363 = vmatprep.subr.bf16.mxu0 0
      %364 = vmatpush1.bf16.msra.mxu0 0
      %365 = vmatprep.subr.bf16.mxu0 0
      %366 = vmatpush1.bf16.msra.mxu0 0
      %367 = vmatprep.subr.bf16.mxu0 0
      %368 = vmatpush1.bf16.msra.mxu0 0
      %369 = vmatprep.subr.bf16.mxu0 0
      %370 = vmatpush1.bf16.msra.mxu0 0
      %371 = vmatprep.subr.bf16.mxu0 0
      %372 = vmatpush1.bf16.msra.mxu0 0
      %373 = vmatprep.mubr.bf16.mxu0 0
      %374 = vmatmul.mubr.bf16.gmra.mrb[0].mxu0 %v277
      %v375 = vpop.f32.mrb[0].mxu0
      %v376 = vadd.f32 %v243, %v375
      %v377 = vpop.f32.mrb[0].mxu0
      %v378 = vpop.f32.mrb[0].mxu0
      %v379 = vadd.f32 %v243, %v378
      %v380 = vpop.f32.mrb[0].mxu0
      %381 = vmatprep.mubr.bf16.mxu0 0
      %382 = vmatmul.mubr.bf16.gmra.mrb[0].mxu0 %v278
      %v383 = vpop.f32.mrb[0].mxu0
      %v384 = vadd.f32 %v243, %v383
      %v385 = vpop.f32.mrb[0].mxu0
      %v386 = vpop.f32.mrb[0].mxu0
      %v387 = vadd.f32 %v243, %v386
      %v388 = vpop.f32.mrb[0].mxu0
      %389 = vmatprep.mubr.bf16.mxu0 0
      %390 = vmatmul.mubr.bf16.gmra.mrb[0].mxu0 %v279
      %v391 = vpop.f32.mrb[0].mxu0
      %v392 = vadd.f32 %v243, %v391
      %v393 = vpop.f32.mrb[0].mxu0
      %v394 = vpop.f32.mrb[0].mxu0
      %v395 = vadd.f32 %v243, %v394
      %v396 = vpop.f32.mrb[0].mxu0
      %397 = vmatprep.mubr.bf16.mxu0 0
      %398 = vmatmul.mubr.bf16.gmra.mrb[0].mxu0 %v280
      %v399 = vpop.f32.mrb[0].mxu0
      %v400 = vadd.f32 %v243, %v399
      %v401 = vpop.f32.mrb[0].mxu0
      %v402 = vpop.f32.mrb[0].mxu0
      %v403 = vadd.f32 %v243, %v402
      %v404 = vpop.f32.mrb[0].mxu0
      %405 = vmatprep.mubr.bf16.mxu0 0
      %406 = vmatmul.mubr.bf16.gmra.mrb[0].mxu0 %v281
      %v407 = vpop.f32.mrb[0].mxu0
      %v408 = vadd.f32 %v243, %v407
      %v409 = vpop.f32.mrb[0].mxu0
      %v410 = vpop.f32.mrb[0].mxu0
      %v411 = vadd.f32 %v243, %v410
      %v412 = vpop.f32.mrb[0].mxu0
      %413 = vmatprep.mubr.bf16.mxu0 0
      %414 = vmatmul.mubr.bf16.gmra.mrb[0].mxu0 %v282
      %v415 = vpop.f32.mrb[0].mxu0
      %v416 = vadd.f32 %v243, %v415
      %v417 = vpop.f32.mrb[0].mxu0
      %v418 = vpop.f32.mrb[0].mxu0
      %v419 = vadd.f32 %v243, %v418
      %v420 = vpop.f32.mrb[0].mxu0
      %421 = vmatprep.mubr.bf16.mxu0 0
      %422 = vmatmul.mubr.bf16.gmra.mrb[0].mxu0 %v283
      %v423 = vpop.f32.mrb[0].mxu0
      %v424 = vadd.f32 %v243, %v423
      %v425 = vpop.f32.mrb[0].mxu0
      %v426 = vpop.f32.mrb[0].mxu0
      %v427 = vadd.f32 %v243, %v426
      %v428 = vpop.f32.mrb[0].mxu0
      %429 = vmatprep.mubr.bf16.mxu0 0
      %430 = vmatmul.mubr.bf16.gmra.mrb[0].mxu0 %v284
      %v431 = vpop.f32.mrb[0].mxu0
      %v432 = vadd.f32 %v243, %v431
      %v433 = vpop.f32.mrb[0].mxu0
      %v434 = vpop.f32.mrb[0].mxu0
      %v435 = vadd.f32 %v243, %v434
      %v436 = vpop.f32.mrb[0].mxu0
      %437 = vdwg.mxu0
      %v438 = vmax.f32 %v376, 0.0
      %v439 = vmax.f32 %v379, 0.0
      %v440 = vmax.f32 %v384, 0.0
      %v441 = vmax.f32 %v387, 0.0
      %v442 = vmax.f32 %v392, 0.0
      %v443 = vmax.f32 %v395, 0.0
      %v444 = vmax.f32 %v400, 0.0
      %v445 = vmax.f32 %v403, 0.0
      %v446 = vmax.f32 %v408, 0.0
      %v447 = vmax.f32 %v411, 0.0
      %v448 = vmax.f32 %v416, 0.0
      %v449 = vmax.f32 %v419, 0.0
      %v450 = vmax.f32 %v424, 0.0
      %v451 = vmax.f32 %v427, 0.0
      %v452 = vmax.f32 %v432, 0.0
      %v453 = vmax.f32 %v435, 0.0
      %v454 = vpack.c.bf16 %v439, %v438
      %v455 = vpack.c.bf16 %v441, %v440
      %v456 = vpack.c.bf16 %v443, %v442
      %v457 = vpack.c.bf16 %v445, %v444
      %v458 = vpack.c.bf16 %v447, %v446
      %v459 = vpack.c.bf16 %v449, %v448
      %v460 = vpack.c.bf16 %v451, %v450
      %v461 = vpack.c.bf16 %v453, %v452
      %v470 = vunpack.c.l.b16 %v454
      %v471 = vunpack.c.h.b16 %v454
      %v472 = vunpack.c.l.b16 %v455
      %v473 = vunpack.c.h.b16 %v455
      %v474 = vunpack.c.l.b16 %v456
      %v475 = vunpack.c.h.b16 %v456
      %v476 = vunpack.c.l.b16 %v457
      %v477 = vunpack.c.h.b16 %v457
      %v478 = vunpack.c.l.b16 %v458
      %v479 = vunpack.c.h.b16 %v458
      %v480 = vunpack.c.l.b16 %v459
      %v481 = vunpack.c.h.b16 %v459
      %v482 = vunpack.c.l.b16 %v460
      %v483 = vunpack.c.h.b16 %v460
      %v484 = vunpack.c.l.b16 %v461
      %v485 = vunpack.c.h.b16 %v461
      %v486 = vpack.c.b16 %v470, %v470
      %v487 = vpack.c.b16 %v471, %v471
      %v488 = vpack.c.b16 %v472, %v472
      %v489 = vpack.c.b16 %v473, %v473
      %v490 = vpack.c.b16 %v474, %v474
      %v491 = vpack.c.b16 %v475, %v475
      %v492 = vpack.c.b16 %v476, %v476
      %v493 = vpack.c.b16 %v477, %v477
      %v494 = vpack.c.b16 %v478, %v478
      %v495 = vpack.c.b16 %v479, %v479
      %v496 = vpack.c.b16 %v480, %v480
      %v497 = vpack.c.b16 %v481, %v481
      %v498 = vpack.c.b16 %v482, %v482
      %v499 = vpack.c.b16 %v483, %v483
      %v500 = vpack.c.b16 %v484, %v484
      %v501 = vpack.c.b16 %v485, %v485
      %518 = vst [vmem:[%s204] sm:$0xf] %v486
      %519 = vst [vmem:[%s204 + $0x4] sm:$0xf] %v487
      %520 = vst [vmem:[%s204 + $0x8] sm:$0xf] %v488
      %521 = vst [vmem:[%s204 + $0xc] sm:$0xf] %v489
      %522 = vst [vmem:[%s204 + $0x10] sm:$0xf] %v490
      %523 = vst [vmem:[%s204 + $0x14] sm:$0xf] %v491
      %524 = vst [vmem:[%s204 + $0x18] sm:$0xf] %v492
      %525 = vst [vmem:[%s204 + $0x1c] sm:$0xf] %v493
      %526 = vst [vmem:[%s204 + $0x20] sm:$0xf] %v494
      %527 = vst [vmem:[%s204 + $0x24] sm:$0xf] %v495
      %528 = vst [vmem:[%s204 + $0x28] sm:$0xf] %v496
      %529 = vst [vmem:[%s204 + $0x2c] sm:$0xf] %v497
      %530 = vst [vmem:[%s204 + $0x30] sm:$0xf] %v498
      %531 = vst [vmem:[%s204 + $0x34] sm:$0xf] %v499
      %532 = vst [vmem:[%s204 + $0x38] sm:$0xf] %v500
      %533 = vst [vmem:[%s204 + $0x3c] sm:$0xf] %v501
      %p534 = scmp.lt.s32.totalorder %s14, 2
      %s535 = scalar_select %p534, %s14, 2
      %s536 = smul.addr %s535, 16
      %s537 = smul.addr %s536, 4
      %s538 = scalar_lea.vmem %s3, %s537
      // Predicated region
      $region33: #{het_agg_forward.2} parent=31 // pred_check
        %p539 = pneg %p110
      $region34: #{het_agg_forward.2} parent=31 // pred_check_branch
        %541 = sbr.rel (%p539) target = $region36
      $region35: #{het_agg_forward.2} parent=31 // pred_region
        _
      $region36: #{het_agg_forward.2} parent=31 // pred_fallthru
        _
    $region32: #{het_agg_forward.2} parent=5 // pred_fallthru
      _
    %p542 = scmp.le.s32.totalorder 2, %s9
    // Predicated region
    $region37: #{het_agg_forward.2} parent=5 // pred_check
      %p543 = pneg %p542
    $region38: #{het_agg_forward.2} parent=5 // pred_check_branch
      %545 = sbr.rel (%p543) target = $region40
    $region39: #{het_agg_forward.2} parent=5 // pred_region
      %s546 = ssub.s32 %s9, 2
      // Predicated region
      $region41: #{het_agg_forward.2} parent=39 // pred_check
        %p547 = pneg %p116
      $region42: #{het_agg_forward.2} parent=39 // pred_check_branch
        %549 = sbr.rel (%p547) target = $region44
      $region43: #{het_agg_forward.2} parent=39 // pred_region
        %p550 = scmp.lt.s32.totalorder %s15, 2
        %s551 = scalar_select %p550, %s15, 2
        %s552 = smul.addr %s551, 16
        %s553 = smul.addr %s552, 4
        %s554 = scalar_lea.vmem %s3, %s553
      $region44: #{het_agg_forward.2} parent=39 // pred_fallthru
        _
    $region40: #{het_agg_forward.2} parent=5 // pred_fallthru
      _
  $region6: #{het_agg_forward.2} parent=0 // loop_footer
    %s13 = sadd.s32 1, %s9
  $region7: #{het_agg_forward.2} parent=0 // loop_footer_branch
    %8 = sbr.rel target = $region3
  $region8: #{het_agg_forward.2} parent=0 // loop_exit
    _

// kernel: het_agg_forward.3
$region0: #{het_agg_forward.3}
  #allocation0 [shape = 'u32[]', space=smem, size = 0x4, offset = 0x4, fixed_abs, tag = 'smem constant byte address 0x4 - core index']
  #allocation1 [shape = 'u32[144,128]{1,0:T(1,128)}', space=vmem, size = 0x12000, scoped, tag = 'internal scratch']
  %s0 = inlined_call_operand.vmem [shape: bf16[3,128,128], index: 0, kind: input, shape index: {}]
  %s1 = inlined_call_operand.vmem [shape: bf16[3,128,128], index: 1, kind: input, shape index: {}]
  %s2 = inlined_call_operand.vmem [shape: bf16[128,128], index: 2, kind: input, shape index: {}]
  %s3 = inlined_call_operand.vmem [shape: f32[1,128], index: 3, kind: input, shape index: {}]
  %s4 = inlined_call_operand.vmem [shape: f32[1,128], index: 4, kind: input, shape index: {}]
  %s5 = inlined_call_operand.vmem [shape: bf16[128,128], index: 5, kind: input, shape index: {}]
  %s6 = inlined_call_operand.vmem [shape: bf16[128,128], index: 6, kind: input, shape index: {}]
  %s7 = inlined_call_operand.vmem [shape: f32[1,128], index: 7, kind: input, shape index: {}]
  %s8 = inlined_call_operand.vmem [shape: f32[128,128], index: 8, kind: output, shape index: {}]
  %s9 = sld [smem:[#allocation0]]
  $region42: #{het_agg_forward.3} parent=0
    _
  %s11 = ssub.s32 1, %s9
  %s12 = scalar_select 0, %s11, %s9
  // Predicated region
  $region2: #{het_agg_forward.3} parent=0 // pred_check
    _
  $region3: #{het_agg_forward.3} parent=0 // pred_check_branch
    %14 = sbr.rel (0) target = $region5
  $region4: #{het_agg_forward.3} parent=0 // pred_region
    _
  $region5: #{het_agg_forward.3} parent=0 // pred_fallthru
    _
  // Predicated region
  $region6: #{het_agg_forward.3} parent=0 // pred_check
    _
  $region7: #{het_agg_forward.3} parent=0 // pred_check_branch
    %16 = sbr.rel (0) target = $region9
  $region8: #{het_agg_forward.3} parent=0 // pred_region
    _
  $region9: #{het_agg_forward.3} parent=0 // pred_fallthru
    _
  // Predicated region
  $region10: #{het_agg_forward.3} parent=0 // pred_check
    _
  $region11: #{het_agg_forward.3} parent=0 // pred_check_branch
    %18 = sbr.rel (0) target = $region13
  $region12: #{het_agg_forward.3} parent=0 // pred_region
    _
  $region13: #{het_agg_forward.3} parent=0 // pred_fallthru
    _
  // Predicated region
  $region14: #{het_agg_forward.3} parent=0 // pred_check
    _
  $region15: #{het_agg_forward.3} parent=0 // pred_check_branch
    %20 = sbr.rel (0) target = $region17
  $region16: #{het_agg_forward.3} parent=0 // pred_region
    _
  $region17: #{het_agg_forward.3} parent=0 // pred_fallthru
    _
  // Predicated region
  $region18: #{het_agg_forward.3} parent=0 // pred_check
    _
  $region19: #{het_agg_forward.3} parent=0 // pred_check_branch
    %22 = sbr.rel (0) target = $region21
  $region20: #{het_agg_forward.3} parent=0 // pred_region
    _
  $region21: #{het_agg_forward.3} parent=0 // pred_fallthru
    _
  // Predicated region
  $region22: #{het_agg_forward.3} parent=0 // pred_check
    _
  $region23: #{het_agg_forward.3} parent=0 // pred_check_branch
    %24 = sbr.rel (0) target = $region25
  $region24: #{het_agg_forward.3} parent=0 // pred_region
    _
  $region25: #{het_agg_forward.3} parent=0 // pred_fallthru
    _
  // Predicated region
  $region26: #{het_agg_forward.3} parent=0 // pred_check
    _
  $region27: #{het_agg_forward.3} parent=0 // pred_check_branch
    %26 = sbr.rel (0) target = $region29
  $region28: #{het_agg_forward.3} parent=0 // pred_region
    _
  $region29: #{het_agg_forward.3} parent=0 // pred_fallthru
    _
  // Predicated region
  $region30: #{het_agg_forward.3} parent=0 // pred_check
    _
  $region31: #{het_agg_forward.3} parent=0 // pred_check_branch
    %28 = sbr.rel (0) target = $region33
  $region32: #{het_agg_forward.3} parent=0 // pred_region
    _
  $region33: #{het_agg_forward.3} parent=0 // pred_fallthru
    _
  %v30 = vld [vmem:[%s2] sm:$0xf]
  %v31 = vld [vmem:[%s2 + $0x4] sm:$0xf]
  %v32 = vld [vmem:[%s2 + $0x8] sm:$0xf]
  %v33 = vld [vmem:[%s2 + $0xc] sm:$0xf]
  %v34 = vld [vmem:[%s2 + $0x10] sm:$0xf]
  %v35 = vld [vmem:[%s2 + $0x14] sm:$0xf]
  %v36 = vld [vmem:[%s2 + $0x18] sm:$0xf]
  %v37 = vld [vmem:[%s2 + $0x1c] sm:$0xf]
  %v38 = vld [vmem:[%s2 + $0x20] sm:$0xf]
  %v39 = vld [vmem:[%s2 + $0x24] sm:$0xf]
  %v40 = vld [vmem:[%s2 + $0x28] sm:$0xf]
  %v41 = vld [vmem:[%s2 + $0x2c] sm:$0xf]
  %v42 = vld [vmem:[%s2 + $0x30] sm:$0xf]
  %v43 = vld [vmem:[%s2 + $0x34] sm:$0xf]
  %v44 = vld [vmem:[%s2 + $0x38] sm:$0xf]
  %v45 = vld [vmem:[%s2 + $0x3c] sm:$0xf]
  %v46 = vunpack.c.l.bf16 %v30
  %v47 = vunpack.c.l.bf16 %v31
  %v48 = vunpack.c.l.bf16 %v32
  %v49 = vunpack.c.l.bf16 %v33
  %v50 = vunpack.c.l.bf16 %v34
  %v51 = vunpack.c.l.bf16 %v35
  %v52 = vunpack.c.l.bf16 %v36
  %v53 = vunpack.c.l.bf16 %v37
  %v54 = vunpack.c.l.bf16 %v38
  %v55 = vunpack.c.l.bf16 %v39
  %v56 = vunpack.c.l.bf16 %v40
  %v57 = vunpack.c.l.bf16 %v41
  %v58 = vunpack.c.l.bf16 %v42
  %v59 = vunpack.c.l.bf16 %v43
  %v60 = vunpack.c.l.bf16 %v44
  %v61 = vunpack.c.l.bf16 %v45
  %v62 = vld [vmem:[%s3] sm:$0x1]
  %v63 = vld [vmem:[%s4] sm:$0x1]
  %v65 = vlaneseq
  %v66 = vshrl.u32 %v65, 7
  %v67 = vsub.s32 0, %v66
  %v68 = vrot.slane %v63, %v67
  %v70 = vmul.f32 %v46, %v68
  %v71 = vmul.f32 %v47, %v68
  %v72 = vmul.f32 %v48, %v68
  %v73 = vmul.f32 %v49, %v68
  %v74 = vmul.f32 %v50, %v68
  %v75 = vmul.f32 %v51, %v68
  %v76 = vmul.f32 %v52, %v68
  %v77 = vmul.f32 %v53, %v68
  %v78 = vmul.f32 %v54, %v68
  %v79 = vmul.f32 %v55, %v68
  %v80 = vmul.f32 %v56, %v68
  %v81 = vmul.f32 %v57, %v68
  %v82 = vmul.f32 %v58, %v68
  %v83 = vmul.f32 %v59, %v68
  %v84 = vmul.f32 %v60, %v68
  %v85 = vmul.f32 %v61, %v68
  %86 = vadd.xlane.f32.xlu0 %v70
  %v87 = vpop.xlane.xlu0 %86
  %88 = vadd.xlane.f32.xlu0 %v71
  %v89 = vpop.xlane.xlu0 %88
  %90 = vadd.xlane.f32.xlu0 %v72
  %v91 = vpop.xlane.xlu0 %90
  %92 = vadd.xlane.f32.xlu0 %v73
  %v93 = vpop.xlane.xlu0 %92
  %94 = vadd.xlane.f32.xlu0 %v74
  %v95 = vpop.xlane.xlu0 %94
  %96 = vadd.xlane.f32.xlu0 %v75
  %v97 = vpop.xlane.xlu0 %96
  %98 = vadd.xlane.f32.xlu0 %v76
  %v99 = vpop.xlane.xlu0 %98
  %100 = vadd.xlane.f32.xlu0 %v77
  %v101 = vpop.xlane.xlu0 %100
  %102 = vadd.xlane.f32.xlu0 %v78
  %v103 = vpop.xlane.xlu0 %102
  %104 = vadd.xlane.f32.xlu0 %v79
  %v105 = vpop.xlane.xlu0 %104
  %106 = vadd.xlane.f32.xlu0 %v80
  %v107 = vpop.xlane.xlu0 %106
  %108 = vadd.xlane.f32.xlu0 %v81
  %v109 = vpop.xlane.xlu0 %108
  %110 = vadd.xlane.f32.xlu0 %v82
  %v111 = vpop.xlane.xlu0 %110
  %112 = vadd.xlane.f32.xlu0 %v83
  %v113 = vpop.xlane.xlu0 %112
  %114 = vadd.xlane.f32.xlu0 %v84
  %v115 = vpop.xlane.xlu0 %114
  %116 = vadd.xlane.f32.xlu0 %v85
  %v117 = vpop.xlane.xlu0 %116
  %v118 = vld [vmem:[%s1] sm:$0xf]
  %v119 = vld [vmem:[%s1 + $0x4] sm:$0xf]
  %v120 = vld [vmem:[%s1 + $0x8] sm:$0xf]
  %v121 = vld [vmem:[%s1 + $0xc] sm:$0xf]
  %v122 = vld [vmem:[%s1 + $0x10] sm:$0xf]
  %v123 = vld [vmem:[%s1 + $0x14] sm:$0xf]
  %v124 = vld [vmem:[%s1 + $0x18] sm:$0xf]
  %v125 = vld [vmem:[%s1 + $0x1c] sm:$0xf]
  %v126 = vld [vmem:[%s1 + $0x20] sm:$0xf]
  %v127 = vld [vmem:[%s1 + $0x24] sm:$0xf]
  %v128 = vld [vmem:[%s1 + $0x28] sm:$0xf]
  %v129 = vld [vmem:[%s1 + $0x2c] sm:$0xf]
  %v130 = vld [vmem:[%s1 + $0x30] sm:$0xf]
  %v131 = vld [vmem:[%s1 + $0x34] sm:$0xf]
  %v132 = vld [vmem:[%s1 + $0x38] sm:$0xf]
  %v133 = vld [vmem:[%s1 + $0x3c] sm:$0xf]
  %v134 = vld [vmem:[%s0] sm:$0xf]
  %v135 = vld [vmem:[%s0 + $0x4] sm:$0xf]
  %v136 = vld [vmem:[%s0 + $0x8] sm:$0xf]
  %v137 = vld [vmem:[%s0 + $0xc] sm:$0xf]
  %v138 = vld [vmem:[%s0 + $0x10] sm:$0xf]
  %v139 = vld [vmem:[%s0 + $0x14] sm:$0xf]
  %v140 = vld [vmem:[%s0 + $0x18] sm:$0xf]
  %v141 = vld [vmem:[%s0 + $0x1c] sm:$0xf]
  %v142 = vld [vmem:[%s0 + $0x20] sm:$0xf]
  %v143 = vld [vmem:[%s0 + $0x24] sm:$0xf]
  %v144 = vld [vmem:[%s0 + $0x28] sm:$0xf]
  %v145 = vld [vmem:[%s0 + $0x2c] sm:$0xf]
  %v146 = vld [vmem:[%s0 + $0x30] sm:$0xf]
  %v147 = vld [vmem:[%s0 + $0x34] sm:$0xf]
  %v148 = vld [vmem:[%s0 + $0x38] sm:$0xf]
  %v149 = vld [vmem:[%s0 + $0x3c] sm:$0xf]
  %v166 = vunpack.c.l.b16 %v118
  %v167 = vunpack.c.l.b16 %v119
  %v168 = vunpack.c.l.b16 %v120
  %v169 = vunpack.c.l.b16 %v121
  %v170 = vunpack.c.l.b16 %v122
  %v171 = vunpack.c.l.b16 %v123
  %v172 = vunpack.c.l.b16 %v124
  %v173 = vunpack.c.l.b16 %v125
  %v174 = vunpack.c.l.b16 %v126
  %v175 = vunpack.c.l.b16 %v127
  %v176 = vunpack.c.l.b16 %v128
  %v177 = vunpack.c.l.b16 %v129
  %v178 = vunpack.c.l.b16 %v130
  %v179 = vunpack.c.l.b16 %v131
  %v180 = vunpack.c.l.b16 %v132
  %v181 = vunpack.c.l.b16 %v133
  %v182 = vpack.c.b16 %v167, %v166
  %v183 = vpack.c.b16 %v169, %v168
  %v184 = vpack.c.b16 %v171, %v170
  %v185 = vpack.c.b16 %v173, %v172
  %v186 = vpack.c.b16 %v175, %v174
  %v187 = vpack.c.b16 %v177, %v176
  %v188 = vpack.c.b16 %v179, %v178
  %v189 = vpack.c.b16 %v181, %v180
  %v214 = vunpack.c.l.b16 %v134
  %v215 = vunpack.c.l.b16 %v135
  %v216 = vunpack.c.l.b16 %v136
  %v217 = vunpack.c.l.b16 %v137
  %v218 = vunpack.c.l.b16 %v138
  %v219 = vunpack.c.l.b16 %v139
  %v220 = vunpack.c.l.b16 %v140
  %v221 = vunpack.c.l.b16 %v141
  %v222 = vunpack.c.l.b16 %v142
  %v223 = vunpack.c.l.b16 %v143
  %v224 = vunpack.c.l.b16 %v144
  %v225 = vunpack.c.l.b16 %v145
  %v226 = vunpack.c.l.b16 %v146
  %v227 = vunpack.c.l.b16 %v147
  %v228 = vunpack.c.l.b16 %v148
  %v229 = vunpack.c.l.b16 %v149
  %v230 = vpack.c.b16 %v215, %v214
  %v231 = vpack.c.b16 %v217, %v216
  %v232 = vpack.c.b16 %v219, %v218
  %v233 = vpack.c.b16 %v221, %v220
  %v234 = vpack.c.b16 %v223, %v222
  %v235 = vpack.c.b16 %v225, %v224
  %v236 = vpack.c.b16 %v227, %v226
  %v237 = vpack.c.b16 %v229, %v228
  %246 = vmatprep.subr.bf16.mxu0 0
  %247 = vmatpush1.bf16.msra.mxu0 %v230
  %248 = vmatprep.subr.bf16.mxu0 0
  %249 = vmatpush1.bf16.msra.mxu0 %v231
  %250 = vmatprep.subr.bf16.mxu0 0
  %251 = vmatpush1.bf16.msra.mxu0 %v232
  %252 = vmatprep.subr.bf16.mxu0 0
  %253 = vmatpush1.bf16.msra.mxu0 %v233
  %254 = vmatprep.subr.bf16.mxu0 0
  %255 = vmatpush1.bf16.msra.mxu0 %v234
  %256 = vmatprep.subr.bf16.mxu0 0
  %257 = vmatpush1.bf16.msra.mxu0 %v235
  %258 = vmatprep.subr.bf16.mxu0 0
  %259 = vmatpush1.bf16.msra.mxu0 %v236
  %260 = vmatprep.subr.bf16.mxu0 0
  %261 = vmatpush1.bf16.msra.mxu0 %v237
  %262 = vmatprep.subr.bf16.mxu0 0
  %263 = vmatpush1.bf16.msra.mxu0 0
  %264 = vmatprep.subr.bf16.mxu0 0
  %265 = vmatpush1.bf16.msra.mxu0 0
  %266 = vmatprep.subr.bf16.mxu0 0
  %267 = vmatpush1.bf16.msra.mxu0 0
  %268 = vmatprep.subr.bf16.mxu0 0
  %269 = vmatpush1.bf16.msra.mxu0 0
  %270 = vmatprep.subr.bf16.mxu0 0
  %271 = vmatpush1.bf16.msra.mxu0 0
  %272 = vmatprep.subr.bf16.mxu0 0
  %273 = vmatpush1.bf16.msra.mxu0 0
  %274 = vmatprep.subr.bf16.mxu0 0
  %275 = vmatpush1.bf16.msra.mxu0 0
  %276 = vmatprep.subr.bf16.mxu0 0
  %277 = vmatpush1.bf16.msra.mxu0 0
  %278 = vmatprep.mubr.bf16.mxu0 0
  %279 = vmatmul.mubr.bf16.gmra.mrb[0].mxu0 %v182
  %v280 = vpop.f32.mrb[0].mxu0
  %v281 = vadd.f32 0.0, %v280
  %v282 = vpop.f32.mrb[0].mxu0
  %v283 = vpop.f32.mrb[0].mxu0
  %v284 = vadd.f32 0.0, %v283
  %v285 = vpop.f32.mrb[0].mxu0
  %286 = vmatprep.mubr.bf16.mxu0 0
  %287 = vmatmul.mubr.bf16.gmra.mrb[0].mxu0 %v183
  %v288 = vpop.f32.mrb[0].mxu0
  %v289 = vadd.f32 0.0, %v288
  %v290 = vpop.f32.mrb[0].mxu0
  %v291 = vpop.f32.mrb[0].mxu0
  %v292 = vadd.f32 0.0, %v291
  %v293 = vpop.f32.mrb[0].mxu0
  %294 = vmatprep.mubr.bf16.mxu0 0
  %295 = vmatmul.mubr.bf16.gmra.mrb[0].mxu0 %v184
  %v296 = vpop.f32.mrb[0].mxu0
  %v297 = vadd.f32 0.0, %v296
  %v298 = vpop.f32.mrb[0].mxu0
  %v299 = vpop.f32.mrb[0].mxu0
  %v300 = vadd.f32 0.0, %v299
  %v301 = vpop.f32.mrb[0].mxu0
  %302 = vmatprep.mubr.bf16.mxu0 0
  %303 = vmatmul.mubr.bf16.gmra.mrb[0].mxu0 %v185
  %v304 = vpop.f32.mrb[0].mxu0
  %v305 = vadd.f32 0.0, %v304
  %v306 = vpop.f32.mrb[0].mxu0
  %v307 = vpop.f32.mrb[0].mxu0
  %v308 = vadd.f32 0.0, %v307
  %v309 = vpop.f32.mrb[0].mxu0
  %310 = vmatprep.mubr.bf16.mxu0 0
  %311 = vmatmul.mubr.bf16.gmra.mrb[0].mxu0 %v186
  %v312 = vpop.f32.mrb[0].mxu0
  %v313 = vadd.f32 0.0, %v312
  %v314 = vpop.f32.mrb[0].mxu0
  %v315 = vpop.f32.mrb[0].mxu0
  %v316 = vadd.f32 0.0, %v315
  %v317 = vpop.f32.mrb[0].mxu0
  %318 = vmatprep.mubr.bf16.mxu0 0
  %319 = vmatmul.mubr.bf16.gmra.mrb[0].mxu0 %v187
  %v320 = vpop.f32.mrb[0].mxu0
  %v321 = vadd.f32 0.0, %v320
  %v322 = vpop.f32.mrb[0].mxu0
  %v323 = vpop.f32.mrb[0].mxu0
  %v324 = vadd.f32 0.0, %v323
  %v325 = vpop.f32.mrb[0].mxu0
  %326 = vmatprep.mubr.bf16.mxu0 0
  %327 = vmatmul.mubr.bf16.gmra.mrb[0].mxu0 %v188
  %v328 = vpop.f32.mrb[0].mxu0
  %v329 = vadd.f32 0.0, %v328
  %v330 = vpop.f32.mrb[0].mxu0
  %v331 = vpop.f32.mrb[0].mxu0
  %v332 = vadd.f32 0.0, %v331
  %v333 = vpop.f32.mrb[0].mxu0
  %334 = vmatprep.mubr.bf16.mxu0 0
  %335 = vmatmul.mubr.bf16.gmra.mrb[0].mxu0 %v189
  %v336 = vpop.f32.mrb[0].mxu0
  %v337 = vadd.f32 0.0, %v336
  %v338 = vpop.f32.mrb[0].mxu0
  %v339 = vpop.f32.mrb[0].mxu0
  %v340 = vadd.f32 0.0, %v339
  %v341 = vpop.f32.mrb[0].mxu0
  %342 = vdwg.mxu0
  %v344 = vlaneseq
  %v345 = vshrl.u32 %v344, 7
  %v346 = vsub.s32 0, %v345
  %v347 = vrot.slane %v62, %v346
  %v349 = vmul.f32 %v281, %v347
  %v350 = vmul.f32 %v284, %v347
  %v351 = vmul.f32 %v289, %v347
  %v352 = vmul.f32 %v292, %v347
  %v353 = vmul.f32 %v297, %v347
  %v354 = vmul.f32 %v300, %v347
  %v355 = vmul.f32 %v305, %v347
  %v356 = vmul.f32 %v308, %v347
  %v357 = vmul.f32 %v313, %v347
  %v358 = vmul.f32 %v316, %v347
  %v359 = vmul.f32 %v321, %v347
  %v360 = vmul.f32 %v324, %v347
  %v361 = vmul.f32 %v329, %v347
  %v362 = vmul.f32 %v332, %v347
  %v363 = vmul.f32 %v337, %v347
  %v364 = vmul.f32 %v340, %v347
  %365 = vadd.xlane.f32.xlu0 %v349
  %v366 = vpop.xlane.xlu0 %365
  %367 = vadd.xlane.f32.xlu0 %v350
  %v368 = vpop.xlane.xlu0 %367
  %369 = vadd.xlane.f32.xlu0 %v351
  %v370 = vpop.xlane.xlu0 %369
  %371 = vadd.xlane.f32.xlu0 %v352
  %v372 = vpop.xlane.xlu0 %371
  %373 = vadd.xlane.f32.xlu0 %v353
  %v374 = vpop.xlane.xlu0 %373
  %375 = vadd.xlane.f32.xlu0 %v354
  %v376 = vpop.xlane.xlu0 %375
  %377 = vadd.xlane.f32.xlu0 %v355
  %v378 = vpop.xlane.xlu0 %377
  %379 = vadd.xlane.f32.xlu0 %v356
  %v380 = vpop.xlane.xlu0 %379
  %381 = vadd.xlane.f32.xlu0 %v357
  %v382 = vpop.xlane.xlu0 %381
  %383 = vadd.xlane.f32.xlu0 %v358
  %v384 = vpop.xlane.xlu0 %383
  %385 = vadd.xlane.f32.xlu0 %v359
  %v386 = vpop.xlane.xlu0 %385
  %387 = vadd.xlane.f32.xlu0 %v360
  %v388 = vpop.xlane.xlu0 %387
  %389 = vadd.xlane.f32.xlu0 %v361
  %v390 = vpop.xlane.xlu0 %389
  %391 = vadd.xlane.f32.xlu0 %v362
  %v392 = vpop.xlane.xlu0 %391
  %393 = vadd.xlane.f32.xlu0 %v363
  %v394 = vpop.xlane.xlu0 %393
  %395 = vadd.xlane.f32.xlu0 %v364
  %v396 = vpop.xlane.xlu0 %395
  %v397 = vadd.f32 %v366, %v87
  %v398 = vadd.f32 %v368, %v89
  %v399 = vadd.f32 %v370, %v91
  %v400 = vadd.f32 %v372, %v93
  %v401 = vadd.f32 %v374, %v95
  %v402 = vadd.f32 %v376, %v97
  %v403 = vadd.f32 %v378, %v99
  %v404 = vadd.f32 %v380, %v101
  %v405 = vadd.f32 %v382, %v103
  %v406 = vadd.f32 %v384, %v105
  %v407 = vadd.f32 %v386, %v107
  %v408 = vadd.f32 %v388, %v109
  %v409 = vadd.f32 %v390, %v111
  %v410 = vadd.f32 %v392, %v113
  %v411 = vadd.f32 %v394, %v115
  %v412 = vadd.f32 %v396, %v117
  %vm413 = vcmp.ge.f32.partialorder %v397, 0.0
  %vm414 = vcmp.ge.f32.partialorder %v398, 0.0
  %vm415 = vcmp.ge.f32.partialorder %v399, 0.0
  %vm416 = vcmp.ge.f32.partialorder %v400, 0.0
  %vm417 = vcmp.ge.f32.partialorder %v401, 0.0
  %vm418 = vcmp.ge.f32.partialorder %v402, 0.0
  %vm419 = vcmp.ge.f32.partialorder %v403, 0.0
  %vm420 = vcmp.ge.f32.partialorder %v404, 0.0
  %vm421 = vcmp.ge.f32.partialorder %v405, 0.0
  %vm422 = vcmp.ge.f32.partialorder %v406, 0.0
  %vm423 = vcmp.ge.f32.partialorder %v407, 0.0
  %vm424 = vcmp.ge.f32.partialorder %v408, 0.0
  %vm425 = vcmp.ge.f32.partialorder %v409, 0.0
  %vm426 = vcmp.ge.f32.partialorder %v410, 0.0
  %vm427 = vcmp.ge.f32.partialorder %v411, 0.0
  %vm428 = vcmp.ge.f32.partialorder %v412, 0.0
  %v429 = vmul.f32 %v397, 0.01
  %v430 = vmul.f32 %v398, 0.01
  %v431 = vmul.f32 %v399, 0.01
  %v432 = vmul.f32 %v400, 0.01
  %v433 = vmul.f32 %v401, 0.01
  %v434 = vmul.f32 %v402, 0.01
  %v435 = vmul.f32 %v403, 0.01
  %v436 = vmul.f32 %v404, 0.01
  %v437 = vmul.f32 %v405, 0.01
  %v438 = vmul.f32 %v406, 0.01
  %v439 = vmul.f32 %v407, 0.01
  %v440 = vmul.f32 %v408, 0.01
  %v441 = vmul.f32 %v409, 0.01
  %v442 = vmul.f32 %v410, 0.01
  %v443 = vmul.f32 %v411, 0.01
  %v444 = vmul.f32 %v412, 0.01
  %v445 = vsel %vm413, %v397, %v429
  %v446 = vsel %vm414, %v398, %v430
  %v447 = vsel %vm415, %v399, %v431
  %v448 = vsel %vm416, %v400, %v432
  %v449 = vsel %vm417, %v401, %v433
  %v450 = vsel %vm418, %v402, %v434
  %v451 = vsel %vm419, %v403, %v435
  %v452 = vsel %vm420, %v404, %v436
  %v453 = vsel %vm421, %v405, %v437
  %v454 = vsel %vm422, %v406, %v438
  %v455 = vsel %vm423, %v407, %v439
  %v456 = vsel %vm424, %v408, %v440
  %v457 = vsel %vm425, %v409, %v441
  %v458 = vsel %vm426, %v410, %v442
  %v459 = vsel %vm427, %v411, %v443
  %v460 = vsel %vm428, %v412, %v444
  %s461 = scalar_lea.vmem %s1, 64
  %v462 = vld [vmem:[%s461] sm:$0xf]
  %v463 = vld [vmem:[%s461 + $0x4] sm:$0xf]
  %v464 = vld [vmem:[%s461 + $0x8] sm:$0xf]
  %v465 = vld [vmem:[%s461 + $0xc] sm:$0xf]
  %v466 = vld [vmem:[%s461 + $0x10] sm:$0xf]
  %v467 = vld [vmem:[%s461 + $0x14] sm:$0xf]
  %v468 = vld [vmem:[%s461 + $0x18] sm:$0xf]
  %v469 = vld [vmem:[%s461 + $0x1c] sm:$0xf]
  %v470 = vld [vmem:[%s461 + $0x20] sm:$0xf]
  %v471 = vld [vmem:[%s461 + $0x24] sm:$0xf]
  %v472 = vld [vmem:[%s461 + $0x28] sm:$0xf]
  %v473 = vld [vmem:[%s461 + $0x2c] sm:$0xf]
  %v474 = vld [vmem:[%s461 + $0x30] sm:$0xf]
  %v475 = vld [vmem:[%s461 + $0x34] sm:$0xf]
  %v476 = vld [vmem:[%s461 + $0x38] sm:$0xf]
  %v477 = vld [vmem:[%s461 + $0x3c] sm:$0xf]
  %s478 = scalar_lea.vmem %s0, 64
  %v479 = vld [vmem:[%s478] sm:$0xf]
  %v480 = vld [vmem:[%s478 + $0x4] sm:$0xf]
  %v481 = vld [vmem:[%s478 + $0x8] sm:$0xf]
  %v482 = vld [vmem:[%s478 + $0xc] sm:$0xf]
  %v483 = vld [vmem:[%s478 + $0x10] sm:$0xf]
  %v484 = vld [vmem:[%s478 + $0x14] sm:$0xf]
  %v485 = vld [vmem:[%s478 + $0x18] sm:$0xf]
  %v486 = vld [vmem:[%s478 + $0x1c] sm:$0xf]
  %v487 = vld [vmem:[%s478 + $0x20] sm:$0xf]
  %v488 = vld [vmem:[%s478 + $0x24] sm:$0xf]
  %v489 = vld [vmem:[%s478 + $0x28] sm:$0xf]
  %v490 = vld [vmem:[%s478 + $0x2c] sm:$0xf]
  %v491 = vld [vmem:[%s478 + $0x30] sm:$0xf]
  %v492 = vld [vmem:[%s478 + $0x34] sm:$0xf]
  %v493 = vld [vmem:[%s478 + $0x38] sm:$0xf]
  %v494 = vld [vmem:[%s478 + $0x3c] sm:$0xf]
  %v511 = vunpack.c.l.b16 %v462
  %v512 = vunpack.c.l.b16 %v463
  %v513 = vunpack.c.l.b16 %v464
  %v514 = vunpack.c.l.b16 %v465
  %v515 = vunpack.c.l.b16 %v466
  %v516 = vunpack.c.l.b16 %v467
  %v517 = vunpack.c.l.b16 %v468
  %v518 = vunpack.c.l.b16 %v469
  %v519 = vunpack.c.l.b16 %v470
  %v520 = vunpack.c.l.b16 %v471
  %v521 = vunpack.c.l.b16 %v472
  %v522 = vunpack.c.l.b16 %v473
  %v523 = vunpack.c.l.b16 %v474
  %v524 = vunpack.c.l.b16 %v475
  %v525 = vunpack.c.l.b16 %v476
  %v526 = vunpack.c.l.b16 %v477
  %v527 = vpack.c.b16 %v512, %v511
  %v528 = vpack.c.b16 %v514, %v513
  %v529 = vpack.c.b16 %v516, %v515
  %v530 = vpack.c.b16 %v518, %v517
  %v531 = vpack.c.b16 %v520, %v519
  %v532 = vpack.c.b16 %v522, %v521
  %v533 = vpack.c.b16 %v524, %v523
  %v534 = vpack.c.b16 %v526, %v525
  %v559 = vunpack.c.l.b16 %v479
  %v560 = vunpack.c.l.b16 %v480
  %v561 = vunpack.c.l.b16 %v481
  %v562 = vunpack.c.l.b16 %v482
  %v563 = vunpack.c.l.b16 %v483
  %v564 = vunpack.c.l.b16 %v484
  %v565 = vunpack.c.l.b16 %v485
  %v566 = vunpack.c.l.b16 %v486
  %v567 = vunpack.c.l.b16 %v487
  %v568 = vunpack.c.l.b16 %v488
  %v569 = vunpack.c.l.b16 %v489
  %v570 = vunpack.c.l.b16 %v490
  %v571 = vunpack.c.l.b16 %v491
  %v572 = vunpack.c.l.b16 %v492
  %v573 = vunpack.c.l.b16 %v493
  %v574 = vunpack.c.l.b16 %v494
  %v575 = vpack.c.b16 %v560, %v559
  %v576 = vpack.c.b16 %v562, %v561
  %v577 = vpack.c.b16 %v564, %v563
  %v578 = vpack.c.b16 %v566, %v565
  %v579 = vpack.c.b16 %v568, %v567
  %v580 = vpack.c.b16 %v570, %v569
  %v581 = vpack.c.b16 %v572, %v571
  %v582 = vpack.c.b16 %v574, %v573
  %591 = vmatprep.subr.bf16.mxu0 0
  %592 = vmatpush1.bf16.msra.mxu0 %v575
  %593 = vmatprep.subr.bf16.mxu0 0
  %594 = vmatpush1.bf16.msra.mxu0 %v576
  %595 = vmatprep.subr.bf16.mxu0 0
  %596 = vmatpush1.bf16.msra.mxu0 %v577
  %597 = vmatprep.subr.bf16.mxu0 0
  %598 = vmatpush1.bf16.msra.mxu0 %v578
  %599 = vmatprep.subr.bf16.mxu0 0
  %600 = vmatpush1.bf16.msra.mxu0 %v579
  %601 = vmatprep.subr.bf16.mxu0 0
  %602 = vmatpush1.bf16.msra.mxu0 %v580
  %603 = vmatprep.subr.bf16.mxu0 0
  %604 = vmatpush1.bf16.msra.mxu0 %v581
  %605 = vmatprep.subr.bf16.mxu0 0
  %606 = vmatpush1.bf16.msra.mxu0 %v582
  %607 = vmatprep.subr.bf16.mxu0 0
  %608 = vmatpush1.bf16.msra.mxu0 0
  %609 = vmatprep.subr.bf16.mxu0 0
  %610 = vmatpush1.bf16.msra.mxu0 0
  %611 = vmatprep.subr.bf16.mxu0 0
  %612 = vmatpush1.bf16.msra.mxu0 0
  %613 = vmatprep.subr.bf16.mxu0 0
  %614 = vmatpush1.bf16.msra.mxu0 0
  %615 = vmatprep.subr.bf16.mxu0 0
  %616 = vmatpush1.bf16.msra.mxu0 0
  %617 = vmatprep.subr.bf16.mxu0 0
  %618 = vmatpush1.bf16.msra.mxu0 0
  %619 = vmatprep.subr.bf16.mxu0 0
  %620 = vmatpush1.bf16.msra.mxu0 0
  %621 = vmatprep.subr.bf16.mxu0 0
  %622 = vmatpush1.bf16.msra.mxu0 0
  %623 = vmatprep.mubr.bf16.mxu0 0
  %624 = vmatmul.mubr.bf16.gmra.mrb[0].mxu0 %v527
  %v625 = vpop.f32.mrb[0].mxu0
  %v626 = vadd.f32 0.0, %v625
  %v627 = vpop.f32.mrb[0].mxu0
  %v628 = vpop.f32.mrb[0].mxu0
  %v629 = vadd.f32 0.0, %v628
  %v630 = vpop.f32.mrb[0].mxu0
  %631 = vmatprep.mubr.bf16.mxu0 0
  %632 = vmatmul.mubr.bf16.gmra.mrb[0].mxu0 %v528
  %v633 = vpop.f32.mrb[0].mxu0
  %v634 = vadd.f32 0.0, %v633
  %v635 = vpop.f32.mrb[0].mxu0
  %v636 = vpop.f32.mrb[0].mxu0
  %v637 = vadd.f32 0.0, %v636
  %v638 = vpop.f32.mrb[0].mxu0
  %639 = vmatprep.mubr.bf16.mxu0 0
  %640 = vmatmul.mubr.bf16.gmra.mrb[0].mxu0 %v529
  %v641 = vpop.f32.mrb[0].mxu0
  %v642 = vadd.f32 0.0, %v641
  %v643 = vpop.f32.mrb[0].mxu0
  %v644 = vpop.f32.mrb[0].mxu0
  %v645 = vadd.f32 0.0, %v644
  %v646 = vpop.f32.mrb[0].mxu0
  %647 = vmatprep.mubr.bf16.mxu0 0
  %648 = vmatmul.mubr.bf16.gmra.mrb[0].mxu0 %v530
  %v649 = vpop.f32.mrb[0].mxu0
  %v650 = vadd.f32 0.0, %v649
  %v651 = vpop.f32.mrb[0].mxu0
  %v652 = vpop.f32.mrb[0].mxu0
  %v653 = vadd.f32 0.0, %v652
  %v654 = vpop.f32.mrb[0].mxu0
  %655 = vmatprep.mubr.bf16.mxu0 0
  %656 = vmatmul.mubr.bf16.gmra.mrb[0].mxu0 %v531
  %v657 = vpop.f32.mrb[0].mxu0
  %v658 = vadd.f32 0.0, %v657
  %v659 = vpop.f32.mrb[0].mxu0
  %v660 = vpop.f32.mrb[0].mxu0
  %v661 = vadd.f32 0.0, %v660
  %v662 = vpop.f32.mrb[0].mxu0
  %663 = vmatprep.mubr.bf16.mxu0 0
  %664 = vmatmul.mubr.bf16.gmra.mrb[0].mxu0 %v532
  %v665 = vpop.f32.mrb[0].mxu0
  %v666 = vadd.f32 0.0, %v665
  %v667 = vpop.f32.mrb[0].mxu0
  %v668 = vpop.f32.mrb[0].mxu0
  %v669 = vadd.f32 0.0, %v668
  %v670 = vpop.f32.mrb[0].mxu0
  %671 = vmatprep.mubr.bf16.mxu0 0
  %672 = vmatmul.mubr.bf16.gmra.mrb[0].mxu0 %v533
  %v673 = vpop.f32.mrb[0].mxu0
  %v674 = vadd.f32 0.0, %v673
  %v675 = vpop.f32.mrb[0].mxu0
  %v676 = vpop.f32.mrb[0].mxu0
  %v677 = vadd.f32 0.0, %v676
  %v678 = vpop.f32.mrb[0].mxu0
  %679 = vmatprep.mubr.bf16.mxu0 0
  %680 = vmatmul.mubr.bf16.gmra.mrb[0].mxu0 %v534
  %v681 = vpop.f32.mrb[0].mxu0
  %v682 = vadd.f32 0.0, %v681
  %v683 = vpop.f32.mrb[0].mxu0
  %v684 = vpop.f32.mrb[0].mxu0
  %v685 = vadd.f32 0.0, %v684
  %v686 = vpop.f32.mrb[0].mxu0
  %687 = vdwg.mxu0
  %v688 = vmul.f32 %v626, %v347
  %v689 = vmul.f32 %v629, %v347
  %v690 = vmul.f32 %v634, %v347
  %v691 = vmul.f32 %v637, %v347
  %v692 = vmul.f32 %v642, %v347
  %v693 = vmul.f32 %v645, %v347
  %v694 = vmul.f32 %v650, %v347
  %v695 = vmul.f32 %v653, %v347
  %v696 = vmul.f32 %v658, %v347
  %v697 = vmul.f32 %v661, %v347
  %v698 = vmul.f32 %v666, %v347
  %v699 = vmul.f32 %v669, %v347
  %v700 = vmul.f32 %v674, %v347
  %v701 = vmul.f32 %v677, %v347
  %v702 = vmul.f32 %v682, %v347
  %v703 = vmul.f32 %v685, %v347
  %704 = vadd.xlane.f32.xlu0 %v688
  %v705 = vpop.xlane.xlu0 %704
  %706 = vadd.xlane.f32.xlu0 %v689
  %v707 = vpop.xlane.xlu0 %706
  %708 = vadd.xlane.f32.xlu0 %v690
  %v709 = vpop.xlane.xlu0 %708
  %710 = vadd.xlane.f32.xlu0 %v691
  %v711 = vpop.xlane.xlu0 %710
  %712 = vadd.xlane.f32.xlu0 %v692
  %v713 = vpop.xlane.xlu0 %712
  %714 = vadd.xlane.f32.xlu0 %v693
  %v715 = vpop.xlane.xlu0 %714
  %716 = vadd.xlane.f32.xlu0 %v694
  %v717 = vpop.xlane.xlu0 %716
  %718 = vadd.xlane.f32.xlu0 %v695
  %v719 = vpop.xlane.xlu0 %718
  %720 = vadd.xlane.f32.xlu0 %v696
  %v721 = vpop.xlane.xlu0 %720
  %722 = vadd.xlane.f32.xlu0 %v697
  %v723 = vpop.xlane.xlu0 %722
  %724 = vadd.xlane.f32.xlu0 %v698
  %v725 = vpop.xlane.xlu0 %724
  %726 = vadd.xlane.f32.xlu0 %v699
  %v727 = vpop.xlane.xlu0 %726
  %728 = vadd.xlane.f32.xlu0 %v700
  %v729 = vpop.xlane.xlu0 %728
  %730 = vadd.xlane.f32.xlu0 %v701
  %v731 = vpop.xlane.xlu0 %730
  %732 = vadd.xlane.f32.xlu0 %v702
  %v733 = vpop.xlane.xlu0 %732
  %734 = vadd.xlane.f32.xlu0 %v703
  %v735 = vpop.xlane.xlu0 %734
  %v736 = vadd.f32 %v705, %v87
  %v737 = vadd.f32 %v707, %v89
  %v738 = vadd.f32 %v709, %v91
  %v739 = vadd.f32 %v711, %v93
  %v740 = vadd.f32 %v713, %v95
  %v741 = vadd.f32 %v715, %v97
  %v742 = vadd.f32 %v717, %v99
  %v743 = vadd.f32 %v719, %v101
  %v744 = vadd.f32 %v721, %v103
  %v745 = vadd.f32 %v723, %v105
  %v746 = vadd.f32 %v725, %v107
  %v747 = vadd.f32 %v727, %v109
  %v748 = vadd.f32 %v729, %v111
  %v749 = vadd.f32 %v731, %v113
  %v750 = vadd.f32 %v733, %v115
  %v751 = vadd.f32 %v735, %v117
  %vm752 = vcmp.ge.f32.partialorder %v736, 0.0
  %vm753 = vcmp.ge.f32.partialorder %v737, 0.0
  %vm754 = vcmp.ge.f32.partialorder %v738, 0.0
  %vm755 = vcmp.ge.f32.partialorder %v739, 0.0
  %vm756 = vcmp.ge.f32.partialorder %v740, 0.0
  %vm757 = vcmp.ge.f32.partialorder %v741, 0.0
  %vm758 = vcmp.ge.f32.partialorder %v742, 0.0
  %vm759 = vcmp.ge.f32.partialorder %v743, 0.0
  %vm760 = vcmp.ge.f32.partialorder %v744, 0.0
  %vm761 = vcmp.ge.f32.partialorder %v745, 0.0
  %vm762 = vcmp.ge.f32.partialorder %v746, 0.0
  %vm763 = vcmp.ge.f32.partialorder %v747, 0.0
  %vm764 = vcmp.ge.f32.partialorder %v748, 0.0
  %vm765 = vcmp.ge.f32.partialorder %v749, 0.0
  %vm766 = vcmp.ge.f32.partialorder %v750, 0.0
  %vm767 = vcmp.ge.f32.partialorder %v751, 0.0
  %v768 = vmul.f32 %v736, 0.01
  %v769 = vmul.f32 %v737, 0.01
  %v770 = vmul.f32 %v738, 0.01
  %v771 = vmul.f32 %v739, 0.01
  %v772 = vmul.f32 %v740, 0.01
  %v773 = vmul.f32 %v741, 0.01
  %v774 = vmul.f32 %v742, 0.01
  %v775 = vmul.f32 %v743, 0.01
  %v776 = vmul.f32 %v744, 0.01
  %v777 = vmul.f32 %v745, 0.01
  %v778 = vmul.f32 %v746, 0.01
  %v779 = vmul.f32 %v747, 0.01
  %v780 = vmul.f32 %v748, 0.01
  %v781 = vmul.f32 %v749, 0.01
  %v782 = vmul.f32 %v750, 0.01
  %v783 = vmul.f32 %v751, 0.01
  %v784 = vsel %vm752, %v736, %v768
  %v785 = vsel %vm753, %v737, %v769
  %v786 = vsel %vm754, %v738, %v770
  %v787 = vsel %vm755, %v739, %v771
  %v788 = vsel %vm756, %v740, %v772
  %v789 = vsel %vm757, %v741, %v773
  %v790 = vsel %vm758, %v742, %v774
  %v791 = vsel %vm759, %v743, %v775
  %v792 = vsel %vm760, %v744, %v776
  %v793 = vsel %vm761, %v745, %v777
  %v794 = vsel %vm762, %v746, %v778
  %v795 = vsel %vm763, %v747, %v779
  %v796 = vsel %vm764, %v748, %v780
  %v797 = vsel %vm765, %v749, %v781
  %v798 = vsel %vm766, %v750, %v782
  %v799 = vsel %vm767, %v751, %v783
  %s800 = scalar_lea.vmem %s1, 128
  %v801 = vld [vmem:[%s800] sm:$0xf]
  %v802 = vld [vmem:[%s800 + $0x4] sm:$0xf]
  %v803 = vld [vmem:[%s800 + $0x8] sm:$0xf]
  %v804 = vld [vmem:[%s800 + $0xc] sm:$0xf]
  %v805 = vld [vmem:[%s800 + $0x10] sm:$0xf]
  %v806 = vld [vmem:[%s800 + $0x14] sm:$0xf]
  %v807 = vld [vmem:[%s800 + $0x18] sm:$0xf]
  %v808 = vld [vmem:[%s800 + $0x1c] sm:$0xf]
  %v809 = vld [vmem:[%s800 + $0x20] sm:$0xf]
  %v810 = vld [vmem:[%s800 + $0x24] sm:$0xf]
  %v811 = vld [vmem:[%s800 + $0x28] sm:$0xf]
  %v812 = vld [vmem:[%s800 + $0x2c] sm:$0xf]
  %v813 = vld [vmem:[%s800 + $0x30] sm:$0xf]
  %v814 = vld [vmem:[%s800 + $0x34] sm:$0xf]
  %v815 = vld [vmem:[%s800 + $0x38] sm:$0xf]
  %v816 = vld [vmem:[%s800 + $0x3c] sm:$0xf]
  %s817 = scalar_lea.vmem %s0, 128
  %v818 = vld [vmem:[%s817] sm:$0xf]
  %v819 = vld [vmem:[%s817 + $0x4] sm:$0xf]
  %v820 = vld [vmem:[%s817 + $0x8] sm:$0xf]
  %v821 = vld [vmem:[%s817 + $0xc] sm:$0xf]
  %v822 = vld [vmem:[%s817 + $0x10] sm:$0xf]
  %v823 = vld [vmem:[%s817 + $0x14] sm:$0xf]
  %v824 = vld [vmem:[%s817 + $0x18] sm:$0xf]
  %v825 = vld [vmem:[%s817 + $0x1c] sm:$0xf]
  %v826 = vld [vmem:[%s817 + $0x20] sm:$0xf]
  %v827 = vld [vmem:[%s817 + $0x24] sm:$0xf]
  %v828 = vld [vmem:[%s817 + $0x28] sm:$0xf]
  %v829 = vld [vmem:[%s817 + $0x2c] sm:$0xf]
  %v830 = vld [vmem:[%s817 + $0x30] sm:$0xf]
  %v831 = vld [vmem:[%s817 + $0x34] sm:$0xf]
  %v832 = vld [vmem:[%s817 + $0x38] sm:$0xf]
  %v833 = vld [vmem:[%s817 + $0x3c] sm:$0xf]
  %v850 = vunpack.c.l.b16 %v801
  %v851 = vunpack.c.l.b16 %v802
  %v852 = vunpack.c.l.b16 %v803
  %v853 = vunpack.c.l.b16 %v804
  %v854 = vunpack.c.l.b16 %v805
  %v855 = vunpack.c.l.b16 %v806
  %v856 = vunpack.c.l.b16 %v807
  %v857 = vunpack.c.l.b16 %v808
  %v858 = vunpack.c.l.b16 %v809
  %v859 = vunpack.c.l.b16 %v810
  %v860 = vunpack.c.l.b16 %v811
  %v861 = vunpack.c.l.b16 %v812
  %v862 = vunpack.c.l.b16 %v813
  %v863 = vunpack.c.l.b16 %v814
  %v864 = vunpack.c.l.b16 %v815
  %v865 = vunpack.c.l.b16 %v816
  %v866 = vpack.c.b16 %v851, %v850
  %v867 = vpack.c.b16 %v853, %v852
  %v868 = vpack.c.b16 %v855, %v854
  %v869 = vpack.c.b16 %v857, %v856
  %v870 = vpack.c.b16 %v859, %v858
  %v871 = vpack.c.b16 %v861, %v860
  %v872 = vpack.c.b16 %v863, %v862
  %v873 = vpack.c.b16 %v865, %v864
  %v898 = vunpack.c.l.b16 %v818
  %v899 = vunpack.c.l.b16 %v819
  %v900 = vunpack.c.l.b16 %v820
  %v901 = vunpack.c.l.b16 %v821
  %v902 = vunpack.c.l.b16 %v822
  %v903 = vunpack.c.l.b16 %v823
  %v904 = vunpack.c.l.b16 %v824
  %v905 = vunpack.c.l.b16 %v825
  %v906 = vunpack.c.l.b16 %v826
  %v907 = vunpack.c.l.b16 %v827
  %v908 = vunpack.c.l.b16 %v828
  %v909 = vunpack.c.l.b16 %v829
  %v910 = vunpack.c.l.b16 %v830
  %v911 = vunpack.c.l.b16 %v831
  %v912 = vunpack.c.l.b16 %v832
  %v913 = vunpack.c.l.b16 %v833
  %v914 = vpack.c.b16 %v899, %v898
  %v915 = vpack.c.b16 %v901, %v900
  %v916 = vpack.c.b16 %v903, %v902
  %v917 = vpack.c.b16 %v905, %v904
  %v918 = vpack.c.b16 %v907, %v906
  %v919 = vpack.c.b16 %v909, %v908
  %v920 = vpack.c.b16 %v911, %v910
  %v921 = vpack.c.b16 %v913, %v912
  %930 = vmatprep.subr.bf16.mxu0 0
  %931 = vmatpush1.bf16.msra.mxu0 %v914
  %932 = vmatprep.subr.bf16.mxu0 0
  %933 = vmatpush1.bf16.msra.mxu0 %v915
  %934 = vmatprep.subr.bf16.mxu0 0
  %935 = vmatpush1.bf16.msra.mxu0 %v916
  %936 = vmatprep.subr.bf16.mxu0 0
  %937 = vmatpush1.bf16.msra.mxu0 %v917
  %938 = vmatprep.subr.bf16.mxu0 0
  %939 = vmatpush1.bf16.msra.mxu0 %v918
  %940 = vmatprep.subr.bf16.mxu0 0
  %941 = vmatpush1.bf16.msra.mxu0 %v919
  %942 = vmatprep.subr.bf16.mxu0 0
  %943 = vmatpush1.bf16.msra.mxu0 %v920
  %944 = vmatprep.subr.bf16.mxu0 0
  %945 = vmatpush1.bf16.msra.mxu0 %v921
  %946 = vmatprep.subr.bf16.mxu0 0
  %947 = vmatpush1.bf16.msra.mxu0 0
  %948 = vmatprep.subr.bf16.mxu0 0
  %949 = vmatpush1.bf16.msra.mxu0 0
  %950 = vmatprep.subr.bf16.mxu0 0
  %951 = vmatpush1.bf16.msra.mxu0 0
  %952 = vmatprep.subr.bf16.mxu0 0
  %953 = vmatpush1.bf16.msra.mxu0 0
  %954 = vmatprep.subr.bf16.mxu0 0
  %955 = vmatpush1.bf16.msra.mxu0 0
  %956 = vmatprep.subr.bf16.mxu0 0
  %957 = vmatpush1.bf16.msra.mxu0 0
  %958 = vmatprep.subr.bf16.mxu0 0
  %959 = vmatpush1.bf16.msra.mxu0 0
  %960 = vmatprep.subr.bf16.mxu0 0
  %961 = vmatpush1.bf16.msra.mxu0 0
  %962 = vmatprep.mubr.bf16.mxu0 0
  %963 = vmatmul.mubr.bf16.gmra.mrb[0].mxu0 %v866
  %v964 = vpop.f32.mrb[0].mxu0
  %v965 = vadd.f32 0.0, %v964
  %v966 = vpop.f32.mrb[0].mxu0
  %v967 = vpop.f32.mrb[0].mxu0
  %v968 = vadd.f32 0.0, %v967
  %v969 = vpop.f32.mrb[0].mxu0
  %970 = vmatprep.mubr.bf16.mxu0 0
  %971 = vmatmul.mubr.bf16.gmra.mrb[0].mxu0 %v867
  %v972 = vpop.f32.mrb[0].mxu0
  %v973 = vadd.f32 0.0, %v972
  %v974 = vpop.f32.mrb[0].mxu0
  %v975 = vpop.f32.mrb[0].mxu0
  %v976 = vadd.f32 0.0, %v975
  %v977 = vpop.f32.mrb[0].mxu0
  %978 = vmatprep.mubr.bf16.mxu0 0
  %979 = vmatmul.mubr.bf16.gmra.mrb[0].mxu0 %v868
  %v980 = vpop.f32.mrb[0].mxu0
  %v981 = vadd.f32 0.0, %v980
  %v982 = vpop.f32.mrb[0].mxu0
  %v983 = vpop.f32.mrb[0].mxu0
  %v984 = vadd.f32 0.0, %v983
  %v985 = vpop.f32.mrb[0].mxu0
  %986 = vmatprep.mubr.bf16.mxu0 0
  %987 = vmatmul.mubr.bf16.gmra.mrb[0].mxu0 %v869
  %v988 = vpop.f32.mrb[0].mxu0
  %v989 = vadd.f32 0.0, %v988
  %v990 = vpop.f32.mrb[0].mxu0
  %v991 = vpop.f32.mrb[0].mxu0
  %v992 = vadd.f32 0.0, %v991
  %v993 = vpop.f32.mrb[0].mxu0
  %994 = vmatprep.mubr.bf16.mxu0 0
  %995 = vmatmul.mubr.bf16.gmra.mrb[0].mxu0 %v870
  %v996 = vpop.f32.mrb[0].mxu0
  %v997 = vadd.f32 0.0, %v996
  %v998 = vpop.f32.mrb[0].mxu0
  %v999 = vpop.f32.mrb[0].mxu0
  %v1000 = vadd.f32 0.0, %v999
  %v1001 = vpop.f32.mrb[0].mxu0
  %1002 = vmatprep.mubr.bf16.mxu0 0
  %1003 = vmatmul.mubr.bf16.gmra.mrb[0].mxu0 %v871
  %v1004 = vpop.f32.mrb[0].mxu0
  %v1005 = vadd.f32 0.0, %v1004
  %v1006 = vpop.f32.mrb[0].mxu0
  %v1007 = vpop.f32.mrb[0].mxu0
  %v1008 = vadd.f32 0.0, %v1007
  %v1009 = vpop.f32.mrb[0].mxu0
  %1010 = vmatprep.mubr.bf16.mxu0 0
  %1011 = vmatmul.mubr.bf16.gmra.mrb[0].mxu0 %v872
  %v1012 = vpop.f32.mrb[0].mxu0
  %v1013 = vadd.f32 0.0, %v1012
  %v1014 = vpop.f32.mrb[0].mxu0
  %v1015 = vpop.f32.mrb[0].mxu0
  %v1016 = vadd.f32 0.0, %v1015
  %v1017 = vpop.f32.mrb[0].mxu0
  %1018 = vmatprep.mubr.bf16.mxu0 0
  %1019 = vmatmul.mubr.bf16.gmra.mrb[0].mxu0 %v873
  %v1020 = vpop.f32.mrb[0].mxu0
  %v1021 = vadd.f32 0.0, %v1020
  %v1022 = vpop.f32.mrb[0].mxu0
  %v1023 = vpop.f32.mrb[0].mxu0
  %v1024 = vadd.f32 0.0, %v1023
  %v1025 = vpop.f32.mrb[0].mxu0
  %1026 = vdwg.mxu0
  %v1027 = vmul.f32 %v965, %v347
  %v1028 = vmul.f32 %v968, %v347
  %v1029 = vmul.f32 %v973, %v347
  %v1030 = vmul.f32 %v976, %v347
  %v1031 = vmul.f32 %v981, %v347
  %v1032 = vmul.f32 %v984, %v347
  %v1033 = vmul.f32 %v989, %v347
  %v1034 = vmul.f32 %v992, %v347
  %v1035 = vmul.f32 %v997, %v347
  %v1036 = vmul.f32 %v1000, %v347
  %v1037 = vmul.f32 %v1005, %v347
  %v1038 = vmul.f32 %v1008, %v347
  %v1039 = vmul.f32 %v1013, %v347
  %v1040 = vmul.f32 %v1016, %v347
  %v1041 = vmul.f32 %v1021, %v347
  %v1042 = vmul.f32 %v1024, %v347
  %1043 = vadd.xlane.f32.xlu0 %v1027
  %v1044 = vpop.xlane.xlu0 %1043
  %1045 = vadd.xlane.f32.xlu0 %v1028
  %v1046 = vpop.xlane.xlu0 %1045
  %1047 = vadd.xlane.f32.xlu0 %v1029
  %v1048 = vpop.xlane.xlu0 %1047
  %1049 = vadd.xlane.f32.xlu0 %v1030
  %v1050 = vpop.xlane.xlu0 %1049
  %1051 = vadd.xlane.f32.xlu0 %v1031
  %v1052 = vpop.xlane.xlu0 %1051
  %1053 = vadd.xlane.f32.xlu0 %v1032
  %v1054 = vpop.xlane.xlu0 %1053
  %1055 = vadd.xlane.f32.xlu0 %v1033
  %v1056 = vpop.xlane.xlu0 %1055
  %1057 = vadd.xlane.f32.xlu0 %v1034
  %v1058 = vpop.xlane.xlu0 %1057
  %1059 = vadd.xlane.f32.xlu0 %v1035
  %v1060 = vpop.xlane.xlu0 %1059
  %1061 = vadd.xlane.f32.xlu0 %v1036
  %v1062 = vpop.xlane.xlu0 %1061
  %1063 = vadd.xlane.f32.xlu0 %v1037
  %v1064 = vpop.xlane.xlu0 %1063
  %1065 = vadd.xlane.f32.xlu0 %v1038
  %v1066 = vpop.xlane.xlu0 %1065
  %1067 = vadd.xlane.f32.xlu0 %v1039
  %v1068 = vpop.xlane.xlu0 %1067
  %1069 = vadd.xlane.f32.xlu0 %v1040
  %v1070 = vpop.xlane.xlu0 %1069
  %1071 = vadd.xlane.f32.xlu0 %v1041
  %v1072 = vpop.xlane.xlu0 %1071
  %1073 = vadd.xlane.f32.xlu0 %v1042
  %v1074 = vpop.xlane.xlu0 %1073
  %v1075 = vadd.f32 %v1044, %v87
  %v1076 = vadd.f32 %v1046, %v89
  %v1077 = vadd.f32 %v1048, %v91
  %v1078 = vadd.f32 %v1050, %v93
  %v1079 = vadd.f32 %v1052, %v95
  %v1080 = vadd.f32 %v1054, %v97
  %v1081 = vadd.f32 %v1056, %v99
  %v1082 = vadd.f32 %v1058, %v101
  %v1083 = vadd.f32 %v1060, %v103
  %v1084 = vadd.f32 %v1062, %v105
  %v1085 = vadd.f32 %v1064, %v107
  %v1086 = vadd.f32 %v1066, %v109
  %v1087 = vadd.f32 %v1068, %v111
  %v1088 = vadd.f32 %v1070, %v113
  %v1089 = vadd.f32 %v1072, %v115
  %v1090 = vadd.f32 %v1074, %v117
  %vm1091 = vcmp.ge.f32.partialorder %v1075, 0.0
  %vm1092 = vcmp.ge.f32.partialorder %v1076, 0.0
  %vm1093 = vcmp.ge.f32.partialorder %v1077, 0.0
  %vm1094 = vcmp.ge.f32.partialorder %v1078, 0.0
  %vm1095 = vcmp.ge.f32.partialorder %v1079, 0.0
  %vm1096 = vcmp.ge.f32.partialorder %v1080, 0.0
  %vm1097 = vcmp.ge.f32.partialorder %v1081, 0.0
  %vm1098 = vcmp.ge.f32.partialorder %v1082, 0.0
  %vm1099 = vcmp.ge.f32.partialorder %v1083, 0.0
  %vm1100 = vcmp.ge.f32.partialorder %v1084, 0.0
  %vm1101 = vcmp.ge.f32.partialorder %v1085, 0.0
  %vm1102 = vcmp.ge.f32.partialorder %v1086, 0.0
  %vm1103 = vcmp.ge.f32.partialorder %v1087, 0.0
  %vm1104 = vcmp.ge.f32.partialorder %v1088, 0.0
  %vm1105 = vcmp.ge.f32.partialorder %v1089, 0.0
  %vm1106 = vcmp.ge.f32.partialorder %v1090, 0.0
  %v1107 = vmul.f32 %v1075, 0.01
  %v1108 = vmul.f32 %v1076, 0.01
  %v1109 = vmul.f32 %v1077, 0.01
  %v1110 = vmul.f32 %v1078, 0.01
  %v1111 = vmul.f32 %v1079, 0.01
  %v1112 = vmul.f32 %v1080, 0.01
  %v1113 = vmul.f32 %v1081, 0.01
  %v1114 = vmul.f32 %v1082, 0.01
  %v1115 = vmul.f32 %v1083, 0.01
  %v1116 = vmul.f32 %v1084, 0.01
  %v1117 = vmul.f32 %v1085, 0.01
  %v1118 = vmul.f32 %v1086, 0.01
  %v1119 = vmul.f32 %v1087, 0.01
  %v1120 = vmul.f32 %v1088, 0.01
  %v1121 = vmul.f32 %v1089, 0.01
  %v1122 = vmul.f32 %v1090, 0.01
  %v1123 = vsel %vm1091, %v1075, %v1107
  %v1124 = vsel %vm1092, %v1076, %v1108
  %v1125 = vsel %vm1093, %v1077, %v1109
  %v1126 = vsel %vm1094, %v1078, %v1110
  %v1127 = vsel %vm1095, %v1079, %v1111
  %v1128 = vsel %vm1096, %v1080, %v1112
  %v1129 = vsel %vm1097, %v1081, %v1113
  %v1130 = vsel %vm1098, %v1082, %v1114
  %v1131 = vsel %vm1099, %v1083, %v1115
  %v1132 = vsel %vm1100, %v1084, %v1116
  %v1133 = vsel %vm1101, %v1085, %v1117
  %v1134 = vsel %vm1102, %v1086, %v1118
  %v1135 = vsel %vm1103, %v1087, %v1119
  %v1136 = vsel %vm1104, %v1088, %v1120
  %v1137 = vsel %vm1105, %v1089, %v1121
  %v1138 = vsel %vm1106, %v1090, %v1122
  %v1139 = vmax.f32 %v445, %v784
  %v1140 = vmax.f32 %v446, %v785
  %v1141 = vmax.f32 %v447, %v786
  %v1142 = vmax.f32 %v448, %v787
  %v1143 = vmax.f32 %v449, %v788
  %v1144 = vmax.f32 %v450, %v789
  %v1145 = vmax.f32 %v451, %v790
  %v1146 = vmax.f32 %v452, %v791
  %v1147 = vmax.f32 %v453, %v792
  %v1148 = vmax.f32 %v454, %v793
  %v1149 = vmax.f32 %v455, %v794
  %v1150 = vmax.f32 %v456, %v795
  %v1151 = vmax.f32 %v457, %v796
  %v1152 = vmax.f32 %v458, %v797
  %v1153 = vmax.f32 %v459, %v798
  %v1154 = vmax.f32 %v460, %v799
  %v1155 = vmax.f32 %v1139, %v1123
  %v1156 = vmax.f32 %v1140, %v1124
  %v1157 = vmax.f32 %v1141, %v1125
  %v1158 = vmax.f32 %v1142, %v1126
  %v1159 = vmax.f32 %v1143, %v1127
  %v1160 = vmax.f32 %v1144, %v1128
  %v1161 = vmax.f32 %v1145, %v1129
  %v1162 = vmax.f32 %v1146, %v1130
  %v1163 = vmax.f32 %v1147, %v1131
  %v1164 = vmax.f32 %v1148, %v1132
  %v1165 = vmax.f32 %v1149, %v1133
  %v1166 = vmax.f32 %v1150, %v1134
  %v1167 = vmax.f32 %v1151, %v1135
  %v1168 = vmax.f32 %v1152, %v1136
  %v1169 = vmax.f32 %v1153, %v1137
  %v1170 = vmax.f32 %v1154, %v1138
  %v1171 = vsub.f32 %v445, %v1155
  %v1172 = vsub.f32 %v446, %v1156
  %v1173 = vsub.f32 %v447, %v1157
  %v1174 = vsub.f32 %v448, %v1158
  %v1175 = vsub.f32 %v449, %v1159
  %v1176 = vsub.f32 %v450, %v1160
  %v1177 = vsub.f32 %v451, %v1161
  %v1178 = vsub.f32 %v452, %v1162
  %v1179 = vsub.f32 %v453, %v1163
  %v1180 = vsub.f32 %v454, %v1164
  %v1181 = vsub.f32 %v455, %v1165
  %v1182 = vsub.f32 %v456, %v1166
  %v1183 = vsub.f32 %v457, %v1167
  %v1184 = vsub.f32 %v458, %v1168
  %v1185 = vsub.f32 %v459, %v1169
  %v1186 = vsub.f32 %v460, %v1170
  %v1187 = vmul.f32 %v1171, 1.442695
  %v1188 = vpow.pop %v1187
  %v1189 = vmul.f32 %v1172, 1.442695
  %v1190 = vpow.pop %v1189
  %v1191 = vmul.f32 %v1173, 1.442695
  %v1192 = vpow.pop %v1191
  %v1193 = vmul.f32 %v1174, 1.442695
  %v1194 = vpow.pop %v1193
  %v1195 = vmul.f32 %v1175, 1.442695
  %v1196 = vpow.pop %v1195
  %v1197 = vmul.f32 %v1176, 1.442695
  %v1198 = vpow.pop %v1197
  %v1199 = vmul.f32 %v1177, 1.442695
  %v1200 = vpow.pop %v1199
  %v1201 = vmul.f32 %v1178, 1.442695
  %v1202 = vpow.pop %v1201
  %v1203 = vmul.f32 %v1179, 1.442695
  %v1204 = vpow.pop %v1203
  %v1205 = vmul.f32 %v1180, 1.442695
  %v1206 = vpow.pop %v1205
  %v1207 = vmul.f32 %v1181, 1.442695
  %v1208 = vpow.pop %v1207
  %v1209 = vmul.f32 %v1182, 1.442695
  %v1210 = vpow.pop %v1209
  %v1211 = vmul.f32 %v1183, 1.442695
  %v1212 = vpow.pop %v1211
  %v1213 = vmul.f32 %v1184, 1.442695
  %v1214 = vpow.pop %v1213
  %v1215 = vmul.f32 %v1185, 1.442695
  %v1216 = vpow.pop %v1215
  %v1217 = vmul.f32 %v1186, 1.442695
  %v1218 = vpow.pop %v1217
  %v1219 = vsub.f32 %v784, %v1155
  %v1220 = vsub.f32 %v785, %v1156
  %v1221 = vsub.f32 %v786, %v1157
  %v1222 = vsub.f32 %v787, %v1158
  %v1223 = vsub.f32 %v788, %v1159
  %v1224 = vsub.f32 %v789, %v1160
  %v1225 = vsub.f32 %v790, %v1161
  %v1226 = vsub.f32 %v791, %v1162
  %v1227 = vsub.f32 %v792, %v1163
  %v1228 = vsub.f32 %v793, %v1164
  %v1229 = vsub.f32 %v794, %v1165
  %v1230 = vsub.f32 %v795, %v1166
  %v1231 = vsub.f32 %v796, %v1167
  %v1232 = vsub.f32 %v797, %v1168
  %v1233 = vsub.f32 %v798, %v1169
  %v1234 = vsub.f32 %v799, %v1170
  %v1235 = vmul.f32 %v1219, 1.442695
  %v1236 = vpow.pop %v1235
  %v1237 = vmul.f32 %v1220, 1.442695
  %v1238 = vpow.pop %v1237
  %v1239 = vmul.f32 %v1221, 1.442695
  %v1240 = vpow.pop %v1239
  %v1241 = vmul.f32 %v1222, 1.442695
  %v1242 = vpow.pop %v1241
  %v1243 = vmul.f32 %v1223, 1.442695
  %v1244 = vpow.pop %v1243
  %v1245 = vmul.f32 %v1224, 1.442695
  %v1246 = vpow.pop %v1245
  %v1247 = vmul.f32 %v1225, 1.442695
  %v1248 = vpow.pop %v1247
  %v1249 = vmul.f32 %v1226, 1.442695
  %v1250 = vpow.pop %v1249
  %v1251 = vmul.f32 %v1227, 1.442695
  %v1252 = vpow.pop %v1251
  %v1253 = vmul.f32 %v1228, 1.442695
  %v1254 = vpow.pop %v1253
  %v1255 = vmul.f32 %v1229, 1.442695
  %v1256 = vpow.pop %v1255
  %v1257 = vmul.f32 %v1230, 1.442695
  %v1258 = vpow.pop %v1257
  %v1259 = vmul.f32 %v1231, 1.442695
  %v1260 = vpow.pop %v1259
  %v1261 = vmul.f32 %v1232, 1.442695
  %v1262 = vpow.pop %v1261
  %v1263 = vmul.f32 %v1233, 1.442695
  %v1264 = vpow.pop %v1263
  %v1265 = vmul.f32 %v1234, 1.442695
  %v1266 = vpow.pop %v1265
  %v1267 = vsub.f32 %v1123, %v1155
  %v1268 = vsub.f32 %v1124, %v1156
  %v1269 = vsub.f32 %v1125, %v1157
  %v1270 = vsub.f32 %v1126, %v1158
  %v1271 = vsub.f32 %v1127, %v1159
  %v1272 = vsub.f32 %v1128, %v1160
  %v1273 = vsub.f32 %v1129, %v1161
  %v1274 = vsub.f32 %v1130, %v1162
  %v1275 = vsub.f32 %v1131, %v1163
  %v1276 = vsub.f32 %v1132, %v1164
  %v1277 = vsub.f32 %v1133, %v1165
  %v1278 = vsub.f32 %v1134, %v1166
  %v1279 = vsub.f32 %v1135, %v1167
  %v1280 = vsub.f32 %v1136, %v1168
  %v1281 = vsub.f32 %v1137, %v1169
  %v1282 = vsub.f32 %v1138, %v1170
  %v1283 = vmul.f32 %v1267, 1.442695
  %v1284 = vpow.pop %v1283
  %v1285 = vmul.f32 %v1268, 1.442695
  %v1286 = vpow.pop %v1285
  %v1287 = vmul.f32 %v1269, 1.442695
  %v1288 = vpow.pop %v1287
  %v1289 = vmul.f32 %v1270, 1.442695
  %v1290 = vpow.pop %v1289
  %v1291 = vmul.f32 %v1271, 1.442695
  %v1292 = vpow.pop %v1291
  %v1293 = vmul.f32 %v1272, 1.442695
  %v1294 = vpow.pop %v1293
  %v1295 = vmul.f32 %v1273, 1.442695
  %v1296 = vpow.pop %v1295
  %v1297 = vmul.f32 %v1274, 1.442695
  %v1298 = vpow.pop %v1297
  %v1299 = vmul.f32 %v1275, 1.442695
  %v1300 = vpow.pop %v1299
  %v1301 = vmul.f32 %v1276, 1.442695
  %v1302 = vpow.pop %v1301
  %v1303 = vmul.f32 %v1277, 1.442695
  %v1304 = vpow.pop %v1303
  %v1305 = vmul.f32 %v1278, 1.442695
  %v1306 = vpow.pop %v1305
  %v1307 = vmul.f32 %v1279, 1.442695
  %v1308 = vpow.pop %v1307
  %v1309 = vmul.f32 %v1280, 1.442695
  %v1310 = vpow.pop %v1309
  %v1311 = vmul.f32 %v1281, 1.442695
  %v1312 = vpow.pop %v1311
  %v1313 = vmul.f32 %v1282, 1.442695
  %v1314 = vpow.pop %v1313
  %v1315 = vadd.f32 %v1188, %v1236
  %v1316 = vadd.f32 %v1190, %v1238
  %v1317 = vadd.f32 %v1192, %v1240
  %v1318 = vadd.f32 %v1194, %v1242
  %v1319 = vadd.f32 %v1196, %v1244
  %v1320 = vadd.f32 %v1198, %v1246
  %v1321 = vadd.f32 %v1200, %v1248
  %v1322 = vadd.f32 %v1202, %v1250
  %v1323 = vadd.f32 %v1204, %v1252
  %v1324 = vadd.f32 %v1206, %v1254
  %v1325 = vadd.f32 %v1208, %v1256
  %v1326 = vadd.f32 %v1210, %v1258
  %v1327 = vadd.f32 %v1212, %v1260
  %v1328 = vadd.f32 %v1214, %v1262
  %v1329 = vadd.f32 %v1216, %v1264
  %v1330 = vadd.f32 %v1218, %v1266
  %v1331 = vadd.f32 %v1315, %v1284
  %v1332 = vadd.f32 %v1316, %v1286
  %v1333 = vadd.f32 %v1317, %v1288
  %v1334 = vadd.f32 %v1318, %v1290
  %v1335 = vadd.f32 %v1319, %v1292
  %v1336 = vadd.f32 %v1320, %v1294
  %v1337 = vadd.f32 %v1321, %v1296
  %v1338 = vadd.f32 %v1322, %v1298
  %v1339 = vadd.f32 %v1323, %v1300
  %v1340 = vadd.f32 %v1324, %v1302
  %v1341 = vadd.f32 %v1325, %v1304
  %v1342 = vadd.f32 %v1326, %v1306
  %v1343 = vadd.f32 %v1327, %v1308
  %v1344 = vadd.f32 %v1328, %v1310
  %v1345 = vadd.f32 %v1329, %v1312
  %v1346 = vadd.f32 %v1330, %v1314
  %v1347 = vrcp.pop %v1331
  %v1348 = vrcp.pop %v1332
  %v1349 = vrcp.pop %v1333
  %v1350 = vrcp.pop %v1334
  %v1351 = vrcp.pop %v1335
  %v1352 = vrcp.pop %v1336
  %v1353 = vrcp.pop %v1337
  %v1354 = vrcp.pop %v1338
  %v1355 = vrcp.pop %v1339
  %v1356 = vrcp.pop %v1340
  %v1357 = vrcp.pop %v1341
  %v1358 = vrcp.pop %v1342
  %v1359 = vrcp.pop %v1343
  %v1360 = vrcp.pop %v1344
  %v1361 = vrcp.pop %v1345
  %v1362 = vrcp.pop %v1346
  %v1363 = vmul.f32 %v1188, %v281
  %v1364 = vmul.f32 %v1190, %v284
  %v1365 = vmul.f32 %v1192, %v289
  %v1366 = vmul.f32 %v1194, %v292
  %v1367 = vmul.f32 %v1196, %v297
  %v1368 = vmul.f32 %v1198, %v300
  %v1369 = vmul.f32 %v1200, %v305
  %v1370 = vmul.f32 %v1202, %v308
  %v1371 = vmul.f32 %v1204, %v313
  %v1372 = vmul.f32 %v1206, %v316
  %v1373 = vmul.f32 %v1208, %v321
  %v1374 = vmul.f32 %v1210, %v324
  %v1375 = vmul.f32 %v1212, %v329
  %v1376 = vmul.f32 %v1214, %v332
  %v1377 = vmul.f32 %v1216, %v337
  %v1378 = vmul.f32 %v1218, %v340
  %v1379 = vmul.f32 %v1236, %v626
  %v1380 = vmul.f32 %v1238, %v629
  %v1381 = vmul.f32 %v1240, %v634
  %v1382 = vmul.f32 %v1242, %v637
  %v1383 = vmul.f32 %v1244, %v642
  %v1384 = vmul.f32 %v1246, %v645
  %v1385 = vmul.f32 %v1248, %v650
  %v1386 = vmul.f32 %v1250, %v653
  %v1387 = vmul.f32 %v1252, %v658
  %v1388 = vmul.f32 %v1254, %v661
  %v1389 = vmul.f32 %v1256, %v666
  %v1390 = vmul.f32 %v1258, %v669
  %v1391 = vmul.f32 %v1260, %v674
  %v1392 = vmul.f32 %v1262, %v677
  %v1393 = vmul.f32 %v1264, %v682
  %v1394 = vmul.f32 %v1266, %v685
  %v1395 = vadd.f32 %v1363, %v1379
  %v1396 = vadd.f32 %v1364, %v1380
  %v1397 = vadd.f32 %v1365, %v1381
  %v1398 = vadd.f32 %v1366, %v1382
  %v1399 = vadd.f32 %v1367, %v1383
  %v1400 = vadd.f32 %v1368, %v1384
  %v1401 = vadd.f32 %v1369, %v1385
  %v1402 = vadd.f32 %v1370, %v1386
  %v1403 = vadd.f32 %v1371, %v1387
  %v1404 = vadd.f32 %v1372, %v1388
  %v1405 = vadd.f32 %v1373, %v1389
  %v1406 = vadd.f32 %v1374, %v1390
  %v1407 = vadd.f32 %v1375, %v1391
  %v1408 = vadd.f32 %v1376, %v1392
  %v1409 = vadd.f32 %v1377, %v1393
  %v1410 = vadd.f32 %v1378, %v1394
  %v1411 = vmul.f32 %v1284, %v965
  %v1412 = vmul.f32 %v1286, %v968
  %v1413 = vmul.f32 %v1288, %v973
  %v1414 = vmul.f32 %v1290, %v976
  %v1415 = vmul.f32 %v1292, %v981
  %v1416 = vmul.f32 %v1294, %v984
  %v1417 = vmul.f32 %v1296, %v989
  %v1418 = vmul.f32 %v1298, %v992
  %v1419 = vmul.f32 %v1300, %v997
  %v1420 = vmul.f32 %v1302, %v1000
  %v1421 = vmul.f32 %v1304, %v1005
  %v1422 = vmul.f32 %v1306, %v1008
  %v1423 = vmul.f32 %v1308, %v1013
  %v1424 = vmul.f32 %v1310, %v1016
  %v1425 = vmul.f32 %v1312, %v1021
  %v1426 = vmul.f32 %v1314, %v1024
  %v1427 = vadd.f32 %v1395, %v1411
  %v1428 = vadd.f32 %v1396, %v1412
  %v1429 = vadd.f32 %v1397, %v1413
  %v1430 = vadd.f32 %v1398, %v1414
  %v1431 = vadd.f32 %v1399, %v1415
  %v1432 = vadd.f32 %v1400, %v1416
  %v1433 = vadd.f32 %v1401, %v1417
  %v1434 = vadd.f32 %v1402, %v1418
  %v1435 = vadd.f32 %v1403, %v1419
  %v1436 = vadd.f32 %v1404, %v1420
  %v1437 = vadd.f32 %v1405, %v1421
  %v1438 = vadd.f32 %v1406, %v1422
  %v1439 = vadd.f32 %v1407, %v1423
  %v1440 = vadd.f32 %v1408, %v1424
  %v1441 = vadd.f32 %v1409, %v1425
  %v1442 = vadd.f32 %v1410, %v1426
  %v1443 = vmul.f32 %v1427, %v1347
  %v1444 = vmul.f32 %v1428, %v1348
  %v1445 = vmul.f32 %v1429, %v1349
  %v1446 = vmul.f32 %v1430, %v1350
  %v1447 = vmul.f32 %v1431, %v1351
  %v1448 = vmul.f32 %v1432, %v1352
  %v1449 = vmul.f32 %v1433, %v1353
  %v1450 = vmul.f32 %v1434, %v1354
  %v1451 = vmul.f32 %v1435, %v1355
  %v1452 = vmul.f32 %v1436, %v1356
  %v1453 = vmul.f32 %v1437, %v1357
  %v1454 = vmul.f32 %v1438, %v1358
  %v1455 = vmul.f32 %v1439, %v1359
  %v1456 = vmul.f32 %v1440, %v1360
  %v1457 = vmul.f32 %v1441, %v1361
  %v1458 = vmul.f32 %v1442, %v1362
  %v1459 = vld [vmem:[%s5] sm:$0xf]
  %v1460 = vld [vmem:[%s5 + $0x4] sm:$0xf]
  %v1461 = vld [vmem:[%s5 + $0x8] sm:$0xf]
  %v1462 = vld [vmem:[%s5 + $0xc] sm:$0xf]
  %v1463 = vld [vmem:[%s5 + $0x10] sm:$0xf]
  %v1464 = vld [vmem:[%s5 + $0x14] sm:$0xf]
  %v1465 = vld [vmem:[%s5 + $0x18] sm:$0xf]
  %v1466 = vld [vmem:[%s5 + $0x1c] sm:$0xf]
  %v1467 = vld [vmem:[%s5 + $0x20] sm:$0xf]
  %v1468 = vld [vmem:[%s5 + $0x24] sm:$0xf]
  %v1469 = vld [vmem:[%s5 + $0x28] sm:$0xf]
  %v1470 = vld [vmem:[%s5 + $0x2c] sm:$0xf]
  %v1471 = vld [vmem:[%s5 + $0x30] sm:$0xf]
  %v1472 = vld [vmem:[%s5 + $0x34] sm:$0xf]
  %v1473 = vld [vmem:[%s5 + $0x38] sm:$0xf]
  %v1474 = vld [vmem:[%s5 + $0x3c] sm:$0xf]
  %v1475 = vpack.c.bf16 %v1444, %v1443
  %v1476 = vpack.c.bf16 %v1446, %v1445
  %v1477 = vpack.c.bf16 %v1448, %v1447
  %v1478 = vpack.c.bf16 %v1450, %v1449
  %v1479 = vpack.c.bf16 %v1452, %v1451
  %v1480 = vpack.c.bf16 %v1454, %v1453
  %v1481 = vpack.c.bf16 %v1456, %v1455
  %v1482 = vpack.c.bf16 %v1458, %v1457
  %v1483 = vld [vmem:[%s6] sm:$0xf]
  %v1484 = vld [vmem:[%s6 + $0x4] sm:$0xf]
  %v1485 = vld [vmem:[%s6 + $0x8] sm:$0xf]
  %v1486 = vld [vmem:[%s6 + $0xc] sm:$0xf]
  %v1487 = vld [vmem:[%s6 + $0x10] sm:$0xf]
  %v1488 = vld [vmem:[%s6 + $0x14] sm:$0xf]
  %v1489 = vld [vmem:[%s6 + $0x18] sm:$0xf]
  %v1490 = vld [vmem:[%s6 + $0x1c] sm:$0xf]
  %v1491 = vld [vmem:[%s6 + $0x20] sm:$0xf]
  %v1492 = vld [vmem:[%s6 + $0x24] sm:$0xf]
  %v1493 = vld [vmem:[%s6 + $0x28] sm:$0xf]
  %v1494 = vld [vmem:[%s6 + $0x2c] sm:$0xf]
  %v1495 = vld [vmem:[%s6 + $0x30] sm:$0xf]
  %v1496 = vld [vmem:[%s6 + $0x34] sm:$0xf]
  %v1497 = vld [vmem:[%s6 + $0x38] sm:$0xf]
  %v1498 = vld [vmem:[%s6 + $0x3c] sm:$0xf]
  %v1515 = vunpack.c.l.b16 %v1483
  %v1516 = vunpack.c.l.b16 %v1484
  %v1517 = vunpack.c.l.b16 %v1485
  %v1518 = vunpack.c.l.b16 %v1486
  %v1519 = vunpack.c.l.b16 %v1487
  %v1520 = vunpack.c.l.b16 %v1488
  %v1521 = vunpack.c.l.b16 %v1489
  %v1522 = vunpack.c.l.b16 %v1490
  %v1523 = vunpack.c.l.b16 %v1491
  %v1524 = vunpack.c.l.b16 %v1492
  %v1525 = vunpack.c.l.b16 %v1493
  %v1526 = vunpack.c.l.b16 %v1494
  %v1527 = vunpack.c.l.b16 %v1495
  %v1528 = vunpack.c.l.b16 %v1496
  %v1529 = vunpack.c.l.b16 %v1497
  %v1530 = vunpack.c.l.b16 %v1498
  %v1531 = vpack.c.b16 %v1516, %v1515
  %v1532 = vpack.c.b16 %v1518, %v1517
  %v1533 = vpack.c.b16 %v1520, %v1519
  %v1534 = vpack.c.b16 %v1522, %v1521
  %v1535 = vpack.c.b16 %v1524, %v1523
  %v1536 = vpack.c.b16 %v1526, %v1525
  %v1537 = vpack.c.b16 %v1528, %v1527
  %v1538 = vpack.c.b16 %v1530, %v1529
  %1547 = vmatprep.subr.bf16.mxu0 0
  %1548 = vmatpush1.bf16.msra.mxu0 %v1531
  %1549 = vmatprep.subr.bf16.mxu0 0
  %1550 = vmatpush1.bf16.msra.mxu0 %v1532
  %1551 = vmatprep.subr.bf16.mxu0 0
  %1552 = vmatpush1.bf16.msra.mxu0 %v1533
  %1553 = vmatprep.subr.bf16.mxu0 0
  %1554 = vmatpush1.bf16.msra.mxu0 %v1534
  %1555 = vmatprep.subr.bf16.mxu0 0
  %1556 = vmatpush1.bf16.msra.mxu0 %v1535
  %1557 = vmatprep.subr.bf16.mxu0 0
  %1558 = vmatpush1.bf16.msra.mxu0 %v1536
  %1559 = vmatprep.subr.bf16.mxu0 0
  %1560 = vmatpush1.bf16.msra.mxu0 %v1537
  %1561 = vmatprep.subr.bf16.mxu0 0
  %1562 = vmatpush1.bf16.msra.mxu0 %v1538
  %1563 = vmatprep.subr.bf16.mxu0 0
  %1564 = vmatpush1.bf16.msra.mxu0 0
  %1565 = vmatprep.subr.bf16.mxu0 0
  %1566 = vmatpush1.bf16.msra.mxu0 0
  %1567 = vmatprep.subr.bf16.mxu0 0
  %1568 = vmatpush1.bf16.msra.mxu0 0
  %1569 = vmatprep.subr.bf16.mxu0 0
  %1570 = vmatpush1.bf16.msra.mxu0 0
  %1571 = vmatprep.subr.bf16.mxu0 0
  %1572 = vmatpush1.bf16.msra.mxu0 0
  %1573 = vmatprep.subr.bf16.mxu0 0
  %1574 = vmatpush1.bf16.msra.mxu0 0
  %1575 = vmatprep.subr.bf16.mxu0 0
  %1576 = vmatpush1.bf16.msra.mxu0 0
  %1577 = vmatprep.subr.bf16.mxu0 0
  %1578 = vmatpush1.bf16.msra.mxu0 0
  %1579 = vmatprep.mubr.bf16.mxu0 0
  %1580 = vmatmul.mubr.bf16.gmra.mrb[0].mxu0 %v1475
  %v1581 = vpop.f32.mrb[0].mxu0
  %v1582 = vadd.f32 0.0, %v1581
  %v1583 = vpop.f32.mrb[0].mxu0
  %v1584 = vpop.f32.mrb[0].mxu0
  %v1585 = vadd.f32 0.0, %v1584
  %v1586 = vpop.f32.mrb[0].mxu0
  %1587 = vmatprep.mubr.bf16.mxu0 0
  %1588 = vmatmul.mubr.bf16.gmra.mrb[0].mxu0 %v1476
  %v1589 = vpop.f32.mrb[0].mxu0
  %v1590 = vadd.f32 0.0, %v1589
  %v1591 = vpop.f32.mrb[0].mxu0
  %v1592 = vpop.f32.mrb[0].mxu0
  %v1593 = vadd.f32 0.0, %v1592
  %v1594 = vpop.f32.mrb[0].mxu0
  %1595 = vmatprep.mubr.bf16.mxu0 0
  %1596 = vmatmul.mubr.bf16.gmra.mrb[0].mxu0 %v1477
  %v1597 = vpop.f32.mrb[0].mxu0
  %v1598 = vadd.f32 0.0, %v1597
  %v1599 = vpop.f32.mrb[0].mxu0
  %v1600 = vpop.f32.mrb[0].mxu0
  %v1601 = vadd.f32 0.0, %v1600
  %v1602 = vpop.f32.mrb[0].mxu0
  %1603 = vmatprep.mubr.bf16.mxu0 0
  %1604 = vmatmul.mubr.bf16.gmra.mrb[0].mxu0 %v1478
  %v1605 = vpop.f32.mrb[0].mxu0
  %v1606 = vadd.f32 0.0, %v1605
  %v1607 = vpop.f32.mrb[0].mxu0
  %v1608 = vpop.f32.mrb[0].mxu0
  %v1609 = vadd.f32 0.0, %v1608
  %v1610 = vpop.f32.mrb[0].mxu0
  %1611 = vmatprep.mubr.bf16.mxu0 0
  %1612 = vmatmul.mubr.bf16.gmra.mrb[0].mxu0 %v1479
  %v1613 = vpop.f32.mrb[0].mxu0
  %v1614 = vadd.f32 0.0, %v1613
  %v1615 = vpop.f32.mrb[0].mxu0
  %v1616 = vpop.f32.mrb[0].mxu0
  %v1617 = vadd.f32 0.0, %v1616
  %v1618 = vpop.f32.mrb[0].mxu0
  %1619 = vmatprep.mubr.bf16.mxu0 0
  %1620 = vmatmul.mubr.bf16.gmra.mrb[0].mxu0 %v1480
  %v1621 = vpop.f32.mrb[0].mxu0
  %v1622 = vadd.f32 0.0, %v1621
  %v1623 = vpop.f32.mrb[0].mxu0
  %v1624 = vpop.f32.mrb[0].mxu0
  %v1625 = vadd.f32 0.0, %v1624
  %v1626 = vpop.f32.mrb[0].mxu0
  %1627 = vmatprep.mubr.bf16.mxu0 0
  %1628 = vmatmul.mubr.bf16.gmra.mrb[0].mxu0 %v1481
  %v1629 = vpop.f32.mrb[0].mxu0
  %v1630 = vadd.f32 0.0, %v1629
  %v1631 = vpop.f32.mrb[0].mxu0
  %v1632 = vpop.f32.mrb[0].mxu0
  %v1633 = vadd.f32 0.0, %v1632
  %v1634 = vpop.f32.mrb[0].mxu0
  %1635 = vmatprep.mubr.bf16.mxu0 0
  %1636 = vmatmul.mubr.bf16.gmra.mrb[0].mxu0 %v1482
  %v1637 = vpop.f32.mrb[0].mxu0
  %v1638 = vadd.f32 0.0, %v1637
  %v1639 = vpop.f32.mrb[0].mxu0
  %v1640 = vpop.f32.mrb[0].mxu0
  %v1641 = vadd.f32 0.0, %v1640
  %v1642 = vpop.f32.mrb[0].mxu0
  %1643 = vdwg.mxu0
  %v1660 = vunpack.c.l.b16 %v30
  %v1661 = vunpack.c.l.b16 %v31
  %v1662 = vunpack.c.l.b16 %v32
  %v1663 = vunpack.c.l.b16 %v33
  %v1664 = vunpack.c.l.b16 %v34
  %v1665 = vunpack.c.l.b16 %v35
  %v1666 = vunpack.c.l.b16 %v36
  %v1667 = vunpack.c.l.b16 %v37
  %v1668 = vunpack.c.l.b16 %v38
  %v1669 = vunpack.c.l.b16 %v39
  %v1670 = vunpack.c.l.b16 %v40
  %v1671 = vunpack.c.l.b16 %v41
  %v1672 = vunpack.c.l.b16 %v42
  %v1673 = vunpack.c.l.b16 %v43
  %v1674 = vunpack.c.l.b16 %v44
  %v1675 = vunpack.c.l.b16 %v45
  %v1676 = vpack.c.b16 %v1661, %v1660
  %v1677 = vpack.c.b16 %v1663, %v1662
  %v1678 = vpack.c.b16 %v1665, %v1664
  %v1679 = vpack.c.b16 %v1667, %v1666
  %v1680 = vpack.c.b16 %v1669, %v1668
  %v1681 = vpack.c.b16 %v1671, %v1670
  %v1682 = vpack.c.b16 %v1673, %v1672
  %v1683 = vpack.c.b16 %v1675, %v1674
  %v1708 = vunpack.c.l.b16 %v1459
  %v1709 = vunpack.c.l.b16 %v1460
  %v1710 = vunpack.c.l.b16 %v1461
  %v1711 = vunpack.c.l.b16 %v1462
  %v1712 = vunpack.c.l.b16 %v1463
  %v1713 = vunpack.c.l.b16 %v1464
  %v1714 = vunpack.c.l.b16 %v1465
  %v1715 = vunpack.c.l.b16 %v1466
  %v1716 = vunpack.c.l.b16 %v1467
  %v1717 = vunpack.c.l.b16 %v1468
  %v1718 = vunpack.c.l.b16 %v1469
  %v1719 = vunpack.c.l.b16 %v1470
  %v1720 = vunpack.c.l.b16 %v1471
  %v1721 = vunpack.c.l.b16 %v1472
  %v1722 = vunpack.c.l.b16 %v1473
  %v1723 = vunpack.c.l.b16 %v1474
  %v1724 = vpack.c.b16 %v1709, %v1708
  %v1725 = vpack.c.b16 %v1711, %v1710
  %v1726 = vpack.c.b16 %v1713, %v1712
  %v1727 = vpack.c.b16 %v1715, %v1714
  %v1728 = vpack.c.b16 %v1717, %v1716
  %v1729 = vpack.c.b16 %v1719, %v1718
  %v1730 = vpack.c.b16 %v1721, %v1720
  %v1731 = vpack.c.b16 %v1723, %v1722
  %1740 = vmatprep.subr.bf16.mxu0 0
  %1741 = vmatpush1.bf16.msra.mxu0 %v1724
  %1742 = vmatprep.subr.bf16.mxu0 0
  %1743 = vmatpush1.bf16.msra.mxu0 %v1725
  %1744 = vmatprep.subr.bf16.mxu0 0
  %1745 = vmatpush1.bf16.msra.mxu0 %v1726
  %1746 = vmatprep.subr.bf16.mxu0 0
  %1747 = vmatpush1.bf16.msra.mxu0 %v1727
  %1748 = vmatprep.subr.bf16.mxu0 0
  %1749 = vmatpush1.bf16.msra.mxu0 %v1728
  %1750 = vmatprep.subr.bf16.mxu0 0
  %1751 = vmatpush1.bf16.msra.mxu0 %v1729
  %1752 = vmatprep.subr.bf16.mxu0 0
  %1753 = vmatpush1.bf16.msra.mxu0 %v1730
  %1754 = vmatprep.subr.bf16.mxu0 0
  %1755 = vmatpush1.bf16.msra.mxu0 %v1731
  %1756 = vmatprep.subr.bf16.mxu0 0
  %1757 = vmatpush1.bf16.msra.mxu0 0
  %1758 = vmatprep.subr.bf16.mxu0 0
  %1759 = vmatpush1.bf16.msra.mxu0 0
  %1760 = vmatprep.subr.bf16.mxu0 0
  %1761 = vmatpush1.bf16.msra.mxu0 0
  %1762 = vmatprep.subr.bf16.mxu0 0
  %1763 = vmatpush1.bf16.msra.mxu0 0
  %1764 = vmatprep.subr.bf16.mxu0 0
  %1765 = vmatpush1.bf16.msra.mxu0 0
  %1766 = vmatprep.subr.bf16.mxu0 0
  %1767 = vmatpush1.bf16.msra.mxu0 0
  %1768 = vmatprep.subr.bf16.mxu0 0
  %1769 = vmatpush1.bf16.msra.mxu0 0
  %1770 = vmatprep.subr.bf16.mxu0 0
  %1771 = vmatpush1.bf16.msra.mxu0 0
  %1772 = vmatprep.mubr.bf16.mxu0 0
  %1773 = vmatmul.mubr.bf16.gmra.mrb[0].mxu0 %v1676
  %v1774 = vpop.f32.mrb[0].mxu0
  %v1775 = vadd.f32 %v1582, %v1774
  %v1776 = vpop.f32.mrb[0].mxu0
  %v1777 = vpop.f32.mrb[0].mxu0
  %v1778 = vadd.f32 %v1585, %v1777
  %v1779 = vpop.f32.mrb[0].mxu0
  %1780 = vmatprep.mubr.bf16.mxu0 0
  %1781 = vmatmul.mubr.bf16.gmra.mrb[0].mxu0 %v1677
  %v1782 = vpop.f32.mrb[0].mxu0
  %v1783 = vadd.f32 %v1590, %v1782
  %v1784 = vpop.f32.mrb[0].mxu0
  %v1785 = vpop.f32.mrb[0].mxu0
  %v1786 = vadd.f32 %v1593, %v1785
  %v1787 = vpop.f32.mrb[0].mxu0
  %1788 = vmatprep.mubr.bf16.mxu0 0
  %1789 = vmatmul.mubr.bf16.gmra.mrb[0].mxu0 %v1678
  %v1790 = vpop.f32.mrb[0].mxu0
  %v1791 = vadd.f32 %v1598, %v1790
  %v1792 = vpop.f32.mrb[0].mxu0
  %v1793 = vpop.f32.mrb[0].mxu0
  %v1794 = vadd.f32 %v1601, %v1793
  %v1795 = vpop.f32.mrb[0].mxu0
  %1796 = vmatprep.mubr.bf16.mxu0 0
  %1797 = vmatmul.mubr.bf16.gmra.mrb[0].mxu0 %v1679
  %v1798 = vpop.f32.mrb[0].mxu0
  %v1799 = vadd.f32 %v1606, %v1798
  %v1800 = vpop.f32.mrb[0].mxu0
  %v1801 = vpop.f32.mrb[0].mxu0
  %v1802 = vadd.f32 %v1609, %v1801
  %v1803 = vpop.f32.mrb[0].mxu0
  %1804 = vmatprep.mubr.bf16.mxu0 0
  %1805 = vmatmul.mubr.bf16.gmra.mrb[0].mxu0 %v1680
  %v1806 = vpop.f32.mrb[0].mxu0
  %v1807 = vadd.f32 %v1614, %v1806
  %v1808 = vpop.f32.mrb[0].mxu0
  %v1809 = vpop.f32.mrb[0].mxu0
  %v1810 = vadd.f32 %v1617, %v1809
  %v1811 = vpop.f32.mrb[0].mxu0
  %1812 = vmatprep.mubr.bf16.mxu0 0
  %1813 = vmatmul.mubr.bf16.gmra.mrb[0].mxu0 %v1681
  %v1814 = vpop.f32.mrb[0].mxu0
  %v1815 = vadd.f32 %v1622, %v1814
  %v1816 = vpop.f32.mrb[0].mxu0
  %v1817 = vpop.f32.mrb[0].mxu0
  %v1818 = vadd.f32 %v1625, %v1817
  %v1819 = vpop.f32.mrb[0].mxu0
  %1820 = vmatprep.mubr.bf16.mxu0 0
  %1821 = vmatmul.mubr.bf16.gmra.mrb[0].mxu0 %v1682
  %v1822 = vpop.f32.mrb[0].mxu0
  %v1823 = vadd.f32 %v1630, %v1822
  %v1824 = vpop.f32.mrb[0].mxu0
  %v1825 = vpop.f32.mrb[0].mxu0
  %v1826 = vadd.f32 %v1633, %v1825
  %v1827 = vpop.f32.mrb[0].mxu0
  %1828 = vmatprep.mubr.bf16.mxu0 0
  %1829 = vmatmul.mubr.bf16.gmra.mrb[0].mxu0 %v1683
  %v1830 = vpop.f32.mrb[0].mxu0
  %v1831 = vadd.f32 %v1638, %v1830
  %v1832 = vpop.f32.mrb[0].mxu0
  %v1833 = vpop.f32.mrb[0].mxu0
  %v1834 = vadd.f32 %v1641, %v1833
  %v1835 = vpop.f32.mrb[0].mxu0
  %1836 = vdwg.mxu0
  %v1837 = vld [vmem:[%s7] sm:$0x1]
  %v1839 = vlaneseq
  %v1840 = vshrl.u32 %v1839, 7
  %v1841 = vsub.s32 0, %v1840
  %v1842 = vrot.slane %v1837, %v1841
  %v1844 = vadd.f32 %v1775, %v1842
  %v1845 = vadd.f32 %v1778, %v1842
  %v1846 = vadd.f32 %v1783, %v1842
  %v1847 = vadd.f32 %v1786, %v1842
  %v1848 = vadd.f32 %v1791, %v1842
  %v1849 = vadd.f32 %v1794, %v1842
  %v1850 = vadd.f32 %v1799, %v1842
  %v1851 = vadd.f32 %v1802, %v1842
  %v1852 = vadd.f32 %v1807, %v1842
  %v1853 = vadd.f32 %v1810, %v1842
  %v1854 = vadd.f32 %v1815, %v1842
  %v1855 = vadd.f32 %v1818, %v1842
  %v1856 = vadd.f32 %v1823, %v1842
  %v1857 = vadd.f32 %v1826, %v1842
  %v1858 = vadd.f32 %v1831, %v1842
  %v1859 = vadd.f32 %v1834, %v1842
  %v1860 = vmax.f32 %v1844, 0.0
  %v1861 = vmax.f32 %v1845, 0.0
  %v1862 = vmax.f32 %v1846, 0.0
  %v1863 = vmax.f32 %v1847, 0.0
  %v1864 = vmax.f32 %v1848, 0.0
  %v1865 = vmax.f32 %v1849, 0.0
  %v1866 = vmax.f32 %v1850, 0.0
  %v1867 = vmax.f32 %v1851, 0.0
  %v1868 = vmax.f32 %v1852, 0.0
  %v1869 = vmax.f32 %v1853, 0.0
  %v1870 = vmax.f32 %v1854, 0.0
  %v1871 = vmax.f32 %v1855, 0.0
  %v1872 = vmax.f32 %v1856, 0.0
  %v1873 = vmax.f32 %v1857, 0.0
  %v1874 = vmax.f32 %v1858, 0.0
  %v1875 = vmax.f32 %v1859, 0.0
  %v1876 = vmul.f32 %v1860, %v1860
  %v1877 = vmul.f32 %v1861, %v1861
  %v1878 = vmul.f32 %v1862, %v1862
  %v1879 = vmul.f32 %v1863, %v1863
  %v1880 = vmul.f32 %v1864, %v1864
  %v1881 = vmul.f32 %v1865, %v1865
  %v1882 = vmul.f32 %v1866, %v1866
  %v1883 = vmul.f32 %v1867, %v1867
  %v1884 = vmul.f32 %v1868, %v1868
  %v1885 = vmul.f32 %v1869, %v1869
  %v1886 = vmul.f32 %v1870, %v1870
  %v1887 = vmul.f32 %v1871, %v1871
  %v1888 = vmul.f32 %v1872, %v1872
  %v1889 = vmul.f32 %v1873, %v1873
  %v1890 = vmul.f32 %v1874, %v1874
  %v1891 = vmul.f32 %v1875, %v1875
  %1892 = vadd.xlane.f32.xlu0 %v1876
  %v1893 = vpop.xlane.xlu0 %1892
  %1894 = vadd.xlane.f32.xlu0 %v1877
  %v1895 = vpop.xlane.xlu0 %1894
  %1896 = vadd.xlane.f32.xlu0 %v1878
  %v1897 = vpop.xlane.xlu0 %1896
  %1898 = vadd.xlane.f32.xlu0 %v1879
  %v1899 = vpop.xlane.xlu0 %1898
  %1900 = vadd.xlane.f32.xlu0 %v1880
  %v1901 = vpop.xlane.xlu0 %1900
  %1902 = vadd.xlane.f32.xlu0 %v1881
  %v1903 = vpop.xlane.xlu0 %1902
  %1904 = vadd.xlane.f32.xlu0 %v1882
  %v1905 = vpop.xlane.xlu0 %1904
  %1906 = vadd.xlane.f32.xlu0 %v1883
  %v1907 = vpop.xlane.xlu0 %1906
  %1908 = vadd.xlane.f32.xlu0 %v1884
  %v1909 = vpop.xlane.xlu0 %1908
  %1910 = vadd.xlane.f32.xlu0 %v1885
  %v1911 = vpop.xlane.xlu0 %1910
  %1912 = vadd.xlane.f32.xlu0 %v1886
  %v1913 = vpop.xlane.xlu0 %1912
  %1914 = vadd.xlane.f32.xlu0 %v1887
  %v1915 = vpop.xlane.xlu0 %1914
  %1916 = vadd.xlane.f32.xlu0 %v1888
  %v1917 = vpop.xlane.xlu0 %1916
  %1918 = vadd.xlane.f32.xlu0 %v1889
  %v1919 = vpop.xlane.xlu0 %1918
  %1920 = vadd.xlane.f32.xlu0 %v1890
  %v1921 = vpop.xlane.xlu0 %1920
  %1922 = vadd.xlane.f32.xlu0 %v1891
  %v1923 = vpop.xlane.xlu0 %1922
  %v1924 = vmax.f32 %v1893, 1e-24
  %v1925 = vmax.f32 %v1895, 1e-24
  %v1926 = vmax.f32 %v1897, 1e-24
  %v1927 = vmax.f32 %v1899, 1e-24
  %v1928 = vmax.f32 %v1901, 1e-24
  %v1929 = vmax.f32 %v1903, 1e-24
  %v1930 = vmax.f32 %v1905, 1e-24
  %v1931 = vmax.f32 %v1907, 1e-24
  %v1932 = vmax.f32 %v1909, 1e-24
  %v1933 = vmax.f32 %v1911, 1e-24
  %v1934 = vmax.f32 %v1913, 1e-24
  %v1935 = vmax.f32 %v1915, 1e-24
  %v1936 = vmax.f32 %v1917, 1e-24
  %v1937 = vmax.f32 %v1919, 1e-24
  %v1938 = vmax.f32 %v1921, 1e-24
  %v1939 = vmax.f32 %v1923, 1e-24
  %v1940 = vrsqrt.pop %v1924
  %v1941 = vrsqrt.pop %v1925
  %v1942 = vrsqrt.pop %v1926
  %v1943 = vrsqrt.pop %v1927
  %v1944 = vrsqrt.pop %v1928
  %v1945 = vrsqrt.pop %v1929
  %v1946 = vrsqrt.pop %v1930
  %v1947 = vrsqrt.pop %v1931
  %v1948 = vrsqrt.pop %v1932
  %v1949 = vrsqrt.pop %v1933
  %v1950 = vrsqrt.pop %v1934
  %v1951 = vrsqrt.pop %v1935
  %v1952 = vrsqrt.pop %v1936
  %v1953 = vrsqrt.pop %v1937
  %v1954 = vrsqrt.pop %v1938
  %v1955 = vrsqrt.pop %v1939
  %v1956 = vmul.f32 %v1860, %v1940
  %v1957 = vmul.f32 %v1861, %v1941
  %v1958 = vmul.f32 %v1862, %v1942
  %v1959 = vmul.f32 %v1863, %v1943
  %v1960 = vmul.f32 %v1864, %v1944
  %v1961 = vmul.f32 %v1865, %v1945
  %v1962 = vmul.f32 %v1866, %v1946
  %v1963 = vmul.f32 %v1867, %v1947
  %v1964 = vmul.f32 %v1868, %v1948
  %v1965 = vmul.f32 %v1869, %v1949
  %v1966 = vmul.f32 %v1870, %v1950
  %v1967 = vmul.f32 %v1871, %v1951
  %v1968 = vmul.f32 %v1872, %v1952
  %v1969 = vmul.f32 %v1873, %v1953
  %v1970 = vmul.f32 %v1874, %v1954
  %v1971 = vmul.f32 %v1875, %v1955
  %1972 = vst [vmem:[%s8] sm:$0xff] %v1956
  %1973 = vst [vmem:[%s8 + $0x8] sm:$0xff] %v1957
  %1974 = vst [vmem:[%s8 + $0x10] sm:$0xff] %v1958
  %1975 = vst [vmem:[%s8 + $0x18] sm:$0xff] %v1959
  %1976 = vst [vmem:[%s8 + $0x20] sm:$0xff] %v1960
  %1977 = vst [vmem:[%s8 + $0x28] sm:$0xff] %v1961
  %1978 = vst [vmem:[%s8 + $0x30] sm:$0xff] %v1962
  %1979 = vst [vmem:[%s8 + $0x38] sm:$0xff] %v1963
  %1980 = vst [vmem:[%s8 + $0x40] sm:$0xff] %v1964
  %1981 = vst [vmem:[%s8 + $0x48] sm:$0xff] %v1965
  %1982 = vst [vmem:[%s8 + $0x50] sm:$0xff] %v1966
  %1983 = vst [vmem:[%s8 + $0x58] sm:$0xff] %v1967
  %1984 = vst [vmem:[%s8 + $0x60] sm:$0xff] %v1968
  %1985 = vst [vmem:[%s8 + $0x68] sm:$0xff] %v1969
  %1986 = vst [vmem:[%s8 + $0x70] sm:$0xff] %v1970
  %1987 = vst [vmem:[%s8 + $0x78] sm:$0xff] %v1971
  // Predicated region
  $region34: #{het_agg_forward.3} parent=0 // pred_check
    _
  $region35: #{het_agg_forward.3} parent=0 // pred_check_branch
    %1989 = sbr.rel (0) target = $region37
  $region36: #{het_agg_forward.3} parent=0 // pred_region
    _
  $region37: #{het_agg_forward.3} parent=0 // pred_fallthru
    _
  // Predicated region
  $region38: #{het_agg_forward.3} parent=0 // pred_check
    _
  $region39: #{het_agg_forward.3} parent=0 // pred_check_branch
    %1991 = sbr.rel (0) target = $region41
  $region40: #{het_agg_forward.3} parent=0 // pred_region
    _
  $region41: #{het_agg_forward.3} parent=0 // pred_fallthru
    _

// kernel: het_agg_forward.2
$region0: #{het_agg_forward.2}
  #allocation0 [shape = 'u32[]', space=smem, size = 0x4, offset = 0x4, fixed_abs, tag = 'smem constant byte address 0x4 - core index']
  #allocation1 [shape = 'u32[144,128]{1,0:T(1,128)}', space=vmem, size = 0x12000, scoped, tag = 'internal scratch']
  %s0 = inlined_call_operand.vmem [shape: bf16[3,128,128], index: 0, kind: input, shape index: {}]
  %s1 = inlined_call_operand.vmem [shape: bf16[3,128,128], index: 1, kind: input, shape index: {}]
  %s2 = inlined_call_operand.vmem [shape: f32[3,1,128], index: 2, kind: input, shape index: {}]
  %s3 = inlined_call_operand.vmem [shape: bf16[3,128,128], index: 3, kind: output, shape index: {}]
  %s4 = sld [smem:[#allocation0]]
  $region45: #{het_agg_forward.2} parent=0
    _
  %s6 = ssub.s32 1, %s4
  %s7 = scalar_select 0, %s6, %s4
  loop: start=0, step=1, limit=5
  $region2: #{het_agg_forward.2} parent=0 // loop_pre_header
    _
  $region3: #{het_agg_forward.2} parent=0 // loop_header
    %s9 = sphi 0, %s13
    %p10 = scmp.ge.s32.totalorder %s9, 5
    %s19 = sphi 0, %s21
    %s22 = sphi 0, %s19
    %s23 = sphi 0, %s22
    %s39 = sphi 0, %s23
    %s45 = sphi 0, %s47
    %s48 = sphi 0, %s45
    %s49 = sphi 0, %s48
    %s65 = sphi 0, %s49
    %s71 = sphi 0, %s73
    %s74 = sphi 0, %s71
    %s75 = sphi 0, %s74
    %s91 = sphi 0, %s75
    %s97 = sphi 0, %s99
    %s100 = sphi 0, %s97
    %s101 = sphi 0, %s100
    %s117 = sphi 0, %s101
  $region4: #{het_agg_forward.2} parent=0 // loop_header_branch
    %12 = sbr.rel (%p10) target = $region8
  $region5: #{het_agg_forward.2} parent=0 // loop_body
    %s14 = ssub.s32 %s9, 1
    %s15 = ssub.s32 %s9, 2
    %s16 = sadd.s32 %s9, 1
    %s17 = ssub.s32 %s9, %s16
    %p18 = scmp.eq.s32.totalorder %s17, 0
    %s20 = sadd.s32 %s19, 1
    %s21 = scalar_select %p18, %s19, %s20
    %p24 = pneg %p18
    %p25 = scmp.eq.s32.totalorder %s9, 2
    %p26 = por %p24, %p25
    %p27 = scmp.ne.s32.totalorder %s19, %s22
    %p28 = scmp.eq.s32.totalorder %s9, 0
    %p29 = por %p27, %p28
    %p30 = scmp.ne.s32.totalorder %s19, %s22
    %p31 = scmp.eq.s32.totalorder %s14, 2
    %p32 = por %p30, %p31
    %p33 = scmp.ne.s32.totalorder %s22, %s23
    %p34 = scmp.eq.s32.totalorder %s14, 0
    %p35 = por %p33, %p34
    %p36 = scmp.ne.s32.totalorder %s22, %s23
    %p37 = scmp.eq.s32.totalorder %s15, 2
    %p38 = por %p36, %p37
    %p40 = scmp.ne.s32.totalorder %s23, %s39
    %p41 = scmp.eq.s32.totalorder %s15, 0
    %p42 = por %p40, %p41
    %s43 = ssub.s32 %s9, %s16
    %p44 = scmp.eq.s32.totalorder %s43, 0
    %s46 = sadd.s32 %s45, 1
    %s47 = scalar_select %p44, %s45, %s46
    %p50 = pneg %p44
    %p51 = scmp.eq.s32.totalorder %s9, 2
    %p52 = por %p50, %p51
    %p53 = scmp.ne.s32.totalorder %s45, %s48
    %p54 = scmp.eq.s32.totalorder %s9, 0
    %p55 = por %p53, %p54
    %p56 = scmp.ne.s32.totalorder %s45, %s48
    %p57 = scmp.eq.s32.totalorder %s14, 2
    %p58 = por %p56, %p57
    %p59 = scmp.ne.s32.totalorder %s48, %s49
    %p60 = scmp.eq.s32.totalorder %s14, 0
    %p61 = por %p59, %p60
    %p62 = scmp.ne.s32.totalorder %s48, %s49
    %p63 = scmp.eq.s32.totalorder %s15, 2
    %p64 = por %p62, %p63
    %p66 = scmp.ne.s32.totalorder %s49, %s65
    %p67 = scmp.eq.s32.totalorder %s15, 0
    %p68 = por %p66, %p67
    %s69 = ssub.s32 %s9, %s16
    %p70 = scmp.eq.s32.totalorder %s69, 0
    %s72 = sadd.s32 %s71, 1
    %s73 = scalar_select %p70, %s71, %s72
    %p76 = pneg %p70
    %p77 = scmp.eq.s32.totalorder %s9, 2
    %p78 = por %p76, %p77
    %p79 = scmp.ne.s32.totalorder %s71, %s74
    %p80 = scmp.eq.s32.totalorder %s9, 0
    %p81 = por %p79, %p80
    %p82 = scmp.ne.s32.totalorder %s71, %s74
    %p83 = scmp.eq.s32.totalorder %s14, 2
    %p84 = por %p82, %p83
    %p85 = scmp.ne.s32.totalorder %s74, %s75
    %p86 = scmp.eq.s32.totalorder %s14, 0
    %p87 = por %p85, %p86
    %p88 = scmp.ne.s32.totalorder %s74, %s75
    %p89 = scmp.eq.s32.totalorder %s15, 2
    %p90 = por %p88, %p89
    %p92 = scmp.ne.s32.totalorder %s75, %s91
    %p93 = scmp.eq.s32.totalorder %s15, 0
    %p94 = por %p92, %p93
    %s95 = ssub.s32 %s9, %s16
    %p96 = scmp.eq.s32.totalorder %s95, 0
    %s98 = sadd.s32 %s97, 1
    %s99 = scalar_select %p96, %s97, %s98
    %p102 = pneg %p96
    %p103 = scmp.eq.s32.totalorder %s9, 2
    %p104 = por %p102, %p103
    %p105 = scmp.ne.s32.totalorder %s97, %s100
    %p106 = scmp.eq.s32.totalorder %s9, 0
    %p107 = por %p105, %p106
    %p108 = scmp.ne.s32.totalorder %s97, %s100
    %p109 = scmp.eq.s32.totalorder %s14, 2
    %p110 = por %p108, %p109
    %p111 = scmp.ne.s32.totalorder %s100, %s101
    %p112 = scmp.eq.s32.totalorder %s14, 0
    %p113 = por %p111, %p112
    %p114 = scmp.ne.s32.totalorder %s100, %s101
    %p115 = scmp.eq.s32.totalorder %s15, 2
    %p116 = por %p114, %p115
    %p118 = scmp.ne.s32.totalorder %s101, %s117
    %p119 = scmp.eq.s32.totalorder %s15, 0
    %p120 = por %p118, %p119
    %p121 = scmp.le.s32.totalorder 1, %s9
    %p122 = scmp.lt.s32.totalorder %s9, 4
    %p123 = pnand %p121, %p122
    %p124 = pneg %p123
    // Predicated region
    $region9: #{het_agg_forward.2} parent=5 // pred_check
      _
    $region10: #{het_agg_forward.2} parent=5 // pred_check_branch
      %126 = sbr.rel (%p123) target = $region12
    $region11: #{het_agg_forward.2} parent=5 // pred_region
      %s127 = ssub.s32 %s9, 1
    $region12: #{het_agg_forward.2} parent=5 // pred_fallthru
      _
    %p128 = scmp.lt.s32.totalorder %s9, 3
    // Predicated region
    $region13: #{het_agg_forward.2} parent=5 // pred_check
      %p129 = pneg %p128
    $region14: #{het_agg_forward.2} parent=5 // pred_check_branch
      %131 = sbr.rel (%p129) target = $region16
    $region15: #{het_agg_forward.2} parent=5 // pred_region
      // Predicated region
      $region17: #{het_agg_forward.2} parent=15 // pred_check
        %p132 = pneg %p29
      $region18: #{het_agg_forward.2} parent=15 // pred_check_branch
        %134 = sbr.rel (%p132) target = $region20
      $region19: #{het_agg_forward.2} parent=15 // pred_region
        %p135 = scmp.lt.s32.totalorder %s9, 2
        %s136 = scalar_select %p135, %s9, 2
        %s137 = smul.addr %s136, 16
        %s138 = smul.addr %s137, 4
        %s139 = scalar_lea.vmem %s0, %s138
      $region20: #{het_agg_forward.2} parent=15 // pred_fallthru
        _
      // Predicated region
      $region21: #{het_agg_forward.2} parent=15 // pred_check
        %p140 = pneg %p55
      $region22: #{het_agg_forward.2} parent=15 // pred_check_branch
        %142 = sbr.rel (%p140) target = $region24
      $region23: #{het_agg_forward.2} parent=15 // pred_region
        %p143 = scmp.lt.s32.totalorder %s9, 2
        %s144 = scalar_select %p143, %s9, 2
        %s145 = smul.addr %s144, 16
        %s146 = smul.addr %s145, 4
        %s147 = scalar_lea.vmem %s1, %s146
      $region24: #{het_agg_forward.2} parent=15 // pred_fallthru
        _
      // Predicated region
      $region25: #{het_agg_forward.2} parent=15 // pred_check
        %p148 = pneg %p81
      $region26: #{het_agg_forward.2} parent=15 // pred_check_branch
        %150 = sbr.rel (%p148) target = $region28
      $region27: #{het_agg_forward.2} parent=15 // pred_region
        %p151 = scmp.lt.s32.totalorder %s9, 2
        %s152 = scalar_select %p151, %s9, 2
        %s153 = scalar_lea.vmem %s2, %s152
      $region28: #{het_agg_forward.2} parent=15 // pred_fallthru
        _
    $region16: #{het_agg_forward.2} parent=5 // pred_fallthru
      _
    %p154 = scmp.le.s32.totalorder 1, %s9
    %p155 = scmp.lt.s32.totalorder %s9, 4
    %p156 = pnand %p154, %p155
    %p157 = pneg %p156
    // Predicated region
    $region29: #{het_agg_forward.2} parent=5 // pred_check
      _
    $region30: #{het_agg_forward.2} parent=5 // pred_check_branch
      %159 = sbr.rel (%p156) target = $region32
    $region31: #{het_agg_forward.2} parent=5 // pred_region
      %s160 = ssub.s32 %s9, 1
      %p161 = scmp.lt.s32.totalorder %s14, 2
      %s162 = scalar_select %p161, %s14, 2
      %s163 = smul.addr %s162, 16
      %s164 = smul.addr %s163, 4
      %s165 = scalar_lea.vmem %s0, %s164
      %p166 = pneg %p35
      %p167 = pneg %p32
      %p168 = scmp.lt.s32.totalorder %s14, 2
      %s169 = scalar_select %p168, %s14, 2
      %s170 = smul.addr %s169, 16
      %s171 = smul.addr %s170, 4
      %s172 = scalar_lea.vmem %s1, %s171
      %p173 = pneg %p61
      %p174 = pneg %p58
      %p175 = scmp.lt.s32.totalorder %s14, 2
      %s176 = scalar_select %p175, %s14, 2
      %s177 = scalar_lea.vmem %s2, %s176
      %p178 = pneg %p87
      %p179 = pneg %p84
      %p180 = pneg %p113
      %p181 = pneg %p110
      %p182 = scmp.lt.s32.totalorder %s14, 2
      %s183 = scalar_select %p182, %s14, 2
      %s184 = smul.addr %s183, 16
      %s185 = smul.addr %s184, 4
      %s186 = scalar_lea.vmem %s3, %s185
      %p187 = scmp.lt.s32.totalorder %s14, 2
      %s188 = scalar_select %p187, %s14, 2
      %s189 = smul.addr %s188, 16
      %s190 = smul.addr %s189, 4
      %s191 = scalar_lea.vmem %s0, %s190
      %p192 = scmp.lt.s32.totalorder %s14, 2
      %s193 = scalar_select %p192, %s14, 2
      %s194 = smul.addr %s193, 16
      %s195 = smul.addr %s194, 4
      %s196 = scalar_lea.vmem %s1, %s195
      %p197 = scmp.lt.s32.totalorder %s14, 2
      %s198 = scalar_select %p197, %s14, 2
      %s199 = scalar_lea.vmem %s2, %s198
      %p200 = scmp.lt.s32.totalorder %s14, 2
      %s201 = scalar_select %p200, %s14, 2
      %s202 = smul.addr %s201, 16
      %s203 = smul.addr %s202, 4
      %s204 = scalar_lea.vmem %s3, %s203
      %v206 = vld [vmem:[%s191] sm:$0xf]
      %v207 = vld [vmem:[%s191 + $0x4] sm:$0xf]
      %v208 = vld [vmem:[%s191 + $0x8] sm:$0xf]
      %v209 = vld [vmem:[%s191 + $0xc] sm:$0xf]
      %v210 = vld [vmem:[%s191 + $0x10] sm:$0xf]
      %v211 = vld [vmem:[%s191 + $0x14] sm:$0xf]
      %v212 = vld [vmem:[%s191 + $0x18] sm:$0xf]
      %v213 = vld [vmem:[%s191 + $0x1c] sm:$0xf]
      %v214 = vld [vmem:[%s191 + $0x20] sm:$0xf]
      %v215 = vld [vmem:[%s191 + $0x24] sm:$0xf]
      %v216 = vld [vmem:[%s191 + $0x28] sm:$0xf]
      %v217 = vld [vmem:[%s191 + $0x2c] sm:$0xf]
      %v218 = vld [vmem:[%s191 + $0x30] sm:$0xf]
      %v219 = vld [vmem:[%s191 + $0x34] sm:$0xf]
      %v220 = vld [vmem:[%s191 + $0x38] sm:$0xf]
      %v221 = vld [vmem:[%s191 + $0x3c] sm:$0xf]
      %v222 = vld [vmem:[%s196] sm:$0xf]
      %v223 = vld [vmem:[%s196 + $0x4] sm:$0xf]
      %v224 = vld [vmem:[%s196 + $0x8] sm:$0xf]
      %v225 = vld [vmem:[%s196 + $0xc] sm:$0xf]
      %v226 = vld [vmem:[%s196 + $0x10] sm:$0xf]
      %v227 = vld [vmem:[%s196 + $0x14] sm:$0xf]
      %v228 = vld [vmem:[%s196 + $0x18] sm:$0xf]
      %v229 = vld [vmem:[%s196 + $0x1c] sm:$0xf]
      %v230 = vld [vmem:[%s196 + $0x20] sm:$0xf]
      %v231 = vld [vmem:[%s196 + $0x24] sm:$0xf]
      %v232 = vld [vmem:[%s196 + $0x28] sm:$0xf]
      %v233 = vld [vmem:[%s196 + $0x2c] sm:$0xf]
      %v234 = vld [vmem:[%s196 + $0x30] sm:$0xf]
      %v235 = vld [vmem:[%s196 + $0x34] sm:$0xf]
      %v236 = vld [vmem:[%s196 + $0x38] sm:$0xf]
      %v237 = vld [vmem:[%s196 + $0x3c] sm:$0xf]
      %v238 = vld [vmem:[%s199] sm:$0x1]
      %v240 = vlaneseq
      %v241 = vshrl.u32 %v240, 7
      %v242 = vsub.s32 0, %v241
      %v243 = vrot.slane %v238, %v242
      %v261 = vunpack.c.l.b16 %v206
      %v262 = vunpack.c.l.b16 %v207
      %v263 = vunpack.c.l.b16 %v208
      %v264 = vunpack.c.l.b16 %v209
      %v265 = vunpack.c.l.b16 %v210
      %v266 = vunpack.c.l.b16 %v211
      %v267 = vunpack.c.l.b16 %v212
      %v268 = vunpack.c.l.b16 %v213
      %v269 = vunpack.c.l.b16 %v214
      %v270 = vunpack.c.l.b16 %v215
      %v271 = vunpack.c.l.b16 %v216
      %v272 = vunpack.c.l.b16 %v217
      %v273 = vunpack.c.l.b16 %v218
      %v274 = vunpack.c.l.b16 %v219
      %v275 = vunpack.c.l.b16 %v220
      %v276 = vunpack.c.l.b16 %v221
      %v277 = vpack.c.b16 %v262, %v261
      %v278 = vpack.c.b16 %v264, %v263
      %v279 = vpack.c.b16 %v266, %v265
      %v280 = vpack.c.b16 %v268, %v267
      %v281 = vpack.c.b16 %v270, %v269
      %v282 = vpack.c.b16 %v272, %v271
      %v283 = vpack.c.b16 %v274, %v273
      %v284 = vpack.c.b16 %v276, %v275
      %v309 = vunpack.c.l.b16 %v222
      %v310 = vunpack.c.l.b16 %v223
      %v311 = vunpack.c.l.b16 %v224
      %v312 = vunpack.c.l.b16 %v225
      %v313 = vunpack.c.l.b16 %v226
      %v314 = vunpack.c.l.b16 %v227
      %v315 = vunpack.c.l.b16 %v228
      %v316 = vunpack.c.l.b16 %v229
      %v317 = vunpack.c.l.b16 %v230
      %v318 = vunpack.c.l.b16 %v231
      %v319 = vunpack.c.l.b16 %v232
      %v320 = vunpack.c.l.b16 %v233
      %v321 = vunpack.c.l.b16 %v234
      %v322 = vunpack.c.l.b16 %v235
      %v323 = vunpack.c.l.b16 %v236
      %v324 = vunpack.c.l.b16 %v237
      %v325 = vpack.c.b16 %v310, %v309
      %v326 = vpack.c.b16 %v312, %v311
      %v327 = vpack.c.b16 %v314, %v313
      %v328 = vpack.c.b16 %v316, %v315
      %v329 = vpack.c.b16 %v318, %v317
      %v330 = vpack.c.b16 %v320, %v319
      %v331 = vpack.c.b16 %v322, %v321
      %v332 = vpack.c.b16 %v324, %v323
      %341 = vmatprep.subr.bf16.mxu0 0
      %342 = vmatpush1.bf16.msra.mxu0 %v325
      %343 = vmatprep.subr.bf16.mxu0 0
      %344 = vmatpush1.bf16.msra.mxu0 %v326
      %345 = vmatprep.subr.bf16.mxu0 0
      %346 = vmatpush1.bf16.msra.mxu0 %v327
      %347 = vmatprep.subr.bf16.mxu0 0
      %348 = vmatpush1.bf16.msra.mxu0 %v328
      %349 = vmatprep.subr.bf16.mxu0 0
      %350 = vmatpush1.bf16.msra.mxu0 %v329
      %351 = vmatprep.subr.bf16.mxu0 0
      %352 = vmatpush1.bf16.msra.mxu0 %v330
      %353 = vmatprep.subr.bf16.mxu0 0
      %354 = vmatpush1.bf16.msra.mxu0 %v331
      %355 = vmatprep.subr.bf16.mxu0 0
      %356 = vmatpush1.bf16.msra.mxu0 %v332
      %357 = vmatprep.subr.bf16.mxu0 0
      %358 = vmatpush1.bf16.msra.mxu0 0
      %359 = vmatprep.subr.bf16.mxu0 0
      %360 = vmatpush1.bf16.msra.mxu0 0
      %361 = vmatprep.subr.bf16.mxu0 0
      %362 = vmatpush1.bf16.msra.mxu0 0
      %363 = vmatprep.subr.bf16.mxu0 0
      %364 = vmatpush1.bf16.msra.mxu0 0
      %365 = vmatprep.subr.bf16.mxu0 0
      %366 = vmatpush1.bf16.msra.mxu0 0
      %367 = vmatprep.subr.bf16.mxu0 0
      %368 = vmatpush1.bf16.msra.mxu0 0
      %369 = vmatprep.subr.bf16.mxu0 0
      %370 = vmatpush1.bf16.msra.mxu0 0
      %371 = vmatprep.subr.bf16.mxu0 0
      %372 = vmatpush1.bf16.msra.mxu0 0
      %373 = vmatprep.mubr.bf16.mxu0 0
      %374 = vmatmul.mubr.bf16.gmra.mrb[0].mxu0 %v277
      %v375 = vpop.f32.mrb[0].mxu0
      %v376 = vadd.f32 %v243, %v375
      %v377 = vpop.f32.mrb[0].mxu0
      %v378 = vpop.f32.mrb[0].mxu0
      %v379 = vadd.f32 %v243, %v378
      %v380 = vpop.f32.mrb[0].mxu0
      %381 = vmatprep.mubr.bf16.mxu0 0
      %382 = vmatmul.mubr.bf16.gmra.mrb[0].mxu0 %v278
      %v383 = vpop.f32.mrb[0].mxu0
      %v384 = vadd.f32 %v243, %v383
      %v385 = vpop.f32.mrb[0].mxu0
      %v386 = vpop.f32.mrb[0].mxu0
      %v387 = vadd.f32 %v243, %v386
      %v388 = vpop.f32.mrb[0].mxu0
      %389 = vmatprep.mubr.bf16.mxu0 0
      %390 = vmatmul.mubr.bf16.gmra.mrb[0].mxu0 %v279
      %v391 = vpop.f32.mrb[0].mxu0
      %v392 = vadd.f32 %v243, %v391
      %v393 = vpop.f32.mrb[0].mxu0
      %v394 = vpop.f32.mrb[0].mxu0
      %v395 = vadd.f32 %v243, %v394
      %v396 = vpop.f32.mrb[0].mxu0
      %397 = vmatprep.mubr.bf16.mxu0 0
      %398 = vmatmul.mubr.bf16.gmra.mrb[0].mxu0 %v280
      %v399 = vpop.f32.mrb[0].mxu0
      %v400 = vadd.f32 %v243, %v399
      %v401 = vpop.f32.mrb[0].mxu0
      %v402 = vpop.f32.mrb[0].mxu0
      %v403 = vadd.f32 %v243, %v402
      %v404 = vpop.f32.mrb[0].mxu0
      %405 = vmatprep.mubr.bf16.mxu0 0
      %406 = vmatmul.mubr.bf16.gmra.mrb[0].mxu0 %v281
      %v407 = vpop.f32.mrb[0].mxu0
      %v408 = vadd.f32 %v243, %v407
      %v409 = vpop.f32.mrb[0].mxu0
      %v410 = vpop.f32.mrb[0].mxu0
      %v411 = vadd.f32 %v243, %v410
      %v412 = vpop.f32.mrb[0].mxu0
      %413 = vmatprep.mubr.bf16.mxu0 0
      %414 = vmatmul.mubr.bf16.gmra.mrb[0].mxu0 %v282
      %v415 = vpop.f32.mrb[0].mxu0
      %v416 = vadd.f32 %v243, %v415
      %v417 = vpop.f32.mrb[0].mxu0
      %v418 = vpop.f32.mrb[0].mxu0
      %v419 = vadd.f32 %v243, %v418
      %v420 = vpop.f32.mrb[0].mxu0
      %421 = vmatprep.mubr.bf16.mxu0 0
      %422 = vmatmul.mubr.bf16.gmra.mrb[0].mxu0 %v283
      %v423 = vpop.f32.mrb[0].mxu0
      %v424 = vadd.f32 %v243, %v423
      %v425 = vpop.f32.mrb[0].mxu0
      %v426 = vpop.f32.mrb[0].mxu0
      %v427 = vadd.f32 %v243, %v426
      %v428 = vpop.f32.mrb[0].mxu0
      %429 = vmatprep.mubr.bf16.mxu0 0
      %430 = vmatmul.mubr.bf16.gmra.mrb[0].mxu0 %v284
      %v431 = vpop.f32.mrb[0].mxu0
      %v432 = vadd.f32 %v243, %v431
      %v433 = vpop.f32.mrb[0].mxu0
      %v434 = vpop.f32.mrb[0].mxu0
      %v435 = vadd.f32 %v243, %v434
      %v436 = vpop.f32.mrb[0].mxu0
      %437 = vdwg.mxu0
      %v438 = vmax.f32 %v376, 0.0
      %v439 = vmax.f32 %v379, 0.0
      %v440 = vmax.f32 %v384, 0.0
      %v441 = vmax.f32 %v387, 0.0
      %v442 = vmax.f32 %v392, 0.0
      %v443 = vmax.f32 %v395, 0.0
      %v444 = vmax.f32 %v400, 0.0
      %v445 = vmax.f32 %v403, 0.0
      %v446 = vmax.f32 %v408, 0.0
      %v447 = vmax.f32 %v411, 0.0
      %v448 = vmax.f32 %v416, 0.0
      %v449 = vmax.f32 %v419, 0.0
      %v450 = vmax.f32 %v424, 0.0
      %v451 = vmax.f32 %v427, 0.0
      %v452 = vmax.f32 %v432, 0.0
      %v453 = vmax.f32 %v435, 0.0
      %v454 = vpack.c.bf16 %v439, %v438
      %v455 = vpack.c.bf16 %v441, %v440
      %v456 = vpack.c.bf16 %v443, %v442
      %v457 = vpack.c.bf16 %v445, %v444
      %v458 = vpack.c.bf16 %v447, %v446
      %v459 = vpack.c.bf16 %v449, %v448
      %v460 = vpack.c.bf16 %v451, %v450
      %v461 = vpack.c.bf16 %v453, %v452
      %v470 = vunpack.c.l.b16 %v454
      %v471 = vunpack.c.h.b16 %v454
      %v472 = vunpack.c.l.b16 %v455
      %v473 = vunpack.c.h.b16 %v455
      %v474 = vunpack.c.l.b16 %v456
      %v475 = vunpack.c.h.b16 %v456
      %v476 = vunpack.c.l.b16 %v457
      %v477 = vunpack.c.h.b16 %v457
      %v478 = vunpack.c.l.b16 %v458
      %v479 = vunpack.c.h.b16 %v458
      %v480 = vunpack.c.l.b16 %v459
      %v481 = vunpack.c.h.b16 %v459
      %v482 = vunpack.c.l.b16 %v460
      %v483 = vunpack.c.h.b16 %v460
      %v484 = vunpack.c.l.b16 %v461
      %v485 = vunpack.c.h.b16 %v461
      %v486 = vpack.c.b16 %v470, %v470
      %v487 = vpack.c.b16 %v471, %v471
      %v488 = vpack.c.b16 %v472, %v472
      %v489 = vpack.c.b16 %v473, %v473
      %v490 = vpack.c.b16 %v474, %v474
      %v491 = vpack.c.b16 %v475, %v475
      %v492 = vpack.c.b16 %v476, %v476
      %v493 = vpack.c.b16 %v477, %v477
      %v494 = vpack.c.b16 %v478, %v478
      %v495 = vpack.c.b16 %v479, %v479
      %v496 = vpack.c.b16 %v480, %v480
      %v497 = vpack.c.b16 %v481, %v481
      %v498 = vpack.c.b16 %v482, %v482
      %v499 = vpack.c.b16 %v483, %v483
      %v500 = vpack.c.b16 %v484, %v484
      %v501 = vpack.c.b16 %v485, %v485
      %518 = vst [vmem:[%s204] sm:$0xf] %v486
      %519 = vst [vmem:[%s204 + $0x4] sm:$0xf] %v487
      %520 = vst [vmem:[%s204 + $0x8] sm:$0xf] %v488
      %521 = vst [vmem:[%s204 + $0xc] sm:$0xf] %v489
      %522 = vst [vmem:[%s204 + $0x10] sm:$0xf] %v490
      %523 = vst [vmem:[%s204 + $0x14] sm:$0xf] %v491
      %524 = vst [vmem:[%s204 + $0x18] sm:$0xf] %v492
      %525 = vst [vmem:[%s204 + $0x1c] sm:$0xf] %v493
      %526 = vst [vmem:[%s204 + $0x20] sm:$0xf] %v494
      %527 = vst [vmem:[%s204 + $0x24] sm:$0xf] %v495
      %528 = vst [vmem:[%s204 + $0x28] sm:$0xf] %v496
      %529 = vst [vmem:[%s204 + $0x2c] sm:$0xf] %v497
      %530 = vst [vmem:[%s204 + $0x30] sm:$0xf] %v498
      %531 = vst [vmem:[%s204 + $0x34] sm:$0xf] %v499
      %532 = vst [vmem:[%s204 + $0x38] sm:$0xf] %v500
      %533 = vst [vmem:[%s204 + $0x3c] sm:$0xf] %v501
      %p534 = scmp.lt.s32.totalorder %s14, 2
      %s535 = scalar_select %p534, %s14, 2
      %s536 = smul.addr %s535, 16
      %s537 = smul.addr %s536, 4
      %s538 = scalar_lea.vmem %s3, %s537
      // Predicated region
      $region33: #{het_agg_forward.2} parent=31 // pred_check
        %p539 = pneg %p110
      $region34: #{het_agg_forward.2} parent=31 // pred_check_branch
        %541 = sbr.rel (%p539) target = $region36
      $region35: #{het_agg_forward.2} parent=31 // pred_region
        _
      $region36: #{het_agg_forward.2} parent=31 // pred_fallthru
        _
    $region32: #{het_agg_forward.2} parent=5 // pred_fallthru
      _
    %p542 = scmp.le.s32.totalorder 2, %s9
    // Predicated region
    $region37: #{het_agg_forward.2} parent=5 // pred_check
      %p543 = pneg %p542
    $region38: #{het_agg_forward.2} parent=5 // pred_check_branch
      %545 = sbr.rel (%p543) target = $region40
    $region39: #{het_agg_forward.2} parent=5 // pred_region
      %s546 = ssub.s32 %s9, 2
      // Predicated region
      $region41: #{het_agg_forward.2} parent=39 // pred_check
        %p547 = pneg %p116
      $region42: #{het_agg_forward.2} parent=39 // pred_check_branch
        %549 = sbr.rel (%p547) target = $region44
      $region43: #{het_agg_forward.2} parent=39 // pred_region
        %p550 = scmp.lt.s32.totalorder %s15, 2
        %s551 = scalar_select %p550, %s15, 2
        %s552 = smul.addr %s551, 16
        %s553 = smul.addr %s552, 4
        %s554 = scalar_lea.vmem %s3, %s553
      $region44: #{het_agg_forward.2} parent=39 // pred_fallthru
        _
    $region40: #{het_agg_forward.2} parent=5 // pred_fallthru
      _
  $region6: #{het_agg_forward.2} parent=0 // loop_footer
    %s13 = sadd.s32 1, %s9
  $region7: #{het_agg_forward.2} parent=0 // loop_footer_branch
    %8 = sbr.rel target = $region3
  $region8: #{het_agg_forward.2} parent=0 // loop_exit
    _

// kernel: het_agg_forward.3
$region0: #{het_agg_forward.3}
  #allocation0 [shape = 'u32[]', space=smem, size = 0x4, offset = 0x4, fixed_abs, tag = 'smem constant byte address 0x4 - core index']
  #allocation1 [shape = 'u32[144,128]{1,0:T(1,128)}', space=vmem, size = 0x12000, scoped, tag = 'internal scratch']
  %s0 = inlined_call_operand.vmem [shape: bf16[3,128,128], index: 0, kind: input, shape index: {}]
  %s1 = inlined_call_operand.vmem [shape: bf16[3,128,128], index: 1, kind: input, shape index: {}]
  %s2 = inlined_call_operand.vmem [shape: bf16[128,128], index: 2, kind: input, shape index: {}]
  %s3 = inlined_call_operand.vmem [shape: f32[1,128], index: 3, kind: input, shape index: {}]
  %s4 = inlined_call_operand.vmem [shape: f32[1,128], index: 4, kind: input, shape index: {}]
  %s5 = inlined_call_operand.vmem [shape: bf16[128,128], index: 5, kind: input, shape index: {}]
  %s6 = inlined_call_operand.vmem [shape: bf16[128,128], index: 6, kind: input, shape index: {}]
  %s7 = inlined_call_operand.vmem [shape: f32[1,128], index: 7, kind: input, shape index: {}]
  %s8 = inlined_call_operand.vmem [shape: f32[128,128], index: 8, kind: output, shape index: {}]
  %s9 = sld [smem:[#allocation0]]
  $region42: #{het_agg_forward.3} parent=0
    _
  %s11 = ssub.s32 1, %s9
  %s12 = scalar_select 0, %s11, %s9
  // Predicated region
  $region2: #{het_agg_forward.3} parent=0 // pred_check
    _
  $region3: #{het_agg_forward.3} parent=0 // pred_check_branch
    %14 = sbr.rel (0) target = $region5
  $region4: #{het_agg_forward.3} parent=0 // pred_region
    _
  $region5: #{het_agg_forward.3} parent=0 // pred_fallthru
    _
  // Predicated region
  $region6: #{het_agg_forward.3} parent=0 // pred_check
    _
  $region7: #{het_agg_forward.3} parent=0 // pred_check_branch
    %16 = sbr.rel (0) target = $region9
  $region8: #{het_agg_forward.3} parent=0 // pred_region
    _
  $region9: #{het_agg_forward.3} parent=0 // pred_fallthru
    _
  // Predicated region
  $region10: #{het_agg_forward.3} parent=0 // pred_check
    _
  $region11: #{het_agg_forward.3} parent=0 // pred_check_branch
    %18 = sbr.rel (0) target = $region13
  $region12: #{het_agg_forward.3} parent=0 // pred_region
    _
  $region13: #{het_agg_forward.3} parent=0 // pred_fallthru
    _
  // Predicated region
  $region14: #{het_agg_forward.3} parent=0 // pred_check
    _
  $region15: #{het_agg_forward.3} parent=0 // pred_check_branch
    %20 = sbr.rel (0) target = $region17
  $region16: #{het_agg_forward.3} parent=0 // pred_region
    _
  $region17: #{het_agg_forward.3} parent=0 // pred_fallthru
    _
  // Predicated region
  $region18: #{het_agg_forward.3} parent=0 // pred_check
    _
  $region19: #{het_agg_forward.3} parent=0 // pred_check_branch
    %22 = sbr.rel (0) target = $region21
  $region20: #{het_agg_forward.3} parent=0 // pred_region
    _
  $region21: #{het_agg_forward.3} parent=0 // pred_fallthru
    _
  // Predicated region
  $region22: #{het_agg_forward.3} parent=0 // pred_check
    _
  $region23: #{het_agg_forward.3} parent=0 // pred_check_branch
    %24 = sbr.rel (0) target = $region25
  $region24: #{het_agg_forward.3} parent=0 // pred_region
    _
  $region25: #{het_agg_forward.3} parent=0 // pred_fallthru
    _
  // Predicated region
  $region26: #{het_agg_forward.3} parent=0 // pred_check
    _
  $region27: #{het_agg_forward.3} parent=0 // pred_check_branch
    %26 = sbr.rel (0) target = $region29
  $region28: #{het_agg_forward.3} parent=0 // pred_region
    _
  $region29: #{het_agg_forward.3} parent=0 // pred_fallthru
    _
  // Predicated region
  $region30: #{het_agg_forward.3} parent=0 // pred_check
    _
  $region31: #{het_agg_forward.3} parent=0 // pred_check_branch
    %28 = sbr.rel (0) target = $region33
  $region32: #{het_agg_forward.3} parent=0 // pred_region
    _
  $region33: #{het_agg_forward.3} parent=0 // pred_fallthru
    _
  %v30 = vld [vmem:[%s2] sm:$0xf]
  %v31 = vld [vmem:[%s2 + $0x4] sm:$0xf]
  %v32 = vld [vmem:[%s2 + $0x8] sm:$0xf]
  %v33 = vld [vmem:[%s2 + $0xc] sm:$0xf]
  %v34 = vld [vmem:[%s2 + $0x10] sm:$0xf]
  %v35 = vld [vmem:[%s2 + $0x14] sm:$0xf]
  %v36 = vld [vmem:[%s2 + $0x18] sm:$0xf]
  %v37 = vld [vmem:[%s2 + $0x1c] sm:$0xf]
  %v38 = vld [vmem:[%s2 + $0x20] sm:$0xf]
  %v39 = vld [vmem:[%s2 + $0x24] sm:$0xf]
  %v40 = vld [vmem:[%s2 + $0x28] sm:$0xf]
  %v41 = vld [vmem:[%s2 + $0x2c] sm:$0xf]
  %v42 = vld [vmem:[%s2 + $0x30] sm:$0xf]
  %v43 = vld [vmem:[%s2 + $0x34] sm:$0xf]
  %v44 = vld [vmem:[%s2 + $0x38] sm:$0xf]
  %v45 = vld [vmem:[%s2 + $0x3c] sm:$0xf]
  %v46 = vunpack.c.l.bf16 %v30
  %v47 = vunpack.c.l.bf16 %v31
  %v48 = vunpack.c.l.bf16 %v32
  %v49 = vunpack.c.l.bf16 %v33
  %v50 = vunpack.c.l.bf16 %v34
  %v51 = vunpack.c.l.bf16 %v35
  %v52 = vunpack.c.l.bf16 %v36
  %v53 = vunpack.c.l.bf16 %v37
  %v54 = vunpack.c.l.bf16 %v38
  %v55 = vunpack.c.l.bf16 %v39
  %v56 = vunpack.c.l.bf16 %v40
  %v57 = vunpack.c.l.bf16 %v41
  %v58 = vunpack.c.l.bf16 %v42
  %v59 = vunpack.c.l.bf16 %v43
  %v60 = vunpack.c.l.bf16 %v44
  %v61 = vunpack.c.l.bf16 %v45
  %v62 = vld [vmem:[%s3] sm:$0x1]
  %v63 = vld [vmem:[%s4] sm:$0x1]
  %v65 = vlaneseq
  %v66 = vshrl.u32 %v65, 7
  %v67 = vsub.s32 0, %v66
  %v68 = vrot.slane %v63, %v67
  %v70 = vmul.f32 %v46, %v68
  %v71 = vmul.f32 %v47, %v68
  %v72 = vmul.f32 %v48, %v68
  %v73 = vmul.f32 %v49, %v68
  %v74 = vmul.f32 %v50, %v68
  %v75 = vmul.f32 %v51, %v68
  %v76 = vmul.f32 %v52, %v68
  %v77 = vmul.f32 %v53, %v68
  %v78 = vmul.f32 %v54, %v68
  %v79 = vmul.f32 %v55, %v68
  %v80 = vmul.f32 %v56, %v68
  %v81 = vmul.f32 %v57, %v68
  %v82 = vmul.f32 %v58, %v68
  %v83 = vmul.f32 %v59, %v68
  %v84 = vmul.f32 %v60, %v68
  %v85 = vmul.f32 %v61, %v68
  %86 = vadd.xlane.f32.xlu0 %v70
  %v87 = vpop.xlane.xlu0 %86
  %88 = vadd.xlane.f32.xlu0 %v71
  %v89 = vpop.xlane.xlu0 %88
  %90 = vadd.xlane.f32.xlu0 %v72
  %v91 = vpop.xlane.xlu0 %90
  %92 = vadd.xlane.f32.xlu0 %v73
  %v93 = vpop.xlane.xlu0 %92
  %94 = vadd.xlane.f32.xlu0 %v74
  %v95 = vpop.xlane.xlu0 %94
  %96 = vadd.xlane.f32.xlu0 %v75
  %v97 = vpop.xlane.xlu0 %96
  %98 = vadd.xlane.f32.xlu0 %v76
  %v99 = vpop.xlane.xlu0 %98
  %100 = vadd.xlane.f32.xlu0 %v77
  %v101 = vpop.xlane.xlu0 %100
  %102 = vadd.xlane.f32.xlu0 %v78
  %v103 = vpop.xlane.xlu0 %102
  %104 = vadd.xlane.f32.xlu0 %v79
  %v105 = vpop.xlane.xlu0 %104
  %106 = vadd.xlane.f32.xlu0 %v80
  %v107 = vpop.xlane.xlu0 %106
  %108 = vadd.xlane.f32.xlu0 %v81
  %v109 = vpop.xlane.xlu0 %108
  %110 = vadd.xlane.f32.xlu0 %v82
  %v111 = vpop.xlane.xlu0 %110
  %112 = vadd.xlane.f32.xlu0 %v83
  %v113 = vpop.xlane.xlu0 %112
  %114 = vadd.xlane.f32.xlu0 %v84
  %v115 = vpop.xlane.xlu0 %114
  %116 = vadd.xlane.f32.xlu0 %v85
  %v117 = vpop.xlane.xlu0 %116
  %v118 = vld [vmem:[%s1] sm:$0xf]
  %v119 = vld [vmem:[%s1 + $0x4] sm:$0xf]
  %v120 = vld [vmem:[%s1 + $0x8] sm:$0xf]
  %v121 = vld [vmem:[%s1 + $0xc] sm:$0xf]
  %v122 = vld [vmem:[%s1 + $0x10] sm:$0xf]
  %v123 = vld [vmem:[%s1 + $0x14] sm:$0xf]
  %v124 = vld [vmem:[%s1 + $0x18] sm:$0xf]
  %v125 = vld [vmem:[%s1 + $0x1c] sm:$0xf]
  %v126 = vld [vmem:[%s1 + $0x20] sm:$0xf]
  %v127 = vld [vmem:[%s1 + $0x24] sm:$0xf]
  %v128 = vld [vmem:[%s1 + $0x28] sm:$0xf]
  %v129 = vld [vmem:[%s1 + $0x2c] sm:$0xf]
  %v130 = vld [vmem:[%s1 + $0x30] sm:$0xf]
  %v131 = vld [vmem:[%s1 + $0x34] sm:$0xf]
  %v132 = vld [vmem:[%s1 + $0x38] sm:$0xf]
  %v133 = vld [vmem:[%s1 + $0x3c] sm:$0xf]
  %v134 = vld [vmem:[%s0] sm:$0xf]
  %v135 = vld [vmem:[%s0 + $0x4] sm:$0xf]
  %v136 = vld [vmem:[%s0 + $0x8] sm:$0xf]
  %v137 = vld [vmem:[%s0 + $0xc] sm:$0xf]
  %v138 = vld [vmem:[%s0 + $0x10] sm:$0xf]
  %v139 = vld [vmem:[%s0 + $0x14] sm:$0xf]
  %v140 = vld [vmem:[%s0 + $0x18] sm:$0xf]
  %v141 = vld [vmem:[%s0 + $0x1c] sm:$0xf]
  %v142 = vld [vmem:[%s0 + $0x20] sm:$0xf]
  %v143 = vld [vmem:[%s0 + $0x24] sm:$0xf]
  %v144 = vld [vmem:[%s0 + $0x28] sm:$0xf]
  %v145 = vld [vmem:[%s0 + $0x2c] sm:$0xf]
  %v146 = vld [vmem:[%s0 + $0x30] sm:$0xf]
  %v147 = vld [vmem:[%s0 + $0x34] sm:$0xf]
  %v148 = vld [vmem:[%s0 + $0x38] sm:$0xf]
  %v149 = vld [vmem:[%s0 + $0x3c] sm:$0xf]
  %v166 = vunpack.c.l.b16 %v118
  %v167 = vunpack.c.l.b16 %v119
  %v168 = vunpack.c.l.b16 %v120
  %v169 = vunpack.c.l.b16 %v121
  %v170 = vunpack.c.l.b16 %v122
  %v171 = vunpack.c.l.b16 %v123
  %v172 = vunpack.c.l.b16 %v124
  %v173 = vunpack.c.l.b16 %v125
  %v174 = vunpack.c.l.b16 %v126
  %v175 = vunpack.c.l.b16 %v127
  %v176 = vunpack.c.l.b16 %v128
  %v177 = vunpack.c.l.b16 %v129
  %v178 = vunpack.c.l.b16 %v130
  %v179 = vunpack.c.l.b16 %v131
  %v180 = vunpack.c.l.b16 %v132
  %v181 = vunpack.c.l.b16 %v133
  %v182 = vpack.c.b16 %v167, %v166
  %v183 = vpack.c.b16 %v169, %v168
  %v184 = vpack.c.b16 %v171, %v170
  %v185 = vpack.c.b16 %v173, %v172
  %v186 = vpack.c.b16 %v175, %v174
  %v187 = vpack.c.b16 %v177, %v176
  %v188 = vpack.c.b16 %v179, %v178
  %v189 = vpack.c.b16 %v181, %v180
  %v214 = vunpack.c.l.b16 %v134
  %v215 = vunpack.c.l.b16 %v135
  %v216 = vunpack.c.l.b16 %v136
  %v217 = vunpack.c.l.b16 %v137
  %v218 = vunpack.c.l.b16 %v138
  %v219 = vunpack.c.l.b16 %v139
  %v220 = vunpack.c.l.b16 %v140
  %v221 = vunpack.c.l.b16 %v141
  %v222 = vunpack.c.l.b16 %v142
  %v223 = vunpack.c.l.b16 %v143
  %v224 = vunpack.c.l.b16 %v144
  %v225 = vunpack.c.l.b16 %v145
  %v226 = vunpack.c.l.b16 %v146
  %v227 = vunpack.c.l.b16 %v147
  %v228 = vunpack.c.l.b16 %v148
  %v229 = vunpack.c.l.b16 %v149
  %v230 = vpack.c.b16 %v215, %v214
  %v231 = vpack.c.b16 %v217, %v216
  %v232 = vpack.c.b16 %v219, %v218
  %v233 = vpack.c.b16 %v221, %v220
  %v234 = vpack.c.b16 %v223, %v222
  %v235 = vpack.c.b16 %v225, %v224
  %v236 = vpack.c.b16 %v227, %v226
  %v237 = vpack.c.b16 %v229, %v228
  %246 = vmatprep.subr.bf16.mxu0 0
  %247 = vmatpush1.bf16.msra.mxu0 %v230
  %248 = vmatprep.subr.bf16.mxu0 0
  %249 = vmatpush1.bf16.msra.mxu0 %v231
  %250 = vmatprep.subr.bf16.mxu0 0
  %251 = vmatpush1.bf16.msra.mxu0 %v232
  %252 = vmatprep.subr.bf16.mxu0 0
  %253 = vmatpush1.bf16.msra.mxu0 %v233
  %254 = vmatprep.subr.bf16.mxu0 0
  %255 = vmatpush1.bf16.msra.mxu0 %v234
  %256 = vmatprep.subr.bf16.mxu0 0
  %257 = vmatpush1.bf16.msra.mxu0 %v235
  %258 = vmatprep.subr.bf16.mxu0 0
  %259 = vmatpush1.bf16.msra.mxu0 %v236
  %260 = vmatprep.subr.bf16.mxu0 0
  %261 = vmatpush1.bf16.msra.mxu0 %v237
  %262 = vmatprep.subr.bf16.mxu0 0
  %263 = vmatpush1.bf16.msra.mxu0 0
  %264 = vmatprep.subr.bf16.mxu0 0
  %265 = vmatpush1.bf16.msra.mxu0 0
  %266 = vmatprep.subr.bf16.mxu0 0
  %267 = vmatpush1.bf16.msra.mxu0 0
  %268 = vmatprep.subr.bf16.mxu0 0
  %269 = vmatpush1.bf16.msra.mxu0 0
  %270 = vmatprep.subr.bf16.mxu0 0
  %271 = vmatpush1.bf16.msra.mxu0 0
  %272 = vmatprep.subr.bf16.mxu0 0
  %273 = vmatpush1.bf16.msra.mxu0 0
  %274 = vmatprep.subr.bf16.mxu0 0
  %275 = vmatpush1.bf16.msra.mxu0 0
  %276 = vmatprep.subr.bf16.mxu0 0
  %277 = vmatpush1.bf16.msra.mxu0 0
  %278 = vmatprep.mubr.bf16.mxu0 0
  %279 = vmatmul.mubr.bf16.gmra.mrb[0].mxu0 %v182
  %v280 = vpop.f32.mrb[0].mxu0
  %v281 = vadd.f32 0.0, %v280
  %v282 = vpop.f32.mrb[0].mxu0
  %v283 = vpop.f32.mrb[0].mxu0
  %v284 = vadd.f32 0.0, %v283
  %v285 = vpop.f32.mrb[0].mxu0
  %286 = vmatprep.mubr.bf16.mxu0 0
  %287 = vmatmul.mubr.bf16.gmra.mrb[0].mxu0 %v183
  %v288 = vpop.f32.mrb[0].mxu0
  %v289 = vadd.f32 0.0, %v288
  %v290 = vpop.f32.mrb[0].mxu0
  %v291 = vpop.f32.mrb[0].mxu0
  %v292 = vadd.f32 0.0, %v291
  %v293 = vpop.f32.mrb[0].mxu0
  %294 = vmatprep.mubr.bf16.mxu0 0
  %295 = vmatmul.mubr.bf16.gmra.mrb[0].mxu0 %v184
  %v296 = vpop.f32.mrb[0].mxu0
  %v297 = vadd.f32 0.0, %v296
  %v298 = vpop.f32.mrb[0].mxu0
  %v299 = vpop.f32.mrb[0].mxu0
  %v300 = vadd.f32 0.0, %v299
  %v301 = vpop.f32.mrb[0].mxu0
  %302 = vmatprep.mubr.bf16.mxu0 0
  %303 = vmatmul.mubr.bf16.gmra.mrb[0].mxu0 %v185
  %v304 = vpop.f32.mrb[0].mxu0
  %v305 = vadd.f32 0.0, %v304
  %v306 = vpop.f32.mrb[0].mxu0
  %v307 = vpop.f32.mrb[0].mxu0
  %v308 = vadd.f32 0.0, %v307
  %v309 = vpop.f32.mrb[0].mxu0
  %310 = vmatprep.mubr.bf16.mxu0 0
  %311 = vmatmul.mubr.bf16.gmra.mrb[0].mxu0 %v186
  %v312 = vpop.f32.mrb[0].mxu0
  %v313 = vadd.f32 0.0, %v312
  %v314 = vpop.f32.mrb[0].mxu0
  %v315 = vpop.f32.mrb[0].mxu0
  %v316 = vadd.f32 0.0, %v315
  %v317 = vpop.f32.mrb[0].mxu0
  %318 = vmatprep.mubr.bf16.mxu0 0
  %319 = vmatmul.mubr.bf16.gmra.mrb[0].mxu0 %v187
  %v320 = vpop.f32.mrb[0].mxu0
  %v321 = vadd.f32 0.0, %v320
  %v322 = vpop.f32.mrb[0].mxu0
  %v323 = vpop.f32.mrb[0].mxu0
  %v324 = vadd.f32 0.0, %v323
  %v325 = vpop.f32.mrb[0].mxu0
  %326 = vmatprep.mubr.bf16.mxu0 0
  %327 = vmatmul.mubr.bf16.gmra.mrb[0].mxu0 %v188
  %v328 = vpop.f32.mrb[0].mxu0
  %v329 = vadd.f32 0.0, %v328
  %v330 = vpop.f32.mrb[0].mxu0
  %v331 = vpop.f32.mrb[0].mxu0
  %v332 = vadd.f32 0.0, %v331
  %v333 = vpop.f32.mrb[0].mxu0
  %334 = vmatprep.mubr.bf16.mxu0 0
  %335 = vmatmul.mubr.bf16.gmra.mrb[0].mxu0 %v189
  %v336 = vpop.f32.mrb[0].mxu0
  %v337 = vadd.f32 0.0, %v336
  %v338 = vpop.f32.mrb[0].mxu0
  %v339 = vpop.f32.mrb[0].mxu0
  %v340 = vadd.f32 0.0, %v339
  %v341 = vpop.f32.mrb[0].mxu0
  %342 = vdwg.mxu0
  %v344 = vlaneseq
  %v345 = vshrl.u32 %v344, 7
  %v346 = vsub.s32 0, %v345
  %v347 = vrot.slane %v62, %v346
  %v349 = vmul.f32 %v281, %v347
  %v350 = vmul.f32 %v284, %v347
  %v351 = vmul.f32 %v289, %v347
  %v352 = vmul.f32 %v292, %v347
  %v353 = vmul.f32 %v297, %v347
  %v354 = vmul.f32 %v300, %v347
  %v355 = vmul.f32 %v305, %v347
  %v356 = vmul.f32 %v308, %v347
  %v357 = vmul.f32 %v313, %v347
  %v358 = vmul.f32 %v316, %v347
  %v359 = vmul.f32 %v321, %v347
  %v360 = vmul.f32 %v324, %v347
  %v361 = vmul.f32 %v329, %v347
  %v362 = vmul.f32 %v332, %v347
  %v363 = vmul.f32 %v337, %v347
  %v364 = vmul.f32 %v340, %v347
  %365 = vadd.xlane.f32.xlu0 %v349
  %v366 = vpop.xlane.xlu0 %365
  %367 = vadd.xlane.f32.xlu0 %v350
  %v368 = vpop.xlane.xlu0 %367
  %369 = vadd.xlane.f32.xlu0 %v351
  %v370 = vpop.xlane.xlu0 %369
  %371 = vadd.xlane.f32.xlu0 %v352
  %v372 = vpop.xlane.xlu0 %371
  %373 = vadd.xlane.f32.xlu0 %v353
  %v374 = vpop.xlane.xlu0 %373
  %375 = vadd.xlane.f32.xlu0 %v354
  %v376 = vpop.xlane.xlu0 %375
  %377 = vadd.xlane.f32.xlu0 %v355
  %v378 = vpop.xlane.xlu0 %377
  %379 = vadd.xlane.f32.xlu0 %v356
  %v380 = vpop.xlane.xlu0 %379
  %381 = vadd.xlane.f32.xlu0 %v357
  %v382 = vpop.xlane.xlu0 %381
  %383 = vadd.xlane.f32.xlu0 %v358
  %v384 = vpop.xlane.xlu0 %383
  %385 = vadd.xlane.f32.xlu0 %v359
  %v386 = vpop.xlane.xlu0 %385
  %387 = vadd.xlane.f32.xlu0 %v360
  %v388 = vpop.xlane.xlu0 %387
  %389 = vadd.xlane.f32.xlu0 %v361
  %v390 = vpop.xlane.xlu0 %389
  %391 = vadd.xlane.f32.xlu0 %v362
  %v392 = vpop.xlane.xlu0 %391
  %393 = vadd.xlane.f32.xlu0 %v363
  %v394 = vpop.xlane.xlu0 %393
  %395 = vadd.xlane.f32.xlu0 %v364
  %v396 = vpop.xlane.xlu0 %395
  %v397 = vadd.f32 %v366, %v87
  %v398 = vadd.f32 %v368, %v89
  %v399 = vadd.f32 %v370, %v91
  %v400 = vadd.f32 %v372, %v93
  %v401 = vadd.f32 %v374, %v95
  %v402 = vadd.f32 %v376, %v97
  %v403 = vadd.f32 %v378, %v99
  %v404 = vadd.f32 %v380, %v101
  %v405 = vadd.f32 %v382, %v103
  %v406 = vadd.f32 %v384, %v105
  %v407 = vadd.f32 %v386, %v107
  %v408 = vadd.f32 %v388, %v109
  %v409 = vadd.f32 %v390, %v111
  %v410 = vadd.f32 %v392, %v113
  %v411 = vadd.f32 %v394, %v115
  %v412 = vadd.f32 %v396, %v117
  %vm413 = vcmp.ge.f32.partialorder %v397, 0.0
  %vm414 = vcmp.ge.f32.partialorder %v398, 0.0
  %vm415 = vcmp.ge.f32.partialorder %v399, 0.0
  %vm416 = vcmp.ge.f32.partialorder %v400, 0.0
  %vm417 = vcmp.ge.f32.partialorder %v401, 0.0
  %vm418 = vcmp.ge.f32.partialorder %v402, 0.0
  %vm419 = vcmp.ge.f32.partialorder %v403, 0.0
  %vm420 = vcmp.ge.f32.partialorder %v404, 0.0
  %vm421 = vcmp.ge.f32.partialorder %v405, 0.0
  %vm422 = vcmp.ge.f32.partialorder %v406, 0.0
  %vm423 = vcmp.ge.f32.partialorder %v407, 0.0
  %vm424 = vcmp.ge.f32.partialorder %v408, 0.0
  %vm425 = vcmp.ge.f32.partialorder %v409, 0.0
  %vm426 = vcmp.ge.f32.partialorder %v410, 0.0
  %vm427 = vcmp.ge.f32.partialorder %v411, 0.0
  %vm428 = vcmp.ge.f32.partialorder %v412, 0.0
  %v429 = vmul.f32 %v397, 0.01
  %v430 = vmul.f32 %v398, 0.01
  %v431 = vmul.f32 %v399, 0.01
  %v432 = vmul.f32 %v400, 0.01
  %v433 = vmul.f32 %v401, 0.01
  %v434 = vmul.f32 %v402, 0.01
  %v435 = vmul.f32 %v403, 0.01
  %v436 = vmul.f32 %v404, 0.01
  %v437 = vmul.f32 %v405, 0.01
  %v438 = vmul.f32 %v406, 0.01
  %v439 = vmul.f32 %v407, 0.01
  %v440 = vmul.f32 %v408, 0.01
  %v441 = vmul.f32 %v409, 0.01
  %v442 = vmul.f32 %v410, 0.01
  %v443 = vmul.f32 %v411, 0.01
  %v444 = vmul.f32 %v412, 0.01
  %v445 = vsel %vm413, %v397, %v429
  %v446 = vsel %vm414, %v398, %v430
  %v447 = vsel %vm415, %v399, %v431
  %v448 = vsel %vm416, %v400, %v432
  %v449 = vsel %vm417, %v401, %v433
  %v450 = vsel %vm418, %v402, %v434
  %v451 = vsel %vm419, %v403, %v435
  %v452 = vsel %vm420, %v404, %v436
  %v453 = vsel %vm421, %v405, %v437
  %v454 = vsel %vm422, %v406, %v438
  %v455 = vsel %vm423, %v407, %v439
  %v456 = vsel %vm424, %v408, %v440
  %v457 = vsel %vm425, %v409, %v441
  %v458 = vsel %vm426, %v410, %v442
  %v459 = vsel %vm427, %v411, %v443
  %v460 = vsel %vm428, %v412, %v444
  %s461 = scalar_lea.vmem %s1, 64
  %v462 = vld [vmem:[%s461] sm:$0xf]
  %v463 = vld [vmem:[%s461 + $0x4] sm:$0xf]
  %v464 = vld [vmem:[%s461 + $0x8] sm:$0xf]
  %v465 = vld [vmem:[%s461 + $0xc] sm:$0xf]
  %v466 = vld [vmem:[%s461 + $0x10] sm:$0xf]
  %v467 = vld [vmem:[%s461 + $0x14] sm:$0xf]
  %v468 = vld [vmem:[%s461 + $0x18] sm:$0xf]
  %v469 = vld [vmem:[%s461 + $0x1c] sm:$0xf]
  %v470 = vld [vmem:[%s461 + $0x20] sm:$0xf]
  %v471 = vld [vmem:[%s461 + $0x24] sm:$0xf]
  %v472 = vld [vmem:[%s461 + $0x28] sm:$0xf]
  %v473 = vld [vmem:[%s461 + $0x2c] sm:$0xf]
  %v474 = vld [vmem:[%s461 + $0x30] sm:$0xf]
  %v475 = vld [vmem:[%s461 + $0x34] sm:$0xf]
  %v476 = vld [vmem:[%s461 + $0x38] sm:$0xf]
  %v477 = vld [vmem:[%s461 + $0x3c] sm:$0xf]
  %s478 = scalar_lea.vmem %s0, 64
  %v479 = vld [vmem:[%s478] sm:$0xf]
  %v480 = vld [vmem:[%s478 + $0x4] sm:$0xf]
  %v481 = vld [vmem:[%s478 + $0x8] sm:$0xf]
  %v482 = vld [vmem:[%s478 + $0xc] sm:$0xf]
  %v483 = vld [vmem:[%s478 + $0x10] sm:$0xf]
  %v484 = vld [vmem:[%s478 + $0x14] sm:$0xf]
  %v485 = vld [vmem:[%s478 + $0x18] sm:$0xf]
  %v486 = vld [vmem:[%s478 + $0x1c] sm:$0xf]
  %v487 = vld [vmem:[%s478 + $0x20] sm:$0xf]
  %v488 = vld [vmem:[%s478 + $0x24] sm:$0xf]
  %v489 = vld [vmem:[%s478 + $0x28] sm:$0xf]
  %v490 = vld [vmem:[%s478 + $0x2c] sm:$0xf]
  %v491 = vld [vmem:[%s478 + $0x30] sm:$0xf]
  %v492 = vld [vmem:[%s478 + $0x34] sm:$0xf]
  %v493 = vld [vmem:[%s478 + $0x38] sm:$0xf]
  %v494 = vld [vmem:[%s478 + $0x3c] sm:$0xf]
  %v511 = vunpack.c.l.b16 %v462
  %v512 = vunpack.c.l.b16 %v463
  %v513 = vunpack.c.l.b16 %v464
  %v514 = vunpack.c.l.b16 %v465
  %v515 = vunpack.c.l.b16 %v466
  %v516 = vunpack.c.l.b16 %v467
  %v517 = vunpack.c.l.b16 %v468
  %v518 = vunpack.c.l.b16 %v469
  %v519 = vunpack.c.l.b16 %v470
  %v520 = vunpack.c.l.b16 %v471
  %v521 = vunpack.c.l.b16 %v472
  %v522 = vunpack.c.l.b16 %v473
  %v523 = vunpack.c.l.b16 %v474
  %v524 = vunpack.c.l.b16 %v475
  %v525 = vunpack.c.l.b16 %v476
  %v526 = vunpack.c.l.b16 %v477
  %v527 = vpack.c.b16 %v512, %v511
  %v528 = vpack.c.b16 %v514, %v513
  %v529 = vpack.c.b16 %v516, %v515
  %v530 = vpack.c.b16 %v518, %v517
  %v531 = vpack.c.b16 %v520, %v519
  %v532 = vpack.c.b16 %v522, %v521
  %v533 = vpack.c.b16 %v524, %v523
  %v534 = vpack.c.b16 %v526, %v525
  %v559 = vunpack.c.l.b16 %v479
  %v560 = vunpack.c.l.b16 %v480
  %v561 = vunpack.c.l.b16 %v481
  %v562 = vunpack.c.l.b16 %v482
  %v563 = vunpack.c.l.b16 %v483
  %v564 = vunpack.c.l.b16 %v484
  %v565 = vunpack.c.l.b16 %v485
  %v566 = vunpack.c.l.b16 %v486
  %v567 = vunpack.c.l.b16 %v487
  %v568 = vunpack.c.l.b16 %v488
  %v569 = vunpack.c.l.b16 %v489
  %v570 = vunpack.c.l.b16 %v490
  %v571 = vunpack.c.l.b16 %v491
  %v572 = vunpack.c.l.b16 %v492
  %v573 = vunpack.c.l.b16 %v493
  %v574 = vunpack.c.l.b16 %v494
  %v575 = vpack.c.b16 %v560, %v559
  %v576 = vpack.c.b16 %v562, %v561
  %v577 = vpack.c.b16 %v564, %v563
  %v578 = vpack.c.b16 %v566, %v565
  %v579 = vpack.c.b16 %v568, %v567
  %v580 = vpack.c.b16 %v570, %v569
  %v581 = vpack.c.b16 %v572, %v571
  %v582 = vpack.c.b16 %v574, %v573
  %591 = vmatprep.subr.bf16.mxu0 0
  %592 = vmatpush1.bf16.msra.mxu0 %v575
  %593 = vmatprep.subr.bf16.mxu0 0
  %594 = vmatpush1.bf16.msra.mxu0 %v576
  %595 = vmatprep.subr.bf16.mxu0 0
  %596 = vmatpush1.bf16.msra.mxu0 %v577
  %597 = vmatprep.subr.bf16.mxu0 0
  %598 = vmatpush1.bf16.msra.mxu0 %v578
  %599 = vmatprep.subr.bf16.mxu0 0
  %600 = vmatpush1.bf16.msra.mxu0 %v579
  %601 = vmatprep.subr.bf16.mxu0 0
  %602 = vmatpush1.bf16.msra.mxu0 %v580
  %603 = vmatprep.subr.bf16.mxu0 0
  %604 = vmatpush1.bf16.msra.mxu0 %v581
  %605 = vmatprep.subr.bf16.mxu0 0
  %606 = vmatpush1.bf16.msra.mxu0 %v582
  %607 = vmatprep.subr.bf16.mxu0 0
  %608 = vmatpush1.bf16.msra.mxu0 0
  %609 = vmatprep.subr.bf16.mxu0 0
  %610 = vmatpush1.bf16.msra.mxu0 0
  %611 = vmatprep.subr.bf16.mxu0 0
  %612 = vmatpush1.bf16.msra.mxu0 0
  %613 = vmatprep.subr.bf16.mxu0 0
  %614 = vmatpush1.bf16.msra.mxu0 0
  %615 = vmatprep.subr.bf16.mxu0 0
  %616 = vmatpush1.bf16.msra.mxu0 0
  %617 = vmatprep.subr.bf16.mxu0 0
  %618 = vmatpush1.bf16.msra.mxu0 0
  %619 = vmatprep.subr.bf16.mxu0 0
  %620 = vmatpush1.bf16.msra.mxu0 0
  %621 = vmatprep.subr.bf16.mxu0 0
  %622 = vmatpush1.bf16.msra.mxu0 0
  %623 = vmatprep.mubr.bf16.mxu0 0
  %624 = vmatmul.mubr.bf16.gmra.mrb[0].mxu0 %v527
  %v625 = vpop.f32.mrb[0].mxu0
  %v626 = vadd.f32 0.0, %v625
  %v627 = vpop.f32.mrb[0].mxu0
  %v628 = vpop.f32.mrb[0].mxu0
  %v629 = vadd.f32 0.0, %v628
  %v630 = vpop.f32.mrb[0].mxu0
  %631 = vmatprep.mubr.bf16.mxu0 0
  %632 = vmatmul.mubr.bf16.gmra.mrb[0].mxu0 %v528
  %v633 = vpop.f32.mrb[0].mxu0
  %v634 = vadd.f32 0.0, %v633
  %v635 = vpop.f32.mrb[0].mxu0
  %v636 = vpop.f32.mrb[0].mxu0
  %v637 = vadd.f32 0.0, %v636
  %v638 = vpop.f32.mrb[0].mxu0
  %639 = vmatprep.mubr.bf16.mxu0 0
  %640 = vmatmul.mubr.bf16.gmra.mrb[0].mxu0 %v529
  %v641 = vpop.f32.mrb[0].mxu0
  %v642 = vadd.f32 0.0, %v641
  %v643 = vpop.f32.mrb[0].mxu0
  %v644 = vpop.f32.mrb[0].mxu0
  %v645 = vadd.f32 0.0, %v644
  %v646 = vpop.f32.mrb[0].mxu0
  %647 = vmatprep.mubr.bf16.mxu0 0
  %648 = vmatmul.mubr.bf16.gmra.mrb[0].mxu0 %v530
  %v649 = vpop.f32.mrb[0].mxu0
  %v650 = vadd.f32 0.0, %v649
  %v651 = vpop.f32.mrb[0].mxu0
  %v652 = vpop.f32.mrb[0].mxu0
  %v653 = vadd.f32 0.0, %v652
  %v654 = vpop.f32.mrb[0].mxu0
  %655 = vmatprep.mubr.bf16.mxu0 0
  %656 = vmatmul.mubr.bf16.gmra.mrb[0].mxu0 %v531
  %v657 = vpop.f32.mrb[0].mxu0
  %v658 = vadd.f32 0.0, %v657
  %v659 = vpop.f32.mrb[0].mxu0
  %v660 = vpop.f32.mrb[0].mxu0
  %v661 = vadd.f32 0.0, %v660
  %v662 = vpop.f32.mrb[0].mxu0
  %663 = vmatprep.mubr.bf16.mxu0 0
  %664 = vmatmul.mubr.bf16.gmra.mrb[0].mxu0 %v532
  %v665 = vpop.f32.mrb[0].mxu0
  %v666 = vadd.f32 0.0, %v665
  %v667 = vpop.f32.mrb[0].mxu0
  %v668 = vpop.f32.mrb[0].mxu0
  %v669 = vadd.f32 0.0, %v668
  %v670 = vpop.f32.mrb[0].mxu0
  %671 = vmatprep.mubr.bf16.mxu0 0
  %672 = vmatmul.mubr.bf16.gmra.mrb[0].mxu0 %v533
  %v673 = vpop.f32.mrb[0].mxu0
  %v674 = vadd.f32 0.0, %v673
  %v675 = vpop.f32.mrb[0].mxu0
  %v676 = vpop.f32.mrb[0].mxu0
  %v677 = vadd.f32 0.0, %v676
  %v678 = vpop.f32.mrb[0].mxu0
  %679 = vmatprep.mubr.bf16.mxu0 0
  %680 = vmatmul.mubr.bf16.gmra.mrb[0].mxu0 %v534
  %v681 = vpop.f32.mrb[0].mxu0
  %v682 = vadd.f32 0.0, %v681
  %v683 = vpop.f32.mrb[0].mxu0
  %v684 = vpop.f32.mrb[0].mxu0
  %v685 = vadd.f32 0.0, %v684
  %v686 = vpop.f32.mrb[0].mxu0
  %687 = vdwg.mxu0
  %v688 = vmul.f32 %v626, %v347
  %v689 = vmul.f32 %v629, %v347
  %v690 = vmul.f32 %v634, %v347
  %v691 = vmul.f32 %v637, %v347
  %v692 = vmul.f32 %v642, %v347
  %v693 = vmul.f32 %v645, %v347
  %v694 = vmul.f32 %v650, %v347
  %v695 = vmul.f32 %v653, %v347
  %v696 = vmul.f32 %v658, %v347
  %v697 = vmul.f32 %v661, %v347
  %v698 = vmul.f32 %v666, %v347
  %v699 = vmul.f32 %v669, %v347
  %v700 = vmul.f32 %v674, %v347
  %v701 = vmul.f32 %v677, %v347
  %v702 = vmul.f32 %v682, %v347
  %v703 = vmul.f32 %v685, %v347
  %704 = vadd.xlane.f32.xlu0 %v688
  %v705 = vpop.xlane.xlu0 %704
  %706 = vadd.xlane.f32.xlu0 %v689
  %v707 = vpop.xlane.xlu0 %706
  %708 = vadd.xlane.f32.xlu0 %v690
  %v709 = vpop.xlane.xlu0 %708
  %710 = vadd.xlane.f32.xlu0 %v691
  %v711 = vpop.xlane.xlu0 %710
  %712 = vadd.xlane.f32.xlu0 %v692
  %v713 = vpop.xlane.xlu0 %712
  %714 = vadd.xlane.f32.xlu0 %v693
  %v715 = vpop.xlane.xlu0 %714
  %716 = vadd.xlane.f32.xlu0 %v694
  %v717 = vpop.xlane.xlu0 %716
  %718 = vadd.xlane.f32.xlu0 %v695
  %v719 = vpop.xlane.xlu0 %718
  %720 = vadd.xlane.f32.xlu0 %v696
  %v721 = vpop.xlane.xlu0 %720
  %722 = vadd.xlane.f32.xlu0 %v697
  %v723 = vpop.xlane.xlu0 %722
  %724 = vadd.xlane.f32.xlu0 %v698
  %v725 = vpop.xlane.xlu0 %724
  %726 = vadd.xlane.f32.xlu0 %v699
  %v727 = vpop.xlane.xlu0 %726
  %728 = vadd.xlane.f32.xlu0 %v700
  %v729 = vpop.xlane.xlu0 %728
  %730 = vadd.xlane.f32.xlu0 %v701
  %v731 = vpop.xlane.xlu0 %730
  %732 = vadd.xlane.f32.xlu0 %v702
  %v733 = vpop.xlane.xlu0 %732
  %734 = vadd.xlane.f32.xlu0 %v703
  %v735 = vpop.xlane.xlu0 %734
  %v736 = vadd.f32 %v705, %v87
  %v737 = vadd.f32 %v707, %v89
  %v738 = vadd.f32 %v709, %v91
  %v739 = vadd.f32 %v711, %v93
  %v740 = vadd.f32 %v713, %v95
  %v741 = vadd.f32 %v715, %v97
  %v742 = vadd.f32 %v717, %v99
  %v743 = vadd.f32 %v719, %v101
  %v744 = vadd.f32 %v721, %v103
  %v745 = vadd.f32 %v723, %v105
  %v746 = vadd.f32 %v725, %v107
  %v747 = vadd.f32 %v727, %v109
  %v748 = vadd.f32 %v729, %v111
  %v749 = vadd.f32 %v731, %v113
  %v750 = vadd.f32 %v733, %v115
  %v751 = vadd.f32 %v735, %v117
  %vm752 = vcmp.ge.f32.partialorder %v736, 0.0
  %vm753 = vcmp.ge.f32.partialorder %v737, 0.0
  %vm754 = vcmp.ge.f32.partialorder %v738, 0.0
  %vm755 = vcmp.ge.f32.partialorder %v739, 0.0
  %vm756 = vcmp.ge.f32.partialorder %v740, 0.0
  %vm757 = vcmp.ge.f32.partialorder %v741, 0.0
  %vm758 = vcmp.ge.f32.partialorder %v742, 0.0
  %vm759 = vcmp.ge.f32.partialorder %v743, 0.0
  %vm760 = vcmp.ge.f32.partialorder %v744, 0.0
  %vm761 = vcmp.ge.f32.partialorder %v745, 0.0
  %vm762 = vcmp.ge.f32.partialorder %v746, 0.0
  %vm763 = vcmp.ge.f32.partialorder %v747, 0.0
  %vm764 = vcmp.ge.f32.partialorder %v748, 0.0
  %vm765 = vcmp.ge.f32.partialorder %v749, 0.0
  %vm766 = vcmp.ge.f32.partialorder %v750, 0.0
  %vm767 = vcmp.ge.f32.partialorder %v751, 0.0
  %v768 = vmul.f32 %v736, 0.01
  %v769 = vmul.f32 %v737, 0.01
  %v770 = vmul.f32 %v738, 0.01
  %v771 = vmul.f32 %v739, 0.01
  %v772 = vmul.f32 %v740, 0.01
  %v773 = vmul.f32 %v741, 0.01
  %v774 = vmul.f32 %v742, 0.01
  %v775 = vmul.f32 %v743, 0.01
  %v776 = vmul.f32 %v744, 0.01
  %v777 = vmul.f32 %v745, 0.01
  %v778 = vmul.f32 %v746, 0.01
  %v779 = vmul.f32 %v747, 0.01
  %v780 = vmul.f32 %v748, 0.01
  %v781 = vmul.f32 %v749, 0.01
  %v782 = vmul.f32 %v750, 0.01
  %v783 = vmul.f32 %v751, 0.01
  %v784 = vsel %vm752, %v736, %v768
  %v785 = vsel %vm753, %v737, %v769
  %v786 = vsel %vm754, %v738, %v770
  %v787 = vsel %vm755, %v739, %v771
  %v788 = vsel %vm756, %v740, %v772
  %v789 = vsel %vm757, %v741, %v773
  %v790 = vsel %vm758, %v742, %v774
  %v791 = vsel %vm759, %v743, %v775
  %v792 = vsel %vm760, %v744, %v776
  %v793 = vsel %vm761, %v745, %v777
  %v794 = vsel %vm762, %v746, %v778
  %v795 = vsel %vm763, %v747, %v779
  %v796 = vsel %vm764, %v748, %v780
  %v797 = vsel %vm765, %v749, %v781
  %v798 = vsel %vm766, %v750, %v782
  %v799 = vsel %vm767, %v751, %v783
  %s800 = scalar_lea.vmem %s1, 128
  %v801 = vld [vmem:[%s800] sm:$0xf]
  %v802 = vld [vmem:[%s800 + $0x4] sm:$0xf]
  %v803 = vld [vmem:[%s800 + $0x8] sm:$0xf]
  %v804 = vld [vmem:[%s800 + $0xc] sm:$0xf]
  %v805 = vld [vmem:[%s800 + $0x10] sm:$0xf]
  %v806 = vld [vmem:[%s800 + $0x14] sm:$0xf]
  %v807 = vld [vmem:[%s800 + $0x18] sm:$0xf]
  %v808 = vld [vmem:[%s800 + $0x1c] sm:$0xf]
  %v809 = vld [vmem:[%s800 + $0x20] sm:$0xf]
  %v810 = vld [vmem:[%s800 + $0x24] sm:$0xf]
  %v811 = vld [vmem:[%s800 + $0x28] sm:$0xf]
  %v812 = vld [vmem:[%s800 + $0x2c] sm:$0xf]
  %v813 = vld [vmem:[%s800 + $0x30] sm:$0xf]
  %v814 = vld [vmem:[%s800 + $0x34] sm:$0xf]
  %v815 = vld [vmem:[%s800 + $0x38] sm:$0xf]
  %v816 = vld [vmem:[%s800 + $0x3c] sm:$0xf]
  %s817 = scalar_lea.vmem %s0, 128
  %v818 = vld [vmem:[%s817] sm:$0xf]
  %v819 = vld [vmem:[%s817 + $0x4] sm:$0xf]
  %v820 = vld [vmem:[%s817 + $0x8] sm:$0xf]
  %v821 = vld [vmem:[%s817 + $0xc] sm:$0xf]
  %v822 = vld [vmem:[%s817 + $0x10] sm:$0xf]
  %v823 = vld [vmem:[%s817 + $0x14] sm:$0xf]
  %v824 = vld [vmem:[%s817 + $0x18] sm:$0xf]
  %v825 = vld [vmem:[%s817 + $0x1c] sm:$0xf]
  %v826 = vld [vmem:[%s817 + $0x20] sm:$0xf]
  %v827 = vld [vmem:[%s817 + $0x24] sm:$0xf]
  %v828 = vld [vmem:[%s817 + $0x28] sm:$0xf]
  %v829 = vld [vmem:[%s817 + $0x2c] sm:$0xf]
  %v830 = vld [vmem:[%s817 + $0x30] sm:$0xf]
  %v831 = vld [vmem:[%s817 + $0x34] sm:$0xf]
  %v832 = vld [vmem:[%s817 + $0x38] sm:$0xf]
  %v833 = vld [vmem:[%s817 + $0x3c] sm:$0xf]
  %v850 = vunpack.c.l.b16 %v801
  %v851 = vunpack.c.l.b16 %v802
  %v852 = vunpack.c.l.b16 %v803
  %v853 = vunpack.c.l.b16 %v804
  %v854 = vunpack.c.l.b16 %v805
  %v855 = vunpack.c.l.b16 %v806
  %v856 = vunpack.c.l.b16 %v807
  %v857 = vunpack.c.l.b16 %v808
  %v858 = vunpack.c.l.b16 %v809
  %v859 = vunpack.c.l.b16 %v810
  %v860 = vunpack.c.l.b16 %v811
  %v861 = vunpack.c.l.b16 %v812
  %v862 = vunpack.c.l.b16 %v813
  %v863 = vunpack.c.l.b16 %v814
  %v864 = vunpack.c.l.b16 %v815
  %v865 = vunpack.c.l.b16 %v816
  %v866 = vpack.c.b16 %v851, %v850
  %v867 = vpack.c.b16 %v853, %v852
  %v868 = vpack.c.b16 %v855, %v854
  %v869 = vpack.c.b16 %v857, %v856
  %v870 = vpack.c.b16 %v859, %v858
  %v871 = vpack.c.b16 %v861, %v860
  %v872 = vpack.c.b16 %v863, %v862
  %v873 = vpack.c.b16 %v865, %v864
  %v898 = vunpack.c.l.b16 %v818
  %v899 = vunpack.c.l.b16 %v819
  %v900 = vunpack.c.l.b16 %v820
  %v901 = vunpack.c.l.b16 %v821
  %v902 = vunpack.c.l.b16 %v822
  %v903 = vunpack.c.l.b16 %v823
  %v904 = vunpack.c.l.b16 %v824
  %v905 = vunpack.c.l.b16 %v825
  %v906 = vunpack.c.l.b16 %v826
  %v907 = vunpack.c.l.b16 %v827
  %v908 = vunpack.c.l.b16 %v828
  %v909 = vunpack.c.l.b16 %v829
  %v910 = vunpack.c.l.b16 %v830
  %v911 = vunpack.c.l.b16 %v831
  %v912 = vunpack.c.l.b16 %v832
  %v913 = vunpack.c.l.b16 %v833
  %v914 = vpack.c.b16 %v899, %v898
  %v915 = vpack.c.b16 %v901, %v900
  %v916 = vpack.c.b16 %v903, %v902
  %v917 = vpack.c.b16 %v905, %v904
  %v918 = vpack.c.b16 %v907, %v906
  %v919 = vpack.c.b16 %v909, %v908
  %v920 = vpack.c.b16 %v911, %v910
  %v921 = vpack.c.b16 %v913, %v912
  %930 = vmatprep.subr.bf16.mxu0 0
  %931 = vmatpush1.bf16.msra.mxu0 %v914
  %932 = vmatprep.subr.bf16.mxu0 0
  %933 = vmatpush1.bf16.msra.mxu0 %v915
  %934 = vmatprep.subr.bf16.mxu0 0
  %935 = vmatpush1.bf16.msra.mxu0 %v916
  %936 = vmatprep.subr.bf16.mxu0 0
  %937 = vmatpush1.bf16.msra.mxu0 %v917
  %938 = vmatprep.subr.bf16.mxu0 0
  %939 = vmatpush1.bf16.msra.mxu0 %v918
  %940 = vmatprep.subr.bf16.mxu0 0
  %941 = vmatpush1.bf16.msra.mxu0 %v919
  %942 = vmatprep.subr.bf16.mxu0 0
  %943 = vmatpush1.bf16.msra.mxu0 %v920
  %944 = vmatprep.subr.bf16.mxu0 0
  %945 = vmatpush1.bf16.msra.mxu0 %v921
  %946 = vmatprep.subr.bf16.mxu0 0
  %947 = vmatpush1.bf16.msra.mxu0 0
  %948 = vmatprep.subr.bf16.mxu0 0
  %949 = vmatpush1.bf16.msra.mxu0 0
  %950 = vmatprep.subr.bf16.mxu0 0
  %951 = vmatpush1.bf16.msra.mxu0 0
  %952 = vmatprep.subr.bf16.mxu0 0
  %953 = vmatpush1.bf16.msra.mxu0 0
  %954 = vmatprep.subr.bf16.mxu0 0
  %955 = vmatpush1.bf16.msra.mxu0 0
  %956 = vmatprep.subr.bf16.mxu0 0
  %957 = vmatpush1.bf16.msra.mxu0 0
  %958 = vmatprep.subr.bf16.mxu0 0
  %959 = vmatpush1.bf16.msra.mxu0 0
  %960 = vmatprep.subr.bf16.mxu0 0
  %961 = vmatpush1.bf16.msra.mxu0 0
  %962 = vmatprep.mubr.bf16.mxu0 0
  %963 = vmatmul.mubr.bf16.gmra.mrb[0].mxu0 %v866
  %v964 = vpop.f32.mrb[0].mxu0
  %v965 = vadd.f32 0.0, %v964
  %v966 = vpop.f32.mrb[0].mxu0
  %v967 = vpop.f32.mrb[0].mxu0
  %v968 = vadd.f32 0.0, %v967
  %v969 = vpop.f32.mrb[0].mxu0
  %970 = vmatprep.mubr.bf16.mxu0 0
  %971 = vmatmul.mubr.bf16.gmra.mrb[0].mxu0 %v867
  %v972 = vpop.f32.mrb[0].mxu0
  %v973 = vadd.f32 0.0, %v972
  %v974 = vpop.f32.mrb[0].mxu0
  %v975 = vpop.f32.mrb[0].mxu0
  %v976 = vadd.f32 0.0, %v975
  %v977 = vpop.f32.mrb[0].mxu0
  %978 = vmatprep.mubr.bf16.mxu0 0
  %979 = vmatmul.mubr.bf16.gmra.mrb[0].mxu0 %v868
  %v980 = vpop.f32.mrb[0].mxu0
  %v981 = vadd.f32 0.0, %v980
  %v982 = vpop.f32.mrb[0].mxu0
  %v983 = vpop.f32.mrb[0].mxu0
  %v984 = vadd.f32 0.0, %v983
  %v985 = vpop.f32.mrb[0].mxu0
  %986 = vmatprep.mubr.bf16.mxu0 0
  %987 = vmatmul.mubr.bf16.gmra.mrb[0].mxu0 %v869
  %v988 = vpop.f32.mrb[0].mxu0
  %v989 = vadd.f32 0.0, %v988
  %v990 = vpop.f32.mrb[0].mxu0
  %v991 = vpop.f32.mrb[0].mxu0
  %v992 = vadd.f32 0.0, %v991
  %v993 = vpop.f32.mrb[0].mxu0
  %994 = vmatprep.mubr.bf16.mxu0 0
  %995 = vmatmul.mubr.bf16.gmra.mrb[0].mxu0 %v870
  %v996 = vpop.f32.mrb[0].mxu0
  %v997 = vadd.f32 0.0, %v996
  %v998 = vpop.f32.mrb[0].mxu0
  %v999 = vpop.f32.mrb[0].mxu0
  %v1000 = vadd.f32 0.0, %v999
  %v1001 = vpop.f32.mrb[0].mxu0
  %1002 = vmatprep.mubr.bf16.mxu0 0
  %1003 = vmatmul.mubr.bf16.gmra.mrb[0].mxu0 %v871
  %v1004 = vpop.f32.mrb[0].mxu0
  %v1005 = vadd.f32 0.0, %v1004
  %v1006 = vpop.f32.mrb[0].mxu0
  %v1007 = vpop.f32.mrb[0].mxu0
  %v1008 = vadd.f32 0.0, %v1007
  %v1009 = vpop.f32.mrb[0].mxu0
  %1010 = vmatprep.mubr.bf16.mxu0 0
  %1011 = vmatmul.mubr.bf16.gmra.mrb[0].mxu0 %v872
  %v1012 = vpop.f32.mrb[0].mxu0
  %v1013 = vadd.f32 0.0, %v1012
  %v1014 = vpop.f32.mrb[0].mxu0
  %v1015 = vpop.f32.mrb[0].mxu0
  %v1016 = vadd.f32 0.0, %v1015
  %v1017 = vpop.f32.mrb[0].mxu0
  %1018 = vmatprep.mubr.bf16.mxu0 0
  %1019 = vmatmul.mubr.bf16.gmra.mrb[0].mxu0 %v873
  %v1020 = vpop.f32.mrb[0].mxu0
  %v1021 = vadd.f32 0.0, %v1020
  %v1022 = vpop.f32.mrb[0].mxu0
  %v1023 = vpop.f32.mrb[0].mxu0
  %v1024 = vadd.f32 0.0, %v1023
  %v1025 = vpop.f32.mrb[0].mxu0
  %1026 = vdwg.mxu0
  %v1027 = vmul.f32 %v965, %v347
  %v1028 = vmul.f32 %v968, %v347
  %v1029 = vmul.f32 %v973, %v347
  %v1030 = vmul.f32 %v976, %v347
  %v1031 = vmul.f32 %v981, %v347
  %v1032 = vmul.f32 %v984, %v347
  %v1033 = vmul.f32 %v989, %v347
  %v1034 = vmul.f32 %v992, %v347
  %v1035 = vmul.f32 %v997, %v347
  %v1036 = vmul.f32 %v1000, %v347
  %v1037 = vmul.f32 %v1005, %v347
  %v1038 = vmul.f32 %v1008, %v347
  %v1039 = vmul.f32 %v1013, %v347
  %v1040 = vmul.f32 %v1016, %v347
  %v1041 = vmul.f32 %v1021, %v347
  %v1042 = vmul.f32 %v1024, %v347
  %1043 = vadd.xlane.f32.xlu0 %v1027
  %v1044 = vpop.xlane.xlu0 %1043
  %1045 = vadd.xlane.f32.xlu0 %v1028
  %v1046 = vpop.xlane.xlu0 %1045
  %1047 = vadd.xlane.f32.xlu0 %v1029
  %v1048 = vpop.xlane.xlu0 %1047
  %1049 = vadd.xlane.f32.xlu0 %v1030
  %v1050 = vpop.xlane.xlu0 %1049
  %1051 = vadd.xlane.f32.xlu0 %v1031
  %v1052 = vpop.xlane.xlu0 %1051
  %1053 = vadd.xlane.f32.xlu0 %v1032
  %v1054 = vpop.xlane.xlu0 %1053
  %1055 = vadd.xlane.f32.xlu0 %v1033
  %v1056 = vpop.xlane.xlu0 %1055
  %1057 = vadd.xlane.f32.xlu0 %v1034
  %v1058 = vpop.xlane.xlu0 %1057
  %1059 = vadd.xlane.f32.xlu0 %v1035
  %v1060 = vpop.xlane.xlu0 %1059
  %1061 = vadd.xlane.f32.xlu0 %v1036
  %v1062 = vpop.xlane.xlu0 %1061
  %1063 = vadd.xlane.f32.xlu0 %v1037
  %v1064 = vpop.xlane.xlu0 %1063
  %1065 = vadd.xlane.f32.xlu0 %v1038
  %v1066 = vpop.xlane.xlu0 %1065
  %1067 = vadd.xlane.f32.xlu0 %v1039
  %v1068 = vpop.xlane.xlu0 %1067
  %1069 = vadd.xlane.f32.xlu0 %v1040
  %v1070 = vpop.xlane.xlu0 %1069
  %1071 = vadd.xlane.f32.xlu0 %v1041
  %v1072 = vpop.xlane.xlu0 %1071
  %1073 = vadd.xlane.f32.xlu0 %v1042
  %v1074 = vpop.xlane.xlu0 %1073
  %v1075 = vadd.f32 %v1044, %v87
  %v1076 = vadd.f32 %v1046, %v89
  %v1077 = vadd.f32 %v1048, %v91
  %v1078 = vadd.f32 %v1050, %v93
  %v1079 = vadd.f32 %v1052, %v95
  %v1080 = vadd.f32 %v1054, %v97
  %v1081 = vadd.f32 %v1056, %v99
  %v1082 = vadd.f32 %v1058, %v101
  %v1083 = vadd.f32 %v1060, %v103
  %v1084 = vadd.f32 %v1062, %v105
  %v1085 = vadd.f32 %v1064, %v107
  %v1086 = vadd.f32 %v1066, %v109
  %v1087 = vadd.f32 %v1068, %v111
  %v1088 = vadd.f32 %v1070, %v113
  %v1089 = vadd.f32 %v1072, %v115
  %v1090 = vadd.f32 %v1074, %v117
  %vm1091 = vcmp.ge.f32.partialorder %v1075, 0.0
  %vm1092 = vcmp.ge.f32.partialorder %v1076, 0.0
  %vm1093 = vcmp.ge.f32.partialorder %v1077, 0.0
  %vm1094 = vcmp.ge.f32.partialorder %v1078, 0.0
  %vm1095 = vcmp.ge.f32.partialorder %v1079, 0.0
  %vm1096 = vcmp.ge.f32.partialorder %v1080, 0.0
  %vm1097 = vcmp.ge.f32.partialorder %v1081, 0.0
  %vm1098 = vcmp.ge.f32.partialorder %v1082, 0.0
  %vm1099 = vcmp.ge.f32.partialorder %v1083, 0.0
  %vm1100 = vcmp.ge.f32.partialorder %v1084, 0.0
  %vm1101 = vcmp.ge.f32.partialorder %v1085, 0.0
  %vm1102 = vcmp.ge.f32.partialorder %v1086, 0.0
  %vm1103 = vcmp.ge.f32.partialorder %v1087, 0.0
  %vm1104 = vcmp.ge.f32.partialorder %v1088, 0.0
  %vm1105 = vcmp.ge.f32.partialorder %v1089, 0.0
  %vm1106 = vcmp.ge.f32.partialorder %v1090, 0.0
  %v1107 = vmul.f32 %v1075, 0.01
  %v1108 = vmul.f32 %v1076, 0.01
  %v1109 = vmul.f32 %v1077, 0.01
  %v1110 = vmul.f32 %v1078, 0.01
  %v1111 = vmul.f32 %v1079, 0.01
  %v1112 = vmul.f32 %v1080, 0.01
  %v1113 = vmul.f32 %v1081, 0.01
  %v1114 = vmul.f32 %v1082, 0.01
  %v1115 = vmul.f32 %v1083, 0.01
  %v1116 = vmul.f32 %v1084, 0.01
  %v1117 = vmul.f32 %v1085, 0.01
  %v1118 = vmul.f32 %v1086, 0.01
  %v1119 = vmul.f32 %v1087, 0.01
  %v1120 = vmul.f32 %v1088, 0.01
  %v1121 = vmul.f32 %v1089, 0.01
  %v1122 = vmul.f32 %v1090, 0.01
  %v1123 = vsel %vm1091, %v1075, %v1107
  %v1124 = vsel %vm1092, %v1076, %v1108
  %v1125 = vsel %vm1093, %v1077, %v1109
  %v1126 = vsel %vm1094, %v1078, %v1110
  %v1127 = vsel %vm1095, %v1079, %v1111
  %v1128 = vsel %vm1096, %v1080, %v1112
  %v1129 = vsel %vm1097, %v1081, %v1113
  %v1130 = vsel %vm1098, %v1082, %v1114
  %v1131 = vsel %vm1099, %v1083, %v1115
  %v1132 = vsel %vm1100, %v1084, %v1116
  %v1133 = vsel %vm1101, %v1085, %v1117
  %v1134 = vsel %vm1102, %v1086, %v1118
  %v1135 = vsel %vm1103, %v1087, %v1119
  %v1136 = vsel %vm1104, %v1088, %v1120
  %v1137 = vsel %vm1105, %v1089, %v1121
  %v1138 = vsel %vm1106, %v1090, %v1122
  %v1139 = vmax.f32 %v445, %v784
  %v1140 = vmax.f32 %v446, %v785
  %v1141 = vmax.f32 %v447, %v786
  %v1142 = vmax.f32 %v448, %v787
  %v1143 = vmax.f32 %v449, %v788
  %v1144 = vmax.f32 %v450, %v789
  %v1145 = vmax.f32 %v451, %v790
  %v1146 = vmax.f32 %v452, %v791
  %v1147 = vmax.f32 %v453, %v792
  %v1148 = vmax.f32 %v454, %v793
  %v1149 = vmax.f32 %v455, %v794
  %v1150 = vmax.f32 %v456, %v795
  %v1151 = vmax.f32 %v457, %v796
  %v1152 = vmax.f32 %v458, %v797
  %v1153 = vmax.f32 %v459, %v798
  %v1154 = vmax.f32 %v460, %v799
  %v1155 = vmax.f32 %v1139, %v1123
  %v1156 = vmax.f32 %v1140, %v1124
  %v1157 = vmax.f32 %v1141, %v1125
  %v1158 = vmax.f32 %v1142, %v1126
  %v1159 = vmax.f32 %v1143, %v1127
  %v1160 = vmax.f32 %v1144, %v1128
  %v1161 = vmax.f32 %v1145, %v1129
  %v1162 = vmax.f32 %v1146, %v1130
  %v1163 = vmax.f32 %v1147, %v1131
  %v1164 = vmax.f32 %v1148, %v1132
  %v1165 = vmax.f32 %v1149, %v1133
  %v1166 = vmax.f32 %v1150, %v1134
  %v1167 = vmax.f32 %v1151, %v1135
  %v1168 = vmax.f32 %v1152, %v1136
  %v1169 = vmax.f32 %v1153, %v1137
  %v1170 = vmax.f32 %v1154, %v1138
  %v1171 = vsub.f32 %v445, %v1155
  %v1172 = vsub.f32 %v446, %v1156
  %v1173 = vsub.f32 %v447, %v1157
  %v1174 = vsub.f32 %v448, %v1158
  %v1175 = vsub.f32 %v449, %v1159
  %v1176 = vsub.f32 %v450, %v1160
  %v1177 = vsub.f32 %v451, %v1161
  %v1178 = vsub.f32 %v452, %v1162
  %v1179 = vsub.f32 %v453, %v1163
  %v1180 = vsub.f32 %v454, %v1164
  %v1181 = vsub.f32 %v455, %v1165
  %v1182 = vsub.f32 %v456, %v1166
  %v1183 = vsub.f32 %v457, %v1167
  %v1184 = vsub.f32 %v458, %v1168
  %v1185 = vsub.f32 %v459, %v1169
  %v1186 = vsub.f32 %v460, %v1170
  %v1187 = vmul.f32 %v1171, 1.442695
  %v1188 = vpow.pop %v1187
  %v1189 = vmul.f32 %v1172, 1.442695
  %v1190 = vpow.pop %v1189
  %v1191 = vmul.f32 %v1173, 1.442695
  %v1192 = vpow.pop %v1191
  %v1193 = vmul.f32 %v1174, 1.442695
  %v1194 = vpow.pop %v1193
  %v1195 = vmul.f32 %v1175, 1.442695
  %v1196 = vpow.pop %v1195
  %v1197 = vmul.f32 %v1176, 1.442695
  %v1198 = vpow.pop %v1197
  %v1199 = vmul.f32 %v1177, 1.442695
  %v1200 = vpow.pop %v1199
  %v1201 = vmul.f32 %v1178, 1.442695
  %v1202 = vpow.pop %v1201
  %v1203 = vmul.f32 %v1179, 1.442695
  %v1204 = vpow.pop %v1203
  %v1205 = vmul.f32 %v1180, 1.442695
  %v1206 = vpow.pop %v1205
  %v1207 = vmul.f32 %v1181, 1.442695
  %v1208 = vpow.pop %v1207
  %v1209 = vmul.f32 %v1182, 1.442695
  %v1210 = vpow.pop %v1209
  %v1211 = vmul.f32 %v1183, 1.442695
  %v1212 = vpow.pop %v1211
  %v1213 = vmul.f32 %v1184, 1.442695
  %v1214 = vpow.pop %v1213
  %v1215 = vmul.f32 %v1185, 1.442695
  %v1216 = vpow.pop %v1215
  %v1217 = vmul.f32 %v1186, 1.442695
  %v1218 = vpow.pop %v1217
  %v1219 = vsub.f32 %v784, %v1155
  %v1220 = vsub.f32 %v785, %v1156
  %v1221 = vsub.f32 %v786, %v1157
  %v1222 = vsub.f32 %v787, %v1158
  %v1223 = vsub.f32 %v788, %v1159
  %v1224 = vsub.f32 %v789, %v1160
  %v1225 = vsub.f32 %v790, %v1161
  %v1226 = vsub.f32 %v791, %v1162
  %v1227 = vsub.f32 %v792, %v1163
  %v1228 = vsub.f32 %v793, %v1164
  %v1229 = vsub.f32 %v794, %v1165
  %v1230 = vsub.f32 %v795, %v1166
  %v1231 = vsub.f32 %v796, %v1167
  %v1232 = vsub.f32 %v797, %v1168
  %v1233 = vsub.f32 %v798, %v1169
  %v1234 = vsub.f32 %v799, %v1170
  %v1235 = vmul.f32 %v1219, 1.442695
  %v1236 = vpow.pop %v1235
  %v1237 = vmul.f32 %v1220, 1.442695
  %v1238 = vpow.pop %v1237
  %v1239 = vmul.f32 %v1221, 1.442695
  %v1240 = vpow.pop %v1239
  %v1241 = vmul.f32 %v1222, 1.442695
  %v1242 = vpow.pop %v1241
  %v1243 = vmul.f32 %v1223, 1.442695
  %v1244 = vpow.pop %v1243
  %v1245 = vmul.f32 %v1224, 1.442695
  %v1246 = vpow.pop %v1245
  %v1247 = vmul.f32 %v1225, 1.442695
  %v1248 = vpow.pop %v1247
  %v1249 = vmul.f32 %v1226, 1.442695
  %v1250 = vpow.pop %v1249
  %v1251 = vmul.f32 %v1227, 1.442695
  %v1252 = vpow.pop %v1251
  %v1253 = vmul.f32 %v1228, 1.442695
  %v1254 = vpow.pop %v1253
  %v1255 = vmul.f32 %v1229, 1.442695
  %v1256 = vpow.pop %v1255
  %v1257 = vmul.f32 %v1230, 1.442695
  %v1258 = vpow.pop %v1257
  %v1259 = vmul.f32 %v1231, 1.442695
  %v1260 = vpow.pop %v1259
  %v1261 = vmul.f32 %v1232, 1.442695
  %v1262 = vpow.pop %v1261
  %v1263 = vmul.f32 %v1233, 1.442695
  %v1264 = vpow.pop %v1263
  %v1265 = vmul.f32 %v1234, 1.442695
  %v1266 = vpow.pop %v1265
  %v1267 = vsub.f32 %v1123, %v1155
  %v1268 = vsub.f32 %v1124, %v1156
  %v1269 = vsub.f32 %v1125, %v1157
  %v1270 = vsub.f32 %v1126, %v1158
  %v1271 = vsub.f32 %v1127, %v1159
  %v1272 = vsub.f32 %v1128, %v1160
  %v1273 = vsub.f32 %v1129, %v1161
  %v1274 = vsub.f32 %v1130, %v1162
  %v1275 = vsub.f32 %v1131, %v1163
  %v1276 = vsub.f32 %v1132, %v1164
  %v1277 = vsub.f32 %v1133, %v1165
  %v1278 = vsub.f32 %v1134, %v1166
  %v1279 = vsub.f32 %v1135, %v1167
  %v1280 = vsub.f32 %v1136, %v1168
  %v1281 = vsub.f32 %v1137, %v1169
  %v1282 = vsub.f32 %v1138, %v1170
  %v1283 = vmul.f32 %v1267, 1.442695
  %v1284 = vpow.pop %v1283
  %v1285 = vmul.f32 %v1268, 1.442695
  %v1286 = vpow.pop %v1285
  %v1287 = vmul.f32 %v1269, 1.442695
  %v1288 = vpow.pop %v1287
  %v1289 = vmul.f32 %v1270, 1.442695
  %v1290 = vpow.pop %v1289
  %v1291 = vmul.f32 %v1271, 1.442695
  %v1292 = vpow.pop %v1291
  %v1293 = vmul.f32 %v1272, 1.442695
  %v1294 = vpow.pop %v1293
  %v1295 = vmul.f32 %v1273, 1.442695
  %v1296 = vpow.pop %v1295
  %v1297 = vmul.f32 %v1274, 1.442695
  %v1298 = vpow.pop %v1297
  %v1299 = vmul.f32 %v1275, 1.442695
  %v1300 = vpow.pop %v1299
  %v1301 = vmul.f32 %v1276, 1.442695
  %v1302 = vpow.pop %v1301
  %v1303 = vmul.f32 %v1277, 1.442695
  %v1304 = vpow.pop %v1303
  %v1305 = vmul.f32 %v1278, 1.442695
  %v1306 = vpow.pop %v1305
  %v1307 = vmul.f32 %v1279, 1.442695
  %v1308 = vpow.pop %v1307
  %v1309 = vmul.f32 %v1280, 1.442695
  %v1310 = vpow.pop %v1309
  %v1311 = vmul.f32 %v1281, 1.442695
  %v1312 = vpow.pop %v1311
  %v1313 = vmul.f32 %v1282, 1.442695
  %v1314 = vpow.pop %v1313
  %v1315 = vadd.f32 %v1188, %v1236
  %v1316 = vadd.f32 %v1190, %v1238
  %v1317 = vadd.f32 %v1192, %v1240
  %v1318 = vadd.f32 %v1194, %v1242
  %v1319 = vadd.f32 %v1196, %v1244
  %v1320 = vadd.f32 %v1198, %v1246
  %v1321 = vadd.f32 %v1200, %v1248
  %v1322 = vadd.f32 %v1202, %v1250
  %v1323 = vadd.f32 %v1204, %v1252
  %v1324 = vadd.f32 %v1206, %v1254
  %v1325 = vadd.f32 %v1208, %v1256
  %v1326 = vadd.f32 %v1210, %v1258
  %v1327 = vadd.f32 %v1212, %v1260
  %v1328 = vadd.f32 %v1214, %v1262
  %v1329 = vadd.f32 %v1216, %v1264
  %v1330 = vadd.f32 %v1218, %v1266
  %v1331 = vadd.f32 %v1315, %v1284
  %v1332 = vadd.f32 %v1316, %v1286
  %v1333 = vadd.f32 %v1317, %v1288
  %v1334 = vadd.f32 %v1318, %v1290
  %v1335 = vadd.f32 %v1319, %v1292
  %v1336 = vadd.f32 %v1320, %v1294
  %v1337 = vadd.f32 %v1321, %v1296
  %v1338 = vadd.f32 %v1322, %v1298
  %v1339 = vadd.f32 %v1323, %v1300
  %v1340 = vadd.f32 %v1324, %v1302
  %v1341 = vadd.f32 %v1325, %v1304
  %v1342 = vadd.f32 %v1326, %v1306
  %v1343 = vadd.f32 %v1327, %v1308
  %v1344 = vadd.f32 %v1328, %v1310
  %v1345 = vadd.f32 %v1329, %v1312
  %v1346 = vadd.f32 %v1330, %v1314
  %v1347 = vrcp.pop %v1331
  %v1348 = vrcp.pop %v1332
  %v1349 = vrcp.pop %v1333
  %v1350 = vrcp.pop %v1334
  %v1351 = vrcp.pop %v1335
  %v1352 = vrcp.pop %v1336
  %v1353 = vrcp.pop %v1337
  %v1354 = vrcp.pop %v1338
  %v1355 = vrcp.pop %v1339
  %v1356 = vrcp.pop %v1340
  %v1357 = vrcp.pop %v1341
  %v1358 = vrcp.pop %v1342
  %v1359 = vrcp.pop %v1343
  %v1360 = vrcp.pop %v1344
  %v1361 = vrcp.pop %v1345
  %v1362 = vrcp.pop %v1346
  %v1363 = vmul.f32 %v1188, %v281
  %v1364 = vmul.f32 %v1190, %v284
  %v1365 = vmul.f32 %v1192, %v289
  %v1366 = vmul.f32 %v1194, %v292
  %v1367 = vmul.f32 %v1196, %v297
  %v1368 = vmul.f32 %v1198, %v300
  %v1369 = vmul.f32 %v1200, %v305
  %v1370 = vmul.f32 %v1202, %v308
  %v1371 = vmul.f32 %v1204, %v313
  %v1372 = vmul.f32 %v1206, %v316
  %v1373 = vmul.f32 %v1208, %v321
  %v1374 = vmul.f32 %v1210, %v324
  %v1375 = vmul.f32 %v1212, %v329
  %v1376 = vmul.f32 %v1214, %v332
  %v1377 = vmul.f32 %v1216, %v337
  %v1378 = vmul.f32 %v1218, %v340
  %v1379 = vmul.f32 %v1236, %v626
  %v1380 = vmul.f32 %v1238, %v629
  %v1381 = vmul.f32 %v1240, %v634
  %v1382 = vmul.f32 %v1242, %v637
  %v1383 = vmul.f32 %v1244, %v642
  %v1384 = vmul.f32 %v1246, %v645
  %v1385 = vmul.f32 %v1248, %v650
  %v1386 = vmul.f32 %v1250, %v653
  %v1387 = vmul.f32 %v1252, %v658
  %v1388 = vmul.f32 %v1254, %v661
  %v1389 = vmul.f32 %v1256, %v666
  %v1390 = vmul.f32 %v1258, %v669
  %v1391 = vmul.f32 %v1260, %v674
  %v1392 = vmul.f32 %v1262, %v677
  %v1393 = vmul.f32 %v1264, %v682
  %v1394 = vmul.f32 %v1266, %v685
  %v1395 = vadd.f32 %v1363, %v1379
  %v1396 = vadd.f32 %v1364, %v1380
  %v1397 = vadd.f32 %v1365, %v1381
  %v1398 = vadd.f32 %v1366, %v1382
  %v1399 = vadd.f32 %v1367, %v1383
  %v1400 = vadd.f32 %v1368, %v1384
  %v1401 = vadd.f32 %v1369, %v1385
  %v1402 = vadd.f32 %v1370, %v1386
  %v1403 = vadd.f32 %v1371, %v1387
  %v1404 = vadd.f32 %v1372, %v1388
  %v1405 = vadd.f32 %v1373, %v1389
  %v1406 = vadd.f32 %v1374, %v1390
  %v1407 = vadd.f32 %v1375, %v1391
  %v1408 = vadd.f32 %v1376, %v1392
  %v1409 = vadd.f32 %v1377, %v1393
  %v1410 = vadd.f32 %v1378, %v1394
  %v1411 = vmul.f32 %v1284, %v965
  %v1412 = vmul.f32 %v1286, %v968
  %v1413 = vmul.f32 %v1288, %v973
  %v1414 = vmul.f32 %v1290, %v976
  %v1415 = vmul.f32 %v1292, %v981
  %v1416 = vmul.f32 %v1294, %v984
  %v1417 = vmul.f32 %v1296, %v989
  %v1418 = vmul.f32 %v1298, %v992
  %v1419 = vmul.f32 %v1300, %v997
  %v1420 = vmul.f32 %v1302, %v1000
  %v1421 = vmul.f32 %v1304, %v1005
  %v1422 = vmul.f32 %v1306, %v1008
  %v1423 = vmul.f32 %v1308, %v1013
  %v1424 = vmul.f32 %v1310, %v1016
  %v1425 = vmul.f32 %v1312, %v1021
  %v1426 = vmul.f32 %v1314, %v1024
  %v1427 = vadd.f32 %v1395, %v1411
  %v1428 = vadd.f32 %v1396, %v1412
  %v1429 = vadd.f32 %v1397, %v1413
  %v1430 = vadd.f32 %v1398, %v1414
  %v1431 = vadd.f32 %v1399, %v1415
  %v1432 = vadd.f32 %v1400, %v1416
  %v1433 = vadd.f32 %v1401, %v1417
  %v1434 = vadd.f32 %v1402, %v1418
  %v1435 = vadd.f32 %v1403, %v1419
  %v1436 = vadd.f32 %v1404, %v1420
  %v1437 = vadd.f32 %v1405, %v1421
  %v1438 = vadd.f32 %v1406, %v1422
  %v1439 = vadd.f32 %v1407, %v1423
  %v1440 = vadd.f32 %v1408, %v1424
  %v1441 = vadd.f32 %v1409, %v1425
  %v1442 = vadd.f32 %v1410, %v1426
  %v1443 = vmul.f32 %v1427, %v1347
  %v1444 = vmul.f32 %v1428, %v1348
  %v1445 = vmul.f32 %v1429, %v1349
  %v1446 = vmul.f32 %v1430, %v1350
  %v1447 = vmul.f32 %v1431, %v1351
  %v1448 = vmul.f32 %v1432, %v1352
  %v1449 = vmul.f32 %v1433, %v1353
  %v1450 = vmul.f32 %v1434, %v1354
  %v1451 = vmul.f32 %v1435, %v1355
  %v1452 = vmul.f32 %v1436, %v1356
  %v1453 = vmul.f32 %v1437, %v1357
  %v1454 = vmul.f32 %v1438, %v1358
  %v1455 = vmul.f32 %v1439, %v1359
  %v1456 = vmul.f32 %v1440, %v1360
  %v1457 = vmul.f32 %v1441, %v1361
  %v1458 = vmul.f32 %v1442, %v1362
  %v1459 = vld [vmem:[%s5] sm:$0xf]
  %v1460 = vld [vmem:[%s5 + $0x4] sm:$0xf]
  %v1461 = vld [vmem:[%s5 + $0x8] sm:$0xf]
  %v1462 = vld [vmem:[%s5 + $0xc] sm:$0xf]
  %v1463 = vld [vmem:[%s5 + $0x10] sm:$0xf]
  %v1464 = vld [vmem:[%s5 + $0x14] sm:$0xf]
  %v1465 = vld [vmem:[%s5 + $0x18] sm:$0xf]
  %v1466 = vld [vmem:[%s5 + $0x1c] sm:$0xf]
  %v1467 = vld [vmem:[%s5 + $0x20] sm:$0xf]
  %v1468 = vld [vmem:[%s5 + $0x24] sm:$0xf]
  %v1469 = vld [vmem:[%s5 + $0x28] sm:$0xf]
  %v1470 = vld [vmem:[%s5 + $0x2c] sm:$0xf]
  %v1471 = vld [vmem:[%s5 + $0x30] sm:$0xf]
  %v1472 = vld [vmem:[%s5 + $0x34] sm:$0xf]
  %v1473 = vld [vmem:[%s5 + $0x38] sm:$0xf]
  %v1474 = vld [vmem:[%s5 + $0x3c] sm:$0xf]
  %v1475 = vpack.c.bf16 %v1444, %v1443
  %v1476 = vpack.c.bf16 %v1446, %v1445
  %v1477 = vpack.c.bf16 %v1448, %v1447
  %v1478 = vpack.c.bf16 %v1450, %v1449
  %v1479 = vpack.c.bf16 %v1452, %v1451
  %v1480 = vpack.c.bf16 %v1454, %v1453
  %v1481 = vpack.c.bf16 %v1456, %v1455
  %v1482 = vpack.c.bf16 %v1458, %v1457
  %v1483 = vld [vmem:[%s6] sm:$0xf]
  %v1484 = vld [vmem:[%s6 + $0x4] sm:$0xf]
  %v1485 = vld [vmem:[%s6 + $0x8] sm:$0xf]
  %v1486 = vld [vmem:[%s6 + $0xc] sm:$0xf]
  %v1487 = vld [vmem:[%s6 + $0x10] sm:$0xf]
  %v1488 = vld [vmem:[%s6 + $0x14] sm:$0xf]
  %v1489 = vld [vmem:[%s6 + $0x18] sm:$0xf]
  %v1490 = vld [vmem:[%s6 + $0x1c] sm:$0xf]
  %v1491 = vld [vmem:[%s6 + $0x20] sm:$0xf]
  %v1492 = vld [vmem:[%s6 + $0x24] sm:$0xf]
  %v1493 = vld [vmem:[%s6 + $0x28] sm:$0xf]
  %v1494 = vld [vmem:[%s6 + $0x2c] sm:$0xf]
  %v1495 = vld [vmem:[%s6 + $0x30] sm:$0xf]
  %v1496 = vld [vmem:[%s6 + $0x34] sm:$0xf]
  %v1497 = vld [vmem:[%s6 + $0x38] sm:$0xf]
  %v1498 = vld [vmem:[%s6 + $0x3c] sm:$0xf]
  %v1515 = vunpack.c.l.b16 %v1483
  %v1516 = vunpack.c.l.b16 %v1484
  %v1517 = vunpack.c.l.b16 %v1485
  %v1518 = vunpack.c.l.b16 %v1486
  %v1519 = vunpack.c.l.b16 %v1487
  %v1520 = vunpack.c.l.b16 %v1488
  %v1521 = vunpack.c.l.b16 %v1489
  %v1522 = vunpack.c.l.b16 %v1490
  %v1523 = vunpack.c.l.b16 %v1491
  %v1524 = vunpack.c.l.b16 %v1492
  %v1525 = vunpack.c.l.b16 %v1493
  %v1526 = vunpack.c.l.b16 %v1494
  %v1527 = vunpack.c.l.b16 %v1495
  %v1528 = vunpack.c.l.b16 %v1496
  %v1529 = vunpack.c.l.b16 %v1497
  %v1530 = vunpack.c.l.b16 %v1498
  %v1531 = vpack.c.b16 %v1516, %v1515
  %v1532 = vpack.c.b16 %v1518, %v1517
  %v1533 = vpack.c.b16 %v1520, %v1519
  %v1534 = vpack.c.b16 %v1522, %v1521
  %v1535 = vpack.c.b16 %v1524, %v1523
  %v1536 = vpack.c.b16 %v1526, %v1525
  %v1537 = vpack.c.b16 %v1528, %v1527
  %v1538 = vpack.c.b16 %v1530, %v1529
  %1547 = vmatprep.subr.bf16.mxu0 0
  %1548 = vmatpush1.bf16.msra.mxu0 %v1531
  %1549 = vmatprep.subr.bf16.mxu0 0
  %1550 = vmatpush1.bf16.msra.mxu0 %v1532
  %1551 = vmatprep.subr.bf16.mxu0 0
  %1552 = vmatpush1.bf16.msra.mxu0 %v1533
  %1553 = vmatprep.subr.bf16.mxu0 0
  %1554 = vmatpush1.bf16.msra.mxu0 %v1534
  %1555 = vmatprep.subr.bf16.mxu0 0
  %1556 = vmatpush1.bf16.msra.mxu0 %v1535
  %1557 = vmatprep.subr.bf16.mxu0 0
  %1558 = vmatpush1.bf16.msra.mxu0 %v1536
  %1559 = vmatprep.subr.bf16.mxu0 0
  %1560 = vmatpush1.bf16.msra.mxu0 %v1537
  %1561 = vmatprep.subr.bf16.mxu0 0
  %1562 = vmatpush1.bf16.msra.mxu0 %v1538
  %1563 = vmatprep.subr.bf16.mxu0 0
  %1564 = vmatpush1.bf16.msra.mxu0 0
  %1565 = vmatprep.subr.bf16.mxu0 0
  %1566 = vmatpush1.bf16.msra.mxu0 0
  %1567 = vmatprep.subr.bf16.mxu0 0
  %1568 = vmatpush1.bf16.msra.mxu0 0
  %1569 = vmatprep.subr.bf16.mxu0 0
  %1570 = vmatpush1.bf16.msra.mxu0 0
  %1571 = vmatprep.subr.bf16.mxu0 0
  %1572 = vmatpush1.bf16.msra.mxu0 0
  %1573 = vmatprep.subr.bf16.mxu0 0
  %1574 = vmatpush1.bf16.msra.mxu0 0
  %1575 = vmatprep.subr.bf16.mxu0 0
  %1576 = vmatpush1.bf16.msra.mxu0 0
  %1577 = vmatprep.subr.bf16.mxu0 0
  %1578 = vmatpush1.bf16.msra.mxu0 0
  %1579 = vmatprep.mubr.bf16.mxu0 0
  %1580 = vmatmul.mubr.bf16.gmra.mrb[0].mxu0 %v1475
  %v1581 = vpop.f32.mrb[0].mxu0
  %v1582 = vadd.f32 0.0, %v1581
  %v1583 = vpop.f32.mrb[0].mxu0
  %v1584 = vpop.f32.mrb[0].mxu0
  %v1585 = vadd.f32 0.0, %v1584
  %v1586 = vpop.f32.mrb[0].mxu0
  %1587 = vmatprep.mubr.bf16.mxu0 0
  %1588 = vmatmul.mubr.bf16.gmra.mrb[0].mxu0 %v1476
  %v1589 = vpop.f32.mrb[0].mxu0
  %v1590 = vadd.f32 0.0, %v1589
  %v1591 = vpop.f32.mrb[0].mxu0
  %v1592 = vpop.f32.mrb[0].mxu0
  %v1593 = vadd.f32 0.0, %v1592
  %v1594 = vpop.f32.mrb[0].mxu0
  %1595 = vmatprep.mubr.bf16.mxu0 0
  %1596 = vmatmul.mubr.bf16.gmra.mrb[0].mxu0 %v1477
  %v1597 = vpop.f32.mrb[0].mxu0
  %v1598 = vadd.f32 0.0, %v1597
  %v1599 = vpop.f32.mrb[0].mxu0
  %v1600 = vpop.f32.mrb[0].mxu0
  %v1601 = vadd.f32 0.0, %v1600
  %v1602 = vpop.f32.mrb[0].mxu0
  %1603 = vmatprep.mubr.bf16.mxu0 0
  %1604 = vmatmul.mubr.bf16.gmra.mrb[0].mxu0 %v1478
  %v1605 = vpop.f32.mrb[0].mxu0
  %v1606 = vadd.f32 0.0, %v1605
  %v1607 = vpop.f32.mrb[0].mxu0
  %v1608 = vpop.f32.mrb[0].mxu0
  %v1609 = vadd.f32 0.0, %v1608
  %v1610 = vpop.f32.mrb[0].mxu0
  %1611 = vmatprep.mubr.bf16.mxu0 0
  %1612 = vmatmul.mubr.bf16.gmra.mrb[0].mxu0 %v1479
  %v1613 = vpop.f32.mrb[0].mxu0
  %v1614 = vadd.f32 0.0, %v1613
  %v1615 = vpop.f32.mrb[0].mxu0
  %v1616 = vpop.f32.mrb[0].mxu0
  %v1617 = vadd.f32 0.0, %v1616
  %v1618 = vpop.f32.mrb[0].mxu0
  %1619 = vmatprep.mubr.bf16.mxu0 0
  %1620 = vmatmul.mubr.bf16.gmra.mrb[0].mxu0 %v1480
  %v1621 = vpop.f32.mrb[0].mxu0
  %v1622 = vadd.f32 0.0, %v1621
  %v1623 = vpop.f32.mrb[0].mxu0
  %v1624 = vpop.f32.mrb[0].mxu0
  %v1625 = vadd.f32 0.0, %v1624
  %v1626 = vpop.f32.mrb[0].mxu0
  %1627 = vmatprep.mubr.bf16.mxu0 0
  %1628 = vmatmul.mubr.bf16.gmra.mrb[0].mxu0 %v1481
  %v1629 = vpop.f32.mrb[0].mxu0
  %v1630 = vadd.f32 0.0, %v1629
  %v1631 = vpop.f32.mrb[0].mxu0
  %v1632 = vpop.f32.mrb[0].mxu0
  %v1633 = vadd.f32 0.0, %v1632
  %v1634 = vpop.f32.mrb[0].mxu0
  %1635 = vmatprep.mubr.bf16.mxu0 0
  %1636 = vmatmul.mubr.bf16.gmra.mrb[0].mxu0 %v1482
  %v1637 = vpop.f32.mrb[0].mxu0
  %v1638 = vadd.f32 0.0, %v1637
  %v1639 = vpop.f32.mrb[0].mxu0
  %v1640 = vpop.f32.mrb[0].mxu0
  %v1641 = vadd.f32 0.0, %v1640
  %v1642 = vpop.f32.mrb[0].mxu0
  %1643 = vdwg.mxu0
  %v1660 = vunpack.c.l.b16 %v30
  %v1661 = vunpack.c.l.b16 %v31
  %v1662 = vunpack.c.l.b16 %v32
  %v1663 = vunpack.c.l.b16 %v33
  %v1664 = vunpack.c.l.b16 %v34
  %v1665 = vunpack.c.l.b16 %v35
  %v1666 = vunpack.c.l.b16 %v36
  %v1667 = vunpack.c.l.b16 %v37
  %v1668 = vunpack.c.l.b16 %v38
  %v1669 = vunpack.c.l.b16 %v39
  %v1670 = vunpack.c.l.b16 %v40
  %v1671 = vunpack.c.l.b16 %v41
  %v1672 = vunpack.c.l.b16 %v42
  %v1673 = vunpack.c.l.b16 %v43
  %v1674 = vunpack.c.l.b16 %v44
  %v1675 = vunpack.c.l.b16 %v45
  %v1676 = vpack.c.b16 %v1661, %v1660
  %v1677 = vpack.c.b16 %v1663, %v1662
  %v1678 = vpack.c.b16 %v1665, %v1664
  %v1679 = vpack.c.b16 %v1667, %v1666
  %v1680 = vpack.c.b16 %v1669, %v1668
  %v1681 = vpack.c.b16 %v1671, %v1670
  %v1682 = vpack.c.b16 %v1673, %v1672
  %v1683 = vpack.c.b16 %v1675, %v1674
  %v1708 = vunpack.c.l.b16 %v1459
  %v1709 = vunpack.c.l.b16 %v1460
  %v1710 = vunpack.c.l.b16 %v1461
  %v1711 = vunpack.c.l.b16 %v1462
  %v1712 = vunpack.c.l.b16 %v1463
  %v1713 = vunpack.c.l.b16 %v1464
  %v1714 = vunpack.c.l.b16 %v1465
  %v1715 = vunpack.c.l.b16 %v1466
  %v1716 = vunpack.c.l.b16 %v1467
  %v1717 = vunpack.c.l.b16 %v1468
  %v1718 = vunpack.c.l.b16 %v1469
  %v1719 = vunpack.c.l.b16 %v1470
  %v1720 = vunpack.c.l.b16 %v1471
  %v1721 = vunpack.c.l.b16 %v1472
  %v1722 = vunpack.c.l.b16 %v1473
  %v1723 = vunpack.c.l.b16 %v1474
  %v1724 = vpack.c.b16 %v1709, %v1708
  %v1725 = vpack.c.b16 %v1711, %v1710
  %v1726 = vpack.c.b16 %v1713, %v1712
  %v1727 = vpack.c.b16 %v1715, %v1714
  %v1728 = vpack.c.b16 %v1717, %v1716
  %v1729 = vpack.c.b16 %v1719, %v1718
  %v1730 = vpack.c.b16 %v1721, %v1720
  %v1731 = vpack.c.b16 %v1723, %v1722
  %1740 = vmatprep.subr.bf16.mxu0 0
  %1741 = vmatpush1.bf16.msra.mxu0 %v1724
  %1742 = vmatprep.subr.bf16.mxu0 0
  %1743 = vmatpush1.bf16.msra.mxu0 %v1725
  %1744 = vmatprep.subr.bf16.mxu0 0
  %1745 = vmatpush1.bf16.msra.mxu0 %v1726
  %1746 = vmatprep.subr.bf16.mxu0 0
  %1747 = vmatpush1.bf16.msra.mxu0 %v1727
  %1748 = vmatprep.subr.bf16.mxu0 0
  %1749 = vmatpush1.bf16.msra.mxu0 %v1728
  %1750 = vmatprep.subr.bf16.mxu0 0
  %1751 = vmatpush1.bf16.msra.mxu0 %v1729
  %1752 = vmatprep.subr.bf16.mxu0 0
  %1753 = vmatpush1.bf16.msra.mxu0 %v1730
  %1754 = vmatprep.subr.bf16.mxu0 0
  %1755 = vmatpush1.bf16.msra.mxu0 %v1731
  %1756 = vmatprep.subr.bf16.mxu0 0
  %1757 = vmatpush1.bf16.msra.mxu0 0
  %1758 = vmatprep.subr.bf16.mxu0 0
  %1759 = vmatpush1.bf16.msra.mxu0 0
  %1760 = vmatprep.subr.bf16.mxu0 0
  %1761 = vmatpush1.bf16.msra.mxu0 0
  %1762 = vmatprep.subr.bf16.mxu0 0
  %1763 = vmatpush1.bf16.msra.mxu0 0
  %1764 = vmatprep.subr.bf16.mxu0 0
  %1765 = vmatpush1.bf16.msra.mxu0 0
  %1766 = vmatprep.subr.bf16.mxu0 0
  %1767 = vmatpush1.bf16.msra.mxu0 0
  %1768 = vmatprep.subr.bf16.mxu0 0
  %1769 = vmatpush1.bf16.msra.mxu0 0
  %1770 = vmatprep.subr.bf16.mxu0 0
  %1771 = vmatpush1.bf16.msra.mxu0 0
  %1772 = vmatprep.mubr.bf16.mxu0 0
  %1773 = vmatmul.mubr.bf16.gmra.mrb[0].mxu0 %v1676
  %v1774 = vpop.f32.mrb[0].mxu0
  %v1775 = vadd.f32 %v1582, %v1774
  %v1776 = vpop.f32.mrb[0].mxu0
  %v1777 = vpop.f32.mrb[0].mxu0
  %v1778 = vadd.f32 %v1585, %v1777
  %v1779 = vpop.f32.mrb[0].mxu0
  %1780 = vmatprep.mubr.bf16.mxu0 0
  %1781 = vmatmul.mubr.bf16.gmra.mrb[0].mxu0 %v1677
  %v1782 = vpop.f32.mrb[0].mxu0
  %v1783 = vadd.f32 %v1590, %v1782
  %v1784 = vpop.f32.mrb[0].mxu0
  %v1785 = vpop.f32.mrb[0].mxu0
  %v1786 = vadd.f32 %v1593, %v1785
  %v1787 = vpop.f32.mrb[0].mxu0
  %1788 = vmatprep.mubr.bf16.mxu0 0
  %1789 = vmatmul.mubr.bf16.gmra.mrb[0].mxu0 %v1678
  %v1790 = vpop.f32.mrb[0].mxu0
  %v1791 = vadd.f32 %v1598, %v1790
  %v1792 = vpop.f32.mrb[0].mxu0
  %v1793 = vpop.f32.mrb[0].mxu0
  %v1794 = vadd.f32 %v1601, %v1793
  %v1795 = vpop.f32.mrb[0].mxu0
  %1796 = vmatprep.mubr.bf16.mxu0 0
  %1797 = vmatmul.mubr.bf16.gmra.mrb[0].mxu0 %v1679
  %v1798 = vpop.f32.mrb[0].mxu0
  %v1799 = vadd.f32 %v1606, %v1798
  %v1800 = vpop.f32.mrb[0].mxu0
  %v1801 = vpop.f32.mrb[0].mxu0
  %v1802 = vadd.f32 %v1609, %v1801
  %v1803 = vpop.f32.mrb[0].mxu0
  %1804 = vmatprep.mubr.bf16.mxu0 0
  %1805 = vmatmul.mubr.bf16.gmra.mrb[0].mxu0 %v1680
  %v1806 = vpop.f32.mrb[0].mxu0
  %v1807 = vadd.f32 %v1614, %v1806
  %v1808 = vpop.f32.mrb[0].mxu0
  %v1809 = vpop.f32.mrb[0].mxu0
  %v1810 = vadd.f32 %v1617, %v1809
  %v1811 = vpop.f32.mrb[0].mxu0
  %1812 = vmatprep.mubr.bf16.mxu0 0
  %1813 = vmatmul.mubr.bf16.gmra.mrb[0].mxu0 %v1681
  %v1814 = vpop.f32.mrb[0].mxu0
  %v1815 = vadd.f32 %v1622, %v1814
  %v1816 = vpop.f32.mrb[0].mxu0
  %v1817 = vpop.f32.mrb[0].mxu0
  %v1818 = vadd.f32 %v1625, %v1817
  %v1819 = vpop.f32.mrb[0].mxu0
  %1820 = vmatprep.mubr.bf16.mxu0 0
  %1821 = vmatmul.mubr.bf16.gmra.mrb[0].mxu0 %v1682
  %v1822 = vpop.f32.mrb[0].mxu0
  %v1823 = vadd.f32 %v1630, %v1822
  %v1824 = vpop.f32.mrb[0].mxu0
  %v1825 = vpop.f32.mrb[0].mxu0
  %v1826 = vadd.f32 %v1633, %v1825
  %v1827 = vpop.f32.mrb[0].mxu0
  %1828 = vmatprep.mubr.bf16.mxu0 0
  %1829 = vmatmul.mubr.bf16.gmra.mrb[0].mxu0 %v1683
  %v1830 = vpop.f32.mrb[0].mxu0
  %v1831 = vadd.f32 %v1638, %v1830
  %v1832 = vpop.f32.mrb[0].mxu0
  %v1833 = vpop.f32.mrb[0].mxu0
  %v1834 = vadd.f32 %v1641, %v1833
  %v1835 = vpop.f32.mrb[0].mxu0
  %1836 = vdwg.mxu0
  %v1837 = vld [vmem:[%s7] sm:$0x1]
  %v1839 = vlaneseq
  %v1840 = vshrl.u32 %v1839, 7
  %v1841 = vsub.s32 0, %v1840
  %v1842 = vrot.slane %v1837, %v1841
  %v1844 = vadd.f32 %v1775, %v1842
  %v1845 = vadd.f32 %v1778, %v1842
  %v1846 = vadd.f32 %v1783, %v1842
  %v1847 = vadd.f32 %v1786, %v1842
  %v1848 = vadd.f32 %v1791, %v1842
  %v1849 = vadd.f32 %v1794, %v1842
  %v1850 = vadd.f32 %v1799, %v1842
  %v1851 = vadd.f32 %v1802, %v1842
  %v1852 = vadd.f32 %v1807, %v1842
  %v1853 = vadd.f32 %v1810, %v1842
  %v1854 = vadd.f32 %v1815, %v1842
  %v1855 = vadd.f32 %v1818, %v1842
  %v1856 = vadd.f32 %v1823, %v1842
  %v1857 = vadd.f32 %v1826, %v1842
  %v1858 = vadd.f32 %v1831, %v1842
  %v1859 = vadd.f32 %v1834, %v1842
  %v1860 = vmax.f32 %v1844, 0.0
  %v1861 = vmax.f32 %v1845, 0.0
  %v1862 = vmax.f32 %v1846, 0.0
  %v1863 = vmax.f32 %v1847, 0.0
  %v1864 = vmax.f32 %v1848, 0.0
  %v1865 = vmax.f32 %v1849, 0.0
  %v1866 = vmax.f32 %v1850, 0.0
  %v1867 = vmax.f32 %v1851, 0.0
  %v1868 = vmax.f32 %v1852, 0.0
  %v1869 = vmax.f32 %v1853, 0.0
  %v1870 = vmax.f32 %v1854, 0.0
  %v1871 = vmax.f32 %v1855, 0.0
  %v1872 = vmax.f32 %v1856, 0.0
  %v1873 = vmax.f32 %v1857, 0.0
  %v1874 = vmax.f32 %v1858, 0.0
  %v1875 = vmax.f32 %v1859, 0.0
  %v1876 = vmul.f32 %v1860, %v1860
  %v1877 = vmul.f32 %v1861, %v1861
  %v1878 = vmul.f32 %v1862, %v1862
  %v1879 = vmul.f32 %v1863, %v1863
  %v1880 = vmul.f32 %v1864, %v1864
  %v1881 = vmul.f32 %v1865, %v1865
  %v1882 = vmul.f32 %v1866, %v1866
  %v1883 = vmul.f32 %v1867, %v1867
  %v1884 = vmul.f32 %v1868, %v1868
  %v1885 = vmul.f32 %v1869, %v1869
  %v1886 = vmul.f32 %v1870, %v1870
  %v1887 = vmul.f32 %v1871, %v1871
  %v1888 = vmul.f32 %v1872, %v1872
  %v1889 = vmul.f32 %v1873, %v1873
  %v1890 = vmul.f32 %v1874, %v1874
  %v1891 = vmul.f32 %v1875, %v1875
  %1892 = vadd.xlane.f32.xlu0 %v1876
  %v1893 = vpop.xlane.xlu0 %1892
  %1894 = vadd.xlane.f32.xlu0 %v1877
  %v1895 = vpop.xlane.xlu0 %1894
  %1896 = vadd.xlane.f32.xlu0 %v1878
  %v1897 = vpop.xlane.xlu0 %1896
  %1898 = vadd.xlane.f32.xlu0 %v1879
  %v1899 = vpop.xlane.xlu0 %1898
  %1900 = vadd.xlane.f32.xlu0 %v1880
  %v1901 = vpop.xlane.xlu0 %1900
  %1902 = vadd.xlane.f32.xlu0 %v1881
  %v1903 = vpop.xlane.xlu0 %1902
  %1904 = vadd.xlane.f32.xlu0 %v1882
  %v1905 = vpop.xlane.xlu0 %1904
  %1906 = vadd.xlane.f32.xlu0 %v1883
  %v1907 = vpop.xlane.xlu0 %1906
  %1908 = vadd.xlane.f32.xlu0 %v1884
  %v1909 = vpop.xlane.xlu0 %1908
  %1910 = vadd.xlane.f32.xlu0 %v1885
  %v1911 = vpop.xlane.xlu0 %1910
  %1912 = vadd.xlane.f32.xlu0 %v1886
  %v1913 = vpop.xlane.xlu0 %1912
  %1914 = vadd.xlane.f32.xlu0 %v1887
  %v1915 = vpop.xlane.xlu0 %1914
  %1916 = vadd.xlane.f32.xlu0 %v1888
  %v1917 = vpop.xlane.xlu0 %1916
  %1918 = vadd.xlane.f32.xlu0 %v1889
  %v1919 = vpop.xlane.xlu0 %1918
  %1920 = vadd.xlane.f32.xlu0 %v1890
  %v1921 = vpop.xlane.xlu0 %1920
  %1922 = vadd.xlane.f32.xlu0 %v1891
  %v1923 = vpop.xlane.xlu0 %1922
  %v1924 = vmax.f32 %v1893, 1e-24
  %v1925 = vmax.f32 %v1895, 1e-24
  %v1926 = vmax.f32 %v1897, 1e-24
  %v1927 = vmax.f32 %v1899, 1e-24
  %v1928 = vmax.f32 %v1901, 1e-24
  %v1929 = vmax.f32 %v1903, 1e-24
  %v1930 = vmax.f32 %v1905, 1e-24
  %v1931 = vmax.f32 %v1907, 1e-24
  %v1932 = vmax.f32 %v1909, 1e-24
  %v1933 = vmax.f32 %v1911, 1e-24
  %v1934 = vmax.f32 %v1913, 1e-24
  %v1935 = vmax.f32 %v1915, 1e-24
  %v1936 = vmax.f32 %v1917, 1e-24
  %v1937 = vmax.f32 %v1919, 1e-24
  %v1938 = vmax.f32 %v1921, 1e-24
  %v1939 = vmax.f32 %v1923, 1e-24
  %v1940 = vrsqrt.pop %v1924
  %v1941 = vrsqrt.pop %v1925
  %v1942 = vrsqrt.pop %v1926
  %v1943 = vrsqrt.pop %v1927
  %v1944 = vrsqrt.pop %v1928
  %v1945 = vrsqrt.pop %v1929
  %v1946 = vrsqrt.pop %v1930
  %v1947 = vrsqrt.pop %v1931
  %v1948 = vrsqrt.pop %v1932
  %v1949 = vrsqrt.pop %v1933
  %v1950 = vrsqrt.pop %v1934
  %v1951 = vrsqrt.pop %v1935
  %v1952 = vrsqrt.pop %v1936
  %v1953 = vrsqrt.pop %v1937
  %v1954 = vrsqrt.pop %v1938
  %v1955 = vrsqrt.pop %v1939
  %v1956 = vmul.f32 %v1860, %v1940
  %v1957 = vmul.f32 %v1861, %v1941
  %v1958 = vmul.f32 %v1862, %v1942
  %v1959 = vmul.f32 %v1863, %v1943
  %v1960 = vmul.f32 %v1864, %v1944
  %v1961 = vmul.f32 %v1865, %v1945
  %v1962 = vmul.f32 %v1866, %v1946
  %v1963 = vmul.f32 %v1867, %v1947
  %v1964 = vmul.f32 %v1868, %v1948
  %v1965 = vmul.f32 %v1869, %v1949
  %v1966 = vmul.f32 %v1870, %v1950
  %v1967 = vmul.f32 %v1871, %v1951
  %v1968 = vmul.f32 %v1872, %v1952
  %v1969 = vmul.f32 %v1873, %v1953
  %v1970 = vmul.f32 %v1874, %v1954
  %v1971 = vmul.f32 %v1875, %v1955
  %1972 = vst [vmem:[%s8] sm:$0xff] %v1956
  %1973 = vst [vmem:[%s8 + $0x8] sm:$0xff] %v1957
  %1974 = vst [vmem:[%s8 + $0x10] sm:$0xff] %v1958
  %1975 = vst [vmem:[%s8 + $0x18] sm:$0xff] %v1959
  %1976 = vst [vmem:[%s8 + $0x20] sm:$0xff] %v1960
  %1977 = vst [vmem:[%s8 + $0x28] sm:$0xff] %v1961
  %1978 = vst [vmem:[%s8 + $0x30] sm:$0xff] %v1962
  %1979 = vst [vmem:[%s8 + $0x38] sm:$0xff] %v1963
  %1980 = vst [vmem:[%s8 + $0x40] sm:$0xff] %v1964
  %1981 = vst [vmem:[%s8 + $0x48] sm:$0xff] %v1965
  %1982 = vst [vmem:[%s8 + $0x50] sm:$0xff] %v1966
  %1983 = vst [vmem:[%s8 + $0x58] sm:$0xff] %v1967
  %1984 = vst [vmem:[%s8 + $0x60] sm:$0xff] %v1968
  %1985 = vst [vmem:[%s8 + $0x68] sm:$0xff] %v1969
  %1986 = vst [vmem:[%s8 + $0x70] sm:$0xff] %v1970
  %1987 = vst [vmem:[%s8 + $0x78] sm:$0xff] %v1971
  // Predicated region
  $region34: #{het_agg_forward.3} parent=0 // pred_check
    _
  $region35: #{het_agg_forward.3} parent=0 // pred_check_branch
    %1989 = sbr.rel (0) target = $region37
  $region36: #{het_agg_forward.3} parent=0 // pred_region
    _
  $region37: #{het_agg_forward.3} parent=0 // pred_fallthru
    _
  // Predicated region
  $region38: #{het_agg_forward.3} parent=0 // pred_check
    _
  $region39: #{het_agg_forward.3} parent=0 // pred_check_branch
    %1991 = sbr.rel (0) target = $region41
  $region40: #{het_agg_forward.3} parent=0 // pred_region
    _
  $region41: #{het_agg_forward.3} parent=0 // pred_fallthru
    _

</llo_original>
